<compile_context>
chip_gen: v7x
topology: tpu7x:2x2x1
jax: 0.10.0
libtpu: 0.0.40
codegen_flags: <defaults>
</compile_context>

<pallas_src>
import math

import jax
import jax.numpy as jnp
from jax.experimental import pallas as pl
from jax.experimental.pallas import tpu as pltpu


def _frm_kernel(x_ref, w1_ref, b1_ref, fc1_ref, fc2_ref, w2_ref, b2_ref,
                o_ref, pad_ref, col_ref):
    # x_ref block: (1, H, W, C); pad_ref: (H+2, W+2, C); col_ref: (H*W, Kp)
    _, H, W, C = x_ref.shape
    HW = H * W
    Kp = col_ref.shape[1]          # 9*C rounded up to a multiple of 128
    group = 128 // C               # taps per 128-lane slab (wrapper asserts 128 % C == 0)
    f32 = jnp.float32

    # ---- zero ONLY the 1-pixel border of the padded buffer ---------------------
    # Unconditional every grid step: under ("parallel",) semantics a core may never
    # see program_id == 0, so pl.when-gated init of persistent scratch is unsafe.
    pad_ref[0:1, :, :] = jnp.zeros((1, W + 2, C), f32)
    pad_ref[H + 1:H + 2, :, :] = jnp.zeros((1, W + 2, C), f32)
    pad_ref[1:H + 1, 0:1, :] = jnp.zeros((H, 1, C), f32)
    pad_ref[1:H + 1, W + 1:W + 2, :] = jnp.zeros((H, 1, C), f32)

    # ---- place the input image in the interior ---------------------------------
    pad_ref[1:H + 1, 1:W + 1, :] = x_ref[0]

    def build_cols():
        # Dense-K im2col: columns ordered (tap-major, then Cin), written as
        # 128-lane-aligned slabs so every col store is an unmasked full vst.
        # The last slab is zero-filled up to Kp, so the K padding is exact zeros
        # on every build (weight pad rows are zero too — belt and suspenders).
        # Note: dx in {1,2} is a sublane-unaligned slice of pad_ref; the relayout
        # copies it implies ride the XLU/load slots, which have slack here.
        for g in range(Kp // 128):
            pieces = []
            for k in range(g * group, min((g + 1) * group, 9)):
                dy, dx = divmod(k, 3)
                pieces.append(pad_ref[dy:dy + H, dx:dx + W, :].reshape(HW, C))
            width = len(pieces) * C
            if width < 128:
                pieces.append(jnp.zeros((HW, 128 - width), f32))
            slab = pieces[0] if len(pieces) == 1 else jnp.concatenate(pieces, axis=1)
            col_ref[:, g * 128:(g + 1) * 128] = slab

    # ---- conv1 (3x3, pad=1) + bias + relu : one (HW, Kp) @ (Kp, C) matmul ------
    build_cols()
    out1 = jnp.maximum(
        jnp.dot(col_ref[...], w1_ref[...], preferred_element_type=f32)
        + b1_ref[...], 0.0)                                          # (HW, C)

    # Pooled mean taken while out1 is live; out1 is then parked in pad_ref (needed
    # there for conv2's im2col anyway) so nothing big stays live across the SE FCs.
    pooled = jnp.mean(out1, axis=0, keepdims=True)                   # (1, C)
    pad_ref[1:H + 1, 1:W + 1, :] = out1.reshape(H, W, C)

    # ---- squeeze-excite: fc1 -> relu -> fc2 -> sigmoid (fully dense dims) ------
    h = jnp.maximum(
        jnp.dot(pooled, fc1_ref[...], preferred_element_type=f32), 0.0)   # (1, Cr)
    w_ch = jax.nn.sigmoid(
        jnp.dot(h, fc2_ref[...], preferred_element_type=f32))             # (1, C)

    # ---- channel scale applied in place on the padded buffer interior ----------
    pad_ref[1:H + 1, 1:W + 1, :] = (
        pad_ref[1:H + 1, 1:W + 1, :] * w_ch.reshape(1, 1, C))

    # ---- conv2 (3x3, pad=1) + bias : one (HW, Kp) @ (Kp, C) matmul -------------
    build_cols()
    out2 = jnp.dot(col_ref[...], w2_ref[...],
                   preferred_element_type=f32) + b2_ref[...]              # (HW, C)

    # ---- residual ----------------------------------------------------------------
    o_ref[0] = (out2.reshape(H, W, C) + x_ref[0]).astype(o_ref.dtype)


def feature_refinement(x_nhwc, w1, b1, fc1, fc2, w2, b2):
    """x_nhwc: (B,H,W,C); w1/w2: (9,C,C) (tap, Cin, Cout); b1/b2: (1,C);
    fc1: (C, Cr); fc2: (Cr, C). Returns (B,H,W,C)."""
    B, H, W, C = x_nhwc.shape
    Cr = fc1.shape[1]
    assert 128 % C == 0, "im2col slab packing assumes C divides 128"

    K = 9 * C
    Kp = ((K + 127) // 128) * 128          # dense K, padded only to the next 128

    f32 = jnp.float32
    x = x_nhwc.astype(f32)
    # Conv weights in im2col layout (tap-major, then Cin) x Cout; only K zero-padded.
    w1p = jnp.pad(w1.astype(f32).reshape(K, C), ((0, Kp - K), (0, 0)))
    w2p = jnp.pad(w2.astype(f32).reshape(K, C), ((0, Kp - K), (0, 0)))
    b1f, b2f = b1.astype(f32), b2.astype(f32)
    fc1f, fc2f = fc1.astype(f32), fc2.astype(f32)

    cost = pl.CostEstimate(
        flops=4 * B * H * W * K * C,                       # two dense im2col conv matmuls
        transcendentals=B * C,                             # sigmoid
        bytes_accessed=4 * (2 * B * H * W * C              # x in + out
                            + 2 * Kp * C                   # conv weights (im2col, K-padded)
                            + 2 * C * Cr + 2 * C))         # fc weights + biases

    grid_spec = pltpu.PrefetchScalarGridSpec(
        num_scalar_prefetch=0,
        grid=(B,),
        in_specs=[
            pl.BlockSpec((1, H, W, C), lambda b: (b, 0, 0, 0)),   # x, unpadded (C == full dim)
            pl.BlockSpec((Kp, C), lambda b: (0, 0)),              # conv1 weights (im2col)
            pl.BlockSpec((1, C), lambda b: (0, 0)),               # conv1 bias
            pl.BlockSpec((C, Cr), lambda b: (0, 0)),              # fc1 (in, out), fully dense
            pl.BlockSpec((Cr, C), lambda b: (0, 0)),              # fc2 (in, out), fully dense
            pl.BlockSpec((Kp, C), lambda b: (0, 0)),              # conv2 weights (im2col)
            pl.BlockSpec((1, C), lambda b: (0, 0)),               # conv2 bias
        ],
        out_specs=pl.BlockSpec((1, H, W, C), lambda b: (b, 0, 0, 0)),
        scratch_shapes=[
            pltpu.VMEM((H + 2, W + 2, C), jnp.float32),   # zero-bordered image buffer
            pltpu.VMEM((H * W, Kp), jnp.float32),         # dense-K im2col patch matrix
        ],
    )

    return pl.pallas_call(
        _frm_kernel,
        out_shape=jax.ShapeDtypeStruct((B, H, W, C), jnp.float32),
        grid_spec=grid_spec,
        compiler_params=pltpu.CompilerParams(
            dimension_semantics=("parallel",)),   # v7x: one image per TC; v5e/v6e: 2 cheap steps
        cost_estimate=cost,
    )(x, w1p, b1f, fc1f, fc2f, w2p, b2f)


def _reference(x_nhwc, w1, b1, fc1, fc2, w2, b2):
    """Pure-JAX reference matching the PyTorch forward (for validation)."""
    B, H, W, C = x_nhwc.shape

    def conv3x3(inp, w, b):
        y = jax.lax.conv_general_dilated(
            inp, w.reshape(3, 3, C, C), window_strides=(1, 1), padding="SAME",
            dimension_numbers=("NHWC", "HWIO", "NHWC"))
        return y + b.reshape(1, 1, 1, C)

    out = jax.nn.relu(conv3x3(x_nhwc, w1, b1))
    pooled = jnp.mean(out, axis=(1, 2))                     # (B, C)
    wch = jax.nn.sigmoid(jax.nn.relu(pooled @ fc1) @ fc2)   # (B, C)
    out = out * wch[:, None, None, :]
    out = conv3x3(out, w2, b2)
    return out + x_nhwc


if __name__ == "__main__":
    B, C, H, W = 2, 32, 16, 16
    reduction = 16
    Cr = C // reduction

    key = jax.random.PRNGKey(0)
    ks = jax.random.split(key, 7)

    # Input in PyTorch NCHW convention, moved to NHWC for the kernel.
    x_nchw = jax.random.normal(ks[0], (B, C, H, W), jnp.float32)
    x = jnp.transpose(x_nchw, (0, 2, 3, 1))  # (B, H, W, C)

    # Deterministic synthetic parameters (shapes follow the module's __init__).
    conv_scale = 1.0 / math.sqrt(9 * C)
    w1 = jax.random.normal(ks[1], (9, C, C), jnp.float32) * conv_scale
    b1 = jax.random.normal(ks[2], (1, C), jnp.float32) * 0.1
    w2 = jax.random.normal(ks[3], (9, C, C), jnp.float32) * conv_scale
    b2 = jax.random.normal(ks[4], (1, C), jnp.float32) * 0.1
    fc1 = jax.random.normal(ks[5], (C, Cr), jnp.float32) / math.sqrt(C)   # Linear(C -> C/r), no bias
    fc2 = jax.random.normal(ks[6], (Cr, C), jnp.float32) / math.sqrt(Cr)  # Linear(C/r -> C), no bias

    out = feature_refinement(x, w1, b1, fc1, fc2, w2, b2)
    out = jax.block_until_ready(out)

    ref = _reference(x, w1, b1, fc1, fc2, w2, b2)
    assert out.shape == (B, H, W, C)
    assert jnp.allclose(out, ref, atol=1e-3, rtol=1e-3), \
        f"max abs err {jnp.max(jnp.abs(out - ref))}"

    print("KERNEL_OK")
</pallas_src>

<mosaic_0001>
module attributes {stable_mosaic.version = 11 : i64} {
  func.func @_frm_kernel(%arg0: i32, %arg1: memref<1x16x16x32xf32, #tpu.memory_space<vmem>>, %arg2: memref<384x32xf32, #tpu.memory_space<vmem>>, %arg3: memref<1x32xf32, #tpu.memory_space<vmem>>, %arg4: memref<32x2xf32, #tpu.memory_space<vmem>>, %arg5: memref<2x32xf32, #tpu.memory_space<vmem>>, %arg6: memref<384x32xf32, #tpu.memory_space<vmem>>, %arg7: memref<1x32xf32, #tpu.memory_space<vmem>>, %arg8: memref<1x16x16x32xf32, #tpu.memory_space<vmem>>, %arg9: memref<18x18x32xf32, #tpu.memory_space<vmem>>, %arg10: memref<256x384xf32, #tpu.memory_space<vmem>>) attributes {dimension_semantics = [#tpu.dimension_semantics<parallel>], iteration_bounds = array<i64: 2>, scalar_prefetch = 0 : i64, scratch_operands = 2 : i64, tpu.core_type = #tpu.core_type<tc>, window_params = [{transform_indices = @transform_0, window_bounds = array<i64: 1, 16, 16, 32>}, {pipeline_mode = #tpu.pipeline_mode<synchronous>, transform_indices = @transform_1, window_bounds = array<i64: 384, 32>}, {pipeline_mode = #tpu.pipeline_mode<synchronous>, transform_indices = @transform_2, window_bounds = array<i64: 1, 32>}, {pipeline_mode = #tpu.pipeline_mode<synchronous>, transform_indices = @transform_3, window_bounds = array<i64: 32, 2>}, {pipeline_mode = #tpu.pipeline_mode<synchronous>, transform_indices = @transform_4, window_bounds = array<i64: 2, 32>}, {pipeline_mode = #tpu.pipeline_mode<synchronous>, transform_indices = @transform_5, window_bounds = array<i64: 384, 32>}, {pipeline_mode = #tpu.pipeline_mode<synchronous>, transform_indices = @transform_6, window_bounds = array<i64: 1, 32>}, {transform_indices = @transform_7, window_bounds = array<i64: 1, 16, 16, 32>}]} {
    %cst = arith.constant 0.000000e+00 : f32
    %0 = vector.broadcast %cst : f32 to vector<1x18x32xf32>
    %c0 = arith.constant 0 : index
    %c0_0 = arith.constant 0 : index
    %c0_1 = arith.constant 0 : index
    %1 = vector.load %arg9[%c0, %c0_0, %c0_1] : memref<18x18x32xf32, #tpu.memory_space<vmem>>, vector<1x18x32xf32>
    tpu.vector_store %arg9[%c0, %c0_0, %c0_1], %0 {strides = array<i32>} : memref<18x18x32xf32, #tpu.memory_space<vmem>>, vector<1x18x32xf32>,
    %cst_2 = arith.constant 0.000000e+00 : f32
    %2 = vector.broadcast %cst_2 : f32 to vector<1x18x32xf32>
    %c17 = arith.constant 17 : index
    %c0_3 = arith.constant 0 : index
    %c0_4 = arith.constant 0 : index
    %3 = vector.load %arg9[%c17, %c0_3, %c0_4] : memref<18x18x32xf32, #tpu.memory_space<vmem>>, vector<1x18x32xf32>
    tpu.vector_store %arg9[%c17, %c0_3, %c0_4], %2 {strides = array<i32>} : memref<18x18x32xf32, #tpu.memory_space<vmem>>, vector<1x18x32xf32>,
    %cst_5 = arith.constant 0.000000e+00 : f32
    %4 = vector.broadcast %cst_5 : f32 to vector<16x1x32xf32>
    %c1 = arith.constant 1 : index
    %c0_6 = arith.constant 0 : index
    %c0_7 = arith.constant 0 : index
    %5 = vector.load %arg9[%c1, %c0_6, %c0_7] : memref<18x18x32xf32, #tpu.memory_space<vmem>>, vector<16x1x32xf32>
    tpu.vector_store %arg9[%c1, %c0_6, %c0_7], %4 {strides = array<i32>} : memref<18x18x32xf32, #tpu.memory_space<vmem>>, vector<16x1x32xf32>,
    %cst_8 = arith.constant 0.000000e+00 : f32
    %6 = vector.broadcast %cst_8 : f32 to vector<16x1x32xf32>
    %c1_9 = arith.constant 1 : index
    %c17_10 = arith.constant 17 : index
    %c0_11 = arith.constant 0 : index
    %7 = vector.load %arg9[%c1_9, %c17_10, %c0_11] : memref<18x18x32xf32, #tpu.memory_space<vmem>>, vector<16x1x32xf32>
    tpu.vector_store %arg9[%c1_9, %c17_10, %c0_11], %6 {strides = array<i32>} : memref<18x18x32xf32, #tpu.memory_space<vmem>>, vector<16x1x32xf32>,
    %c0_12 = arith.constant 0 : index
    %c0_13 = arith.constant 0 : index
    %c0_14 = arith.constant 0 : index
    %c0_15 = arith.constant 0 : index
    %8 = vector.load %arg1[%c0_12, %c0_13, %c0_14, %c0_15] : memref<1x16x16x32xf32, #tpu.memory_space<vmem>>, vector<1x16x16x32xf32>
    %9 = vector.shape_cast %8 : vector<1x16x16x32xf32> to vector<16x16x32xf32>
    %c1_16 = arith.constant 1 : index
    %c1_17 = arith.constant 1 : index
    %c0_18 = arith.constant 0 : index
    %10 = vector.load %arg9[%c1_16, %c1_17, %c0_18] : memref<18x18x32xf32, #tpu.memory_space<vmem>>, vector<16x16x32xf32>
    tpu.vector_store %arg9[%c1_16, %c1_17, %c0_18], %9 {strides = array<i32>} : memref<18x18x32xf32, #tpu.memory_space<vmem>>, vector<16x16x32xf32>,
    %c0_19 = arith.constant 0 : index
    %c0_20 = arith.constant 0 : index
    %c0_21 = arith.constant 0 : index
    %11 = vector.load %arg9[%c0_19, %c0_20, %c0_21] : memref<18x18x32xf32, #tpu.memory_space<vmem>>, vector<16x16x32xf32>
    %12 = vector.shape_cast %11 : vector<16x16x32xf32> to vector<256x32xf32>
    %c0_22 = arith.constant 0 : index
    %c1_23 = arith.constant 1 : index
    %c0_24 = arith.constant 0 : index
    %13 = vector.load %arg9[%c0_22, %c1_23, %c0_24] : memref<18x18x32xf32, #tpu.memory_space<vmem>>, vector<16x16x32xf32>
    %14 = vector.shape_cast %13 : vector<16x16x32xf32> to vector<256x32xf32>
    %c0_25 = arith.constant 0 : index
    %c2 = arith.constant 2 : index
    %c0_26 = arith.constant 0 : index
    %15 = vector.load %arg9[%c0_25, %c2, %c0_26] : memref<18x18x32xf32, #tpu.memory_space<vmem>>, vector<16x16x32xf32>
    %16 = vector.shape_cast %15 : vector<16x16x32xf32> to vector<256x32xf32>
    %c1_27 = arith.constant 1 : index
    %c0_28 = arith.constant 0 : index
    %c0_29 = arith.constant 0 : index
    %17 = vector.load %arg9[%c1_27, %c0_28, %c0_29] : memref<18x18x32xf32, #tpu.memory_space<vmem>>, vector<16x16x32xf32>
    %18 = vector.shape_cast %17 : vector<16x16x32xf32> to vector<256x32xf32>
    %19 = tpu.concatenate %12, %14, %16, %18 in 1 : vector<256x32xf32>, vector<256x32xf32>, vector<256x32xf32>, vector<256x32xf32> -> vector<256x128xf32>
    %c0_30 = arith.constant 0 : index
    %c0_31 = arith.constant 0 : index
    %20 = vector.load %arg10[%c0_30, %c0_31] : memref<256x384xf32, #tpu.memory_space<vmem>>, vector<256x128xf32>
    tpu.vector_store %arg10[%c0_30, %c0_31], %19 {strides = array<i32>} : memref<256x384xf32, #tpu.memory_space<vmem>>, vector<256x128xf32>,
    %c1_32 = arith.constant 1 : index
    %c1_33 = arith.constant 1 : index
    %c0_34 = arith.constant 0 : index
    %21 = vector.load %arg9[%c1_32, %c1_33, %c0_34] : memref<18x18x32xf32, #tpu.memory_space<vmem>>, vector<16x16x32xf32>
    %22 = vector.shape_cast %21 : vector<16x16x32xf32> to vector<256x32xf32>
    %c1_35 = arith.constant 1 : index
    %c2_36 = arith.constant 2 : index
    %c0_37 = arith.constant 0 : index
    %23 = vector.load %arg9[%c1_35, %c2_36, %c0_37] : memref<18x18x32xf32, #tpu.memory_space<vmem>>, vector<16x16x32xf32>
    %24 = vector.shape_cast %23 : vector<16x16x32xf32> to vector<256x32xf32>
    %c2_38 = arith.constant 2 : index
    %c0_39 = arith.constant 0 : index
    %c0_40 = arith.constant 0 : index
    %25 = vector.load %arg9[%c2_38, %c0_39, %c0_40] : memref<18x18x32xf32, #tpu.memory_space<vmem>>, vector<16x16x32xf32>
    %26 = vector.shape_cast %25 : vector<16x16x32xf32> to vector<256x32xf32>
    %c2_41 = arith.constant 2 : index
    %c1_42 = arith.constant 1 : index
    %c0_43 = arith.constant 0 : index
    %27 = vector.load %arg9[%c2_41, %c1_42, %c0_43] : memref<18x18x32xf32, #tpu.memory_space<vmem>>, vector<16x16x32xf32>
    %28 = vector.shape_cast %27 : vector<16x16x32xf32> to vector<256x32xf32>
    %29 = tpu.concatenate %22, %24, %26, %28 in 1 : vector<256x32xf32>, vector<256x32xf32>, vector<256x32xf32>, vector<256x32xf32> -> vector<256x128xf32>
    %c0_44 = arith.constant 0 : index
    %c128 = arith.constant 128 : index
    %30 = vector.load %arg10[%c0_44, %c128] : memref<256x384xf32, #tpu.memory_space<vmem>>, vector<256x128xf32>
    tpu.vector_store %arg10[%c0_44, %c128], %29 {strides = array<i32>} : memref<256x384xf32, #tpu.memory_space<vmem>>, vector<256x128xf32>,
    %c2_45 = arith.constant 2 : index
    %c2_46 = arith.constant 2 : index
    %c0_47 = arith.constant 0 : index
    %31 = vector.load %arg9[%c2_45, %c2_46, %c0_47] : memref<18x18x32xf32, #tpu.memory_space<vmem>>, vector<16x16x32xf32>
    %32 = vector.shape_cast %31 : vector<16x16x32xf32> to vector<256x32xf32>
    %cst_48 = arith.constant 0.000000e+00 : f32
    %33 = vector.broadcast %cst_48 : f32 to vector<256x96xf32>
    %34 = tpu.concatenate %32, %33 in 1 : vector<256x32xf32>, vector<256x96xf32> -> vector<256x128xf32>
    %c0_49 = arith.constant 0 : index
    %c256 = arith.constant 256 : index
    %35 = vector.load %arg10[%c0_49, %c256] : memref<256x384xf32, #tpu.memory_space<vmem>>, vector<256x128xf32>
    tpu.vector_store %arg10[%c0_49, %c256], %34 {strides = array<i32>} : memref<256x384xf32, #tpu.memory_space<vmem>>, vector<256x128xf32>,
    %c0_50 = arith.constant 0 : index
    %c0_51 = arith.constant 0 : index
    %36 = vector.load %arg10[%c0_50, %c0_51] : memref<256x384xf32, #tpu.memory_space<vmem>>, vector<256x384xf32>
    %c0_52 = arith.constant 0 : index
    %c0_53 = arith.constant 0 : index
    %37 = vector.load %arg2[%c0_52, %c0_53] : memref<384x32xf32, #tpu.memory_space<vmem>>, vector<384x32xf32>
    %cst_54 = arith.constant dense<0.000000e+00> : vector<256x32xf32>
    %38 = tpu.matmul %36, %37, %cst_54 {dimension_numbers = #tpu.dot_dimension_numbers<[1], [0], [0], [1], [0, 0, 1, 1], [], []>} : vector<256x384xf32>, vector<384x32xf32>, vector<256x32xf32> -> vector<256x32xf32>
    %c0_55 = arith.constant 0 : index
    %c0_56 = arith.constant 0 : index
    %39 = vector.load %arg3[%c0_55, %c0_56] : memref<1x32xf32, #tpu.memory_space<vmem>>, vector<1x32xf32>
    %40 = vector.broadcast %39 : vector<1x32xf32> to vector<256x32xf32>
    %41 = arith.addf %38, %40 : vector<256x32xf32>
    %cst_57 = arith.constant 0.000000e+00 : f32
    %42 = vector.broadcast %cst_57 : f32 to vector<256x32xf32>
    %43 = arith.maximumf %41, %42 : vector<256x32xf32>
    %cst_58 = arith.constant dense<0.000000e+00> : vector<32xf32>
    %44 = vector.multi_reduction <add>, %43, %cst_58 [0] : vector<256x32xf32> to vector<32xf32>
    %45 = vector.shape_cast %44 : vector<32xf32> to vector<1x32xf32>
    %cst_59 = arith.constant 2.560000e+02 : f32
    %46 = vector.broadcast %cst_59 : f32 to vector<1x32xf32>
    %47 = arith.divf %45, %46 : vector<1x32xf32>
    %48 = vector.shape_cast %43 : vector<256x32xf32> to vector<16x16x32xf32>
    %c1_60 = arith.constant 1 : index
    %c1_61 = arith.constant 1 : index
    %c0_62 = arith.constant 0 : index
    %49 = vector.load %arg9[%c1_60, %c1_61, %c0_62] : memref<18x18x32xf32, #tpu.memory_space<vmem>>, vector<16x16x32xf32>
    tpu.vector_store %arg9[%c1_60, %c1_61, %c0_62], %48 {strides = array<i32>} : memref<18x18x32xf32, #tpu.memory_space<vmem>>, vector<16x16x32xf32>,
    %c0_63 = arith.constant 0 : index
    %c0_64 = arith.constant 0 : index
    %50 = vector.load %arg4[%c0_63, %c0_64] : memref<32x2xf32, #tpu.memory_space<vmem>>, vector<32x2xf32>
    %cst_65 = arith.constant dense<0.000000e+00> : vector<1x2xf32>
    %51 = tpu.matmul %47, %50, %cst_65 {dimension_numbers = #tpu.dot_dimension_numbers<[1], [0], [0], [1], [0, 0, 1, 1], [], []>} : vector<1x32xf32>, vector<32x2xf32>, vector<1x2xf32> -> vector<1x2xf32>
    %cst_66 = arith.constant 0.000000e+00 : f32
    %52 = vector.broadcast %cst_66 : f32 to vector<1x2xf32>
    %53 = arith.maximumf %51, %52 : vector<1x2xf32>
    %c0_67 = arith.constant 0 : index
    %c0_68 = arith.constant 0 : index
    %54 = vector.load %arg5[%c0_67, %c0_68] : memref<2x32xf32, #tpu.memory_space<vmem>>, vector<2x32xf32>
    %cst_69 = arith.constant dense<0.000000e+00> : vector<1x32xf32>
    %55 = tpu.matmul %53, %54, %cst_69 {dimension_numbers = #tpu.dot_dimension_numbers<[1], [0], [0], [1], [0, 0, 1, 1], [], []>} : vector<1x2xf32>, vector<2x32xf32>, vector<1x32xf32> -> vector<1x32xf32>
    %56 = arith.negf %55 : vector<1x32xf32>
    %57 = math.exp %56 : vector<1x32xf32>
    %cst_70 = arith.constant 1.000000e+00 : f32
    %58 = vector.broadcast %cst_70 : f32 to vector<1x32xf32>
    %59 = arith.addf %58, %57 : vector<1x32xf32>
    %60 = arith.divf %58, %59 : vector<1x32xf32>
    %c1_71 = arith.constant 1 : index
    %c1_72 = arith.constant 1 : index
    %c0_73 = arith.constant 0 : index
    %61 = vector.load %arg9[%c1_71, %c1_72, %c0_73] : memref<18x18x32xf32, #tpu.memory_space<vmem>>, vector<16x16x32xf32>
    %62 = vector.shape_cast %60 : vector<1x32xf32> to vector<1x1x32xf32>
    %63 = vector.broadcast %62 : vector<1x1x32xf32> to vector<16x16x32xf32>
    %64 = arith.mulf %61, %63 : vector<16x16x32xf32>
    %c1_74 = arith.constant 1 : index
    %c1_75 = arith.constant 1 : index
    %c0_76 = arith.constant 0 : index
    %65 = vector.load %arg9[%c1_74, %c1_75, %c0_76] : memref<18x18x32xf32, #tpu.memory_space<vmem>>, vector<16x16x32xf32>
    tpu.vector_store %arg9[%c1_74, %c1_75, %c0_76], %64 {strides = array<i32>} : memref<18x18x32xf32, #tpu.memory_space<vmem>>, vector<16x16x32xf32>,
    %c0_77 = arith.constant 0 : index
    %c0_78 = arith.constant 0 : index
    %c0_79 = arith.constant 0 : index
    %66 = vector.load %arg9[%c0_77, %c0_78, %c0_79] : memref<18x18x32xf32, #tpu.memory_space<vmem>>, vector<16x16x32xf32>
    %67 = vector.shape_cast %66 : vector<16x16x32xf32> to vector<256x32xf32>
    %c0_80 = arith.constant 0 : index
    %c1_81 = arith.constant 1 : index
    %c0_82 = arith.constant 0 : index
    %68 = vector.load %arg9[%c0_80, %c1_81, %c0_82] : memref<18x18x32xf32, #tpu.memory_space<vmem>>, vector<16x16x32xf32>
    %69 = vector.shape_cast %68 : vector<16x16x32xf32> to vector<256x32xf32>
    %c0_83 = arith.constant 0 : index
    %c2_84 = arith.constant 2 : index
    %c0_85 = arith.constant 0 : index
    %70 = vector.load %arg9[%c0_83, %c2_84, %c0_85] : memref<18x18x32xf32, #tpu.memory_space<vmem>>, vector<16x16x32xf32>
    %71 = vector.shape_cast %70 : vector<16x16x32xf32> to vector<256x32xf32>
    %c1_86 = arith.constant 1 : index
    %c0_87 = arith.constant 0 : index
    %c0_88 = arith.constant 0 : index
    %72 = vector.load %arg9[%c1_86, %c0_87, %c0_88] : memref<18x18x32xf32, #tpu.memory_space<vmem>>, vector<16x16x32xf32>
    %73 = vector.shape_cast %72 : vector<16x16x32xf32> to vector<256x32xf32>
    %74 = tpu.concatenate %67, %69, %71, %73 in 1 : vector<256x32xf32>, vector<256x32xf32>, vector<256x32xf32>, vector<256x32xf32> -> vector<256x128xf32>
    %c0_89 = arith.constant 0 : index
    %c0_90 = arith.constant 0 : index
    %75 = vector.load %arg10[%c0_89, %c0_90] : memref<256x384xf32, #tpu.memory_space<vmem>>, vector<256x128xf32>
    tpu.vector_store %arg10[%c0_89, %c0_90], %74 {strides = array<i32>} : memref<256x384xf32, #tpu.memory_space<vmem>>, vector<256x128xf32>,
    %c1_91 = arith.constant 1 : index
    %c1_92 = arith.constant 1 : index
    %c0_93 = arith.constant 0 : index
    %76 = vector.load %arg9[%c1_91, %c1_92, %c0_93] : memref<18x18x32xf32, #tpu.memory_space<vmem>>, vector<16x16x32xf32>
    %77 = vector.shape_cast %76 : vector<16x16x32xf32> to vector<256x32xf32>
    %c1_94 = arith.constant 1 : index
    %c2_95 = arith.constant 2 : index
    %c0_96 = arith.constant 0 : index
    %78 = vector.load %arg9[%c1_94, %c2_95, %c0_96] : memref<18x18x32xf32, #tpu.memory_space<vmem>>, vector<16x16x32xf32>
    %79 = vector.shape_cast %78 : vector<16x16x32xf32> to vector<256x32xf32>
    %c2_97 = arith.constant 2 : index
    %c0_98 = arith.constant 0 : index
    %c0_99 = arith.constant 0 : index
    %80 = vector.load %arg9[%c2_97, %c0_98, %c0_99] : memref<18x18x32xf32, #tpu.memory_space<vmem>>, vector<16x16x32xf32>
    %81 = vector.shape_cast %80 : vector<16x16x32xf32> to vector<256x32xf32>
    %c2_100 = arith.constant 2 : index
    %c1_101 = arith.constant 1 : index
    %c0_102 = arith.constant 0 : index
    %82 = vector.load %arg9[%c2_100, %c1_101, %c0_102] : memref<18x18x32xf32, #tpu.memory_space<vmem>>, vector<16x16x32xf32>
    %83 = vector.shape_cast %82 : vector<16x16x32xf32> to vector<256x32xf32>
    %84 = tpu.concatenate %77, %79, %81, %83 in 1 : vector<256x32xf32>, vector<256x32xf32>, vector<256x32xf32>, vector<256x32xf32> -> vector<256x128xf32>
    %c0_103 = arith.constant 0 : index
    %c128_104 = arith.constant 128 : index
    %85 = vector.load %arg10[%c0_103, %c128_104] : memref<256x384xf32, #tpu.memory_space<vmem>>, vector<256x128xf32>
    tpu.vector_store %arg10[%c0_103, %c128_104], %84 {strides = array<i32>} : memref<256x384xf32, #tpu.memory_space<vmem>>, vector<256x128xf32>,
    %c2_105 = arith.constant 2 : index
    %c2_106 = arith.constant 2 : index
    %c0_107 = arith.constant 0 : index
    %86 = vector.load %arg9[%c2_105, %c2_106, %c0_107] : memref<18x18x32xf32, #tpu.memory_space<vmem>>, vector<16x16x32xf32>
    %87 = vector.shape_cast %86 : vector<16x16x32xf32> to vector<256x32xf32>
    %cst_108 = arith.constant 0.000000e+00 : f32
    %88 = vector.broadcast %cst_108 : f32 to vector<256x96xf32>
    %89 = tpu.concatenate %87, %88 in 1 : vector<256x32xf32>, vector<256x96xf32> -> vector<256x128xf32>
    %c0_109 = arith.constant 0 : index
    %c256_110 = arith.constant 256 : index
    %90 = vector.load %arg10[%c0_109, %c256_110] : memref<256x384xf32, #tpu.memory_space<vmem>>, vector<256x128xf32>
    tpu.vector_store %arg10[%c0_109, %c256_110], %89 {strides = array<i32>} : memref<256x384xf32, #tpu.memory_space<vmem>>, vector<256x128xf32>,
    %c0_111 = arith.constant 0 : index
    %c0_112 = arith.constant 0 : index
    %91 = vector.load %arg10[%c0_111, %c0_112] : memref<256x384xf32, #tpu.memory_space<vmem>>, vector<256x384xf32>
    %c0_113 = arith.constant 0 : index
    %c0_114 = arith.constant 0 : index
    %92 = vector.load %arg6[%c0_113, %c0_114] : memref<384x32xf32, #tpu.memory_space<vmem>>, vector<384x32xf32>
    %cst_115 = arith.constant dense<0.000000e+00> : vector<256x32xf32>
    %93 = tpu.matmul %91, %92, %cst_115 {dimension_numbers = #tpu.dot_dimension_numbers<[1], [0], [0], [1], [0, 0, 1, 1], [], []>} : vector<256x384xf32>, vector<384x32xf32>, vector<256x32xf32> -> vector<256x32xf32>
    %c0_116 = arith.constant 0 : index
    %c0_117 = arith.constant 0 : index
    %94 = vector.load %arg7[%c0_116, %c0_117] : memref<1x32xf32, #tpu.memory_space<vmem>>, vector<1x32xf32>
    %95 = vector.broadcast %94 : vector<1x32xf32> to vector<256x32xf32>
    %96 = arith.addf %93, %95 : vector<256x32xf32>
    %97 = vector.shape_cast %96 : vector<256x32xf32> to vector<16x16x32xf32>
    %c0_118 = arith.constant 0 : index
    %c0_119 = arith.constant 0 : index
    %c0_120 = arith.constant 0 : index
    %c0_121 = arith.constant 0 : index
    %98 = vector.load %arg1[%c0_118, %c0_119, %c0_120, %c0_121] : memref<1x16x16x32xf32, #tpu.memory_space<vmem>>, vector<1x16x16x32xf32>
    %99 = vector.shape_cast %98 : vector<1x16x16x32xf32> to vector<16x16x32xf32>
    %100 = arith.addf %97, %99 : vector<16x16x32xf32>
    %c0_122 = arith.constant 0 : index
    %c0_123 = arith.constant 0 : index
    %c0_124 = arith.constant 0 : index
    %c0_125 = arith.constant 0 : index
    %101 = vector.load %arg8[%c0_122, %c0_123, %c0_124, %c0_125] : memref<1x16x16x32xf32, #tpu.memory_space<vmem>>, vector<1x16x16x32xf32>
    %102 = vector.shape_cast %101 : vector<1x16x16x32xf32> to vector<16x16x32xf32>
    %103 = vector.shape_cast %100 : vector<16x16x32xf32> to vector<1x16x16x32xf32>
    tpu.vector_store %arg8[%c0_122, %c0_123, %c0_124, %c0_125], %103 {strides = array<i32>} : memref<1x16x16x32xf32, #tpu.memory_space<vmem>>, vector<1x16x16x32xf32>,
    return
  }
  func.func @transform_0(%arg0: i32) -> (i32, i32, i32, i32) {
    %c0_i32 = arith.constant 0 : i32
    %c0_i32_0 = arith.constant 0 : i32
    %c0_i32_1 = arith.constant 0 : i32
    %c0_i32_2 = arith.constant 0 : i32
    return %arg0, %c0_i32, %c0_i32_0, %c0_i32_1 : i32, i32, i32, i32
  }
  func.func @transform_1(%arg0: i32) -> (i32, i32) {
    %c0_i32 = arith.constant 0 : i32
    %c0_i32_0 = arith.constant 0 : i32
    %c0_i32_1 = arith.constant 0 : i32
    return %c0_i32, %c0_i32_0 : i32, i32
  }
  func.func @transform_2(%arg0: i32) -> (i32, i32) {
    %c0_i32 = arith.constant 0 : i32
    %c0_i32_0 = arith.constant 0 : i32
    %c0_i32_1 = arith.constant 0 : i32
    return %c0_i32, %c0_i32_0 : i32, i32
  }
  func.func @transform_3(%arg0: i32) -> (i32, i32) {
    %c0_i32 = arith.constant 0 : i32
    %c0_i32_0 = arith.constant 0 : i32
    %c0_i32_1 = arith.constant 0 : i32
    return %c0_i32, %c0_i32_0 : i32, i32
  }
  func.func @transform_4(%arg0: i32) -> (i32, i32) {
    %c0_i32 = arith.constant 0 : i32
    %c0_i32_0 = arith.constant 0 : i32
    %c0_i32_1 = arith.constant 0 : i32
    return %c0_i32, %c0_i32_0 : i32, i32
  }
  func.func @transform_5(%arg0: i32) -> (i32, i32) {
    %c0_i32 = arith.constant 0 : i32
    %c0_i32_0 = arith.constant 0 : i32
    %c0_i32_1 = arith.constant 0 : i32
    return %c0_i32, %c0_i32_0 : i32, i32
  }
  func.func @transform_6(%arg0: i32) -> (i32, i32) {
    %c0_i32 = arith.constant 0 : i32
    %c0_i32_0 = arith.constant 0 : i32
    %c0_i32_1 = arith.constant 0 : i32
    return %c0_i32, %c0_i32_0 : i32, i32
  }
  func.func @transform_7(%arg0: i32) -> (i32, i32, i32, i32) {
    %c0_i32 = arith.constant 0 : i32
    %c0_i32_0 = arith.constant 0 : i32
    %c0_i32_1 = arith.constant 0 : i32
    %c0_i32_2 = arith.constant 0 : i32
    return %arg0, %c0_i32, %c0_i32_0, %c0_i32_1 : i32, i32, i32, i32
  }
}

</mosaic_0001>

<llo_original>
// kernel: tpu_custom_call.1
$region0: #{tpu_custom_call.1}
  #allocation0 [shape = 'u32[]', space=smem, size = 0x4, offset = 0x4, fixed_abs, tag = 'smem constant byte address 0x4 - core index']
  #allocation1 [shape = 'u32[144,128]{1,0:T(1,128)}', space=vmem, size = 0x12000, scoped, tag = 'internal scratch']
  #allocation2 [shape = 'f32[18,18,32]{2,1,0:T(8,128)}', space=vmem, size = 0x36000, scoped, tag = 'scratch operand']
  #allocation3 [shape = 'f32[256,384]{1,0:T(8,128)}', space=vmem, size = 0x60000, scoped, tag = 'scratch operand']
  %s0 = inlined_call_operand.vmem [shape: f32[2,16,16,32], index: 0, kind: input, shape index: {}]
  %s1 = inlined_call_operand.vmem [shape: f32[384,32], index: 1, kind: input, shape index: {}]
  %s2 = inlined_call_operand.vmem [shape: f32[1,32], index: 2, kind: input, shape index: {}]
  %s3 = inlined_call_operand.vmem [shape: f32[32,2], index: 3, kind: input, shape index: {}]
  %s4 = inlined_call_operand.vmem [shape: f32[2,32], index: 4, kind: input, shape index: {}]
  %s5 = inlined_call_operand.vmem [shape: f32[384,32], index: 5, kind: input, shape index: {}]
  %s6 = inlined_call_operand.vmem [shape: f32[1,32], index: 6, kind: input, shape index: {}]
  %s7 = inlined_call_operand.hbm [shape: f32[2,16,16,32], index: 7, kind: output, shape index: {}]
  %s8 = sld [smem:[#allocation0]]
  $region61: #{tpu_custom_call.1} parent=0
    _
  %s10 = ssub.s32 1, %s8
  %s11 = scalar_select 0, %s10, %s8
  $region1: #{tpu_custom_call.1} parent=0
    #allocation4 [shape = 'u8[262144]{0}', space=vmem, size = 0x40000, scoped, tag = 'output window, operand 0']
    #allocation5 [shape = 's32[2]{0}', space=sflag, size = 0x8, scoped, tag = 'scoped memory for tpu_custom_call.1']
    %12 = vsyncpa [#allocation5], 0
    %s13 = scalar_lea.sflag [#allocation5], 1
    %14 = vsyncpa %s13, 0
    loop: start=0, step=1, limit=4
    $region2: #{tpu_custom_call.1} parent=1 // loop_pre_header
      _
    $region3: #{tpu_custom_call.1} parent=1 // loop_header
      %s16 = sphi 0, %s20
      %p17 = scmp.ge.s32.totalorder %s16, 4
      %s26 = sphi 0, %s28
      %s29 = sphi 0, %s26
      %s30 = sphi 0, %s29
      %s46 = sphi 0, %s30
      %s50 = sphi 0, %s50
      %s52 = sphi 0, %s50
      %s53 = sphi 0, %s52
      %s67 = sphi 0, %s53
      %s71 = sphi 0, %s71
      %s73 = sphi 0, %s71
      %s74 = sphi 0, %s73
      %s88 = sphi 0, %s74
      %s92 = sphi 0, %s92
      %s94 = sphi 0, %s92
      %s95 = sphi 0, %s94
      %s109 = sphi 0, %s95
      %s113 = sphi 0, %s113
      %s115 = sphi 0, %s113
      %s116 = sphi 0, %s115
      %s130 = sphi 0, %s116
      %s134 = sphi 0, %s134
      %s136 = sphi 0, %s134
      %s137 = sphi 0, %s136
      %s151 = sphi 0, %s137
      %s155 = sphi 0, %s155
      %s157 = sphi 0, %s155
      %s158 = sphi 0, %s157
      %s172 = sphi 0, %s158
      %s178 = sphi 0, %s180
      %s181 = sphi 0, %s178
      %s182 = sphi 0, %s181
      %s198 = sphi 0, %s182
    $region4: #{tpu_custom_call.1} parent=1 // loop_header_branch
      %19 = sbr.rel (%p17) target = $region8
    $region5: #{tpu_custom_call.1} parent=1 // loop_body
      %s21 = ssub.s32 %s16, 1
      %s22 = ssub.s32 %s16, 2
      %s23 = sadd.s32 %s16, 1
      %s24 = ssub.s32 %s16, %s23
      %p25 = scmp.eq.s32.totalorder %s24, 0
      %s27 = sadd.s32 %s26, 1
      %s28 = scalar_select %p25, %s26, %s27
      %p31 = pneg %p25
      %p32 = scmp.eq.s32.totalorder %s16, 1
      %p33 = por %p31, %p32
      %p34 = scmp.ne.s32.totalorder %s26, %s29
      %p35 = scmp.eq.s32.totalorder %s16, 0
      %p36 = por %p34, %p35
      %p37 = scmp.ne.s32.totalorder %s26, %s29
      %p38 = scmp.eq.s32.totalorder %s21, 1
      %p39 = por %p37, %p38
      %p40 = scmp.ne.s32.totalorder %s29, %s30
      %p41 = scmp.eq.s32.totalorder %s21, 0
      %p42 = por %p40, %p41
      %p43 = scmp.ne.s32.totalorder %s29, %s30
      %p44 = scmp.eq.s32.totalorder %s22, 1
      %p45 = por %p43, %p44
      %p47 = scmp.ne.s32.totalorder %s30, %s46
      %p48 = scmp.eq.s32.totalorder %s22, 0
      %p49 = por %p47, %p48
      %s51 = sadd.s32 %s50, 1
      %p54 = scmp.eq.s32.totalorder %s16, 1
      %p55 = scmp.ne.s32.totalorder %s50, %s52
      %p56 = scmp.eq.s32.totalorder %s16, 0
      %p57 = por %p55, %p56
      %p58 = scmp.ne.s32.totalorder %s50, %s52
      %p59 = scmp.eq.s32.totalorder %s21, 1
      %p60 = por %p58, %p59
      %p61 = scmp.ne.s32.totalorder %s52, %s53
      %p62 = scmp.eq.s32.totalorder %s21, 0
      %p63 = por %p61, %p62
      %p64 = scmp.ne.s32.totalorder %s52, %s53
      %p65 = scmp.eq.s32.totalorder %s22, 1
      %p66 = por %p64, %p65
      %p68 = scmp.ne.s32.totalorder %s53, %s67
      %p69 = scmp.eq.s32.totalorder %s22, 0
      %p70 = por %p68, %p69
      %s72 = sadd.s32 %s71, 1
      %p75 = scmp.eq.s32.totalorder %s16, 1
      %p76 = scmp.ne.s32.totalorder %s71, %s73
      %p77 = scmp.eq.s32.totalorder %s16, 0
      %p78 = por %p76, %p77
      %p79 = scmp.ne.s32.totalorder %s71, %s73
      %p80 = scmp.eq.s32.totalorder %s21, 1
      %p81 = por %p79, %p80
      %p82 = scmp.ne.s32.totalorder %s73, %s74
      %p83 = scmp.eq.s32.totalorder %s21, 0
      %p84 = por %p82, %p83
      %p85 = scmp.ne.s32.totalorder %s73, %s74
      %p86 = scmp.eq.s32.totalorder %s22, 1
      %p87 = por %p85, %p86
      %p89 = scmp.ne.s32.totalorder %s74, %s88
      %p90 = scmp.eq.s32.totalorder %s22, 0
      %p91 = por %p89, %p90
      %s93 = sadd.s32 %s92, 1
      %p96 = scmp.eq.s32.totalorder %s16, 1
      %p97 = scmp.ne.s32.totalorder %s92, %s94
      %p98 = scmp.eq.s32.totalorder %s16, 0
      %p99 = por %p97, %p98
      %p100 = scmp.ne.s32.totalorder %s92, %s94
      %p101 = scmp.eq.s32.totalorder %s21, 1
      %p102 = por %p100, %p101
      %p103 = scmp.ne.s32.totalorder %s94, %s95
      %p104 = scmp.eq.s32.totalorder %s21, 0
      %p105 = por %p103, %p104
      %p106 = scmp.ne.s32.totalorder %s94, %s95
      %p107 = scmp.eq.s32.totalorder %s22, 1
      %p108 = por %p106, %p107
      %p110 = scmp.ne.s32.totalorder %s95, %s109
      %p111 = scmp.eq.s32.totalorder %s22, 0
      %p112 = por %p110, %p111
      %s114 = sadd.s32 %s113, 1
      %p117 = scmp.eq.s32.totalorder %s16, 1
      %p118 = scmp.ne.s32.totalorder %s113, %s115
      %p119 = scmp.eq.s32.totalorder %s16, 0
      %p120 = por %p118, %p119
      %p121 = scmp.ne.s32.totalorder %s113, %s115
      %p122 = scmp.eq.s32.totalorder %s21, 1
      %p123 = por %p121, %p122
      %p124 = scmp.ne.s32.totalorder %s115, %s116
      %p125 = scmp.eq.s32.totalorder %s21, 0
      %p126 = por %p124, %p125
      %p127 = scmp.ne.s32.totalorder %s115, %s116
      %p128 = scmp.eq.s32.totalorder %s22, 1
      %p129 = por %p127, %p128
      %p131 = scmp.ne.s32.totalorder %s116, %s130
      %p132 = scmp.eq.s32.totalorder %s22, 0
      %p133 = por %p131, %p132
      %s135 = sadd.s32 %s134, 1
      %p138 = scmp.eq.s32.totalorder %s16, 1
      %p139 = scmp.ne.s32.totalorder %s134, %s136
      %p140 = scmp.eq.s32.totalorder %s16, 0
      %p141 = por %p139, %p140
      %p142 = scmp.ne.s32.totalorder %s134, %s136
      %p143 = scmp.eq.s32.totalorder %s21, 1
      %p144 = por %p142, %p143
      %p145 = scmp.ne.s32.totalorder %s136, %s137
      %p146 = scmp.eq.s32.totalorder %s21, 0
      %p147 = por %p145, %p146
      %p148 = scmp.ne.s32.totalorder %s136, %s137
      %p149 = scmp.eq.s32.totalorder %s22, 1
      %p150 = por %p148, %p149
      %p152 = scmp.ne.s32.totalorder %s137, %s151
      %p153 = scmp.eq.s32.totalorder %s22, 0
      %p154 = por %p152, %p153
      %s156 = sadd.s32 %s155, 1
      %p159 = scmp.eq.s32.totalorder %s16, 1
      %p160 = scmp.ne.s32.totalorder %s155, %s157
      %p161 = scmp.eq.s32.totalorder %s16, 0
      %p162 = por %p160, %p161
      %p163 = scmp.ne.s32.totalorder %s155, %s157
      %p164 = scmp.eq.s32.totalorder %s21, 1
      %p165 = por %p163, %p164
      %p166 = scmp.ne.s32.totalorder %s157, %s158
      %p167 = scmp.eq.s32.totalorder %s21, 0
      %p168 = por %p166, %p167
      %p169 = scmp.ne.s32.totalorder %s157, %s158
      %p170 = scmp.eq.s32.totalorder %s22, 1
      %p171 = por %p169, %p170
      %p173 = scmp.ne.s32.totalorder %s158, %s172
      %p174 = scmp.eq.s32.totalorder %s22, 0
      %p175 = por %p173, %p174
      %s176 = ssub.s32 %s16, %s23
      %p177 = scmp.eq.s32.totalorder %s176, 0
      %s179 = sadd.s32 %s178, 1
      %s180 = scalar_select %p177, %s178, %s179
      %p183 = pneg %p177
      %p184 = scmp.eq.s32.totalorder %s16, 1
      %p185 = por %p183, %p184
      %p186 = scmp.ne.s32.totalorder %s178, %s181
      %p187 = scmp.eq.s32.totalorder %s16, 0
      %p188 = por %p186, %p187
      %p189 = scmp.ne.s32.totalorder %s178, %s181
      %p190 = scmp.eq.s32.totalorder %s21, 1
      %p191 = por %p189, %p190
      %p192 = scmp.ne.s32.totalorder %s181, %s182
      %p193 = scmp.eq.s32.totalorder %s21, 0
      %p194 = por %p192, %p193
      %p195 = scmp.ne.s32.totalorder %s181, %s182
      %p196 = scmp.eq.s32.totalorder %s22, 1
      %p197 = por %p195, %p196
      %p199 = scmp.ne.s32.totalorder %s182, %s198
      %p200 = scmp.eq.s32.totalorder %s22, 0
      %p201 = por %p199, %p200
      %p202 = scmp.le.s32.totalorder 1, %s16
      %p203 = scmp.lt.s32.totalorder %s16, 3
      %p204 = pnand %p202, %p203
      %p205 = pneg %p204
      // Predicated region
      $region9: #{tpu_custom_call.1} parent=5 // pred_check
        _
      $region10: #{tpu_custom_call.1} parent=5 // pred_check_branch
        %207 = sbr.rel (%p204) target = $region12
      $region11: #{tpu_custom_call.1} parent=5 // pred_region
        %s208 = ssub.s32 %s16, 1
        // Predicated region
        $region13: #{tpu_custom_call.1} parent=11 // pred_check
          %p209 = pneg %p63
        $region14: #{tpu_custom_call.1} parent=11 // pred_check_branch
          %211 = sbr.rel (%p209) target = $region16
        $region15: #{tpu_custom_call.1} parent=11 // pred_region
          _
        $region16: #{tpu_custom_call.1} parent=11 // pred_fallthru
          _
        // Predicated region
        $region17: #{tpu_custom_call.1} parent=11 // pred_check
          %p212 = pneg %p84
        $region18: #{tpu_custom_call.1} parent=11 // pred_check_branch
          %214 = sbr.rel (%p212) target = $region20
        $region19: #{tpu_custom_call.1} parent=11 // pred_region
          _
        $region20: #{tpu_custom_call.1} parent=11 // pred_fallthru
          _
        // Predicated region
        $region21: #{tpu_custom_call.1} parent=11 // pred_check
          %p215 = pneg %p105
        $region22: #{tpu_custom_call.1} parent=11 // pred_check_branch
          %217 = sbr.rel (%p215) target = $region24
        $region23: #{tpu_custom_call.1} parent=11 // pred_region
          _
        $region24: #{tpu_custom_call.1} parent=11 // pred_fallthru
          _
        // Predicated region
        $region25: #{tpu_custom_call.1} parent=11 // pred_check
          %p218 = pneg %p126
        $region26: #{tpu_custom_call.1} parent=11 // pred_check_branch
          %220 = sbr.rel (%p218) target = $region28
        $region27: #{tpu_custom_call.1} parent=11 // pred_region
          _
        $region28: #{tpu_custom_call.1} parent=11 // pred_fallthru
          _
        // Predicated region
        $region29: #{tpu_custom_call.1} parent=11 // pred_check
          %p221 = pneg %p147
        $region30: #{tpu_custom_call.1} parent=11 // pred_check_branch
          %223 = sbr.rel (%p221) target = $region32
        $region31: #{tpu_custom_call.1} parent=11 // pred_region
          _
        $region32: #{tpu_custom_call.1} parent=11 // pred_fallthru
          _
        // Predicated region
        $region33: #{tpu_custom_call.1} parent=11 // pred_check
          %p224 = pneg %p168
        $region34: #{tpu_custom_call.1} parent=11 // pred_check_branch
          %226 = sbr.rel (%p224) target = $region36
        $region35: #{tpu_custom_call.1} parent=11 // pred_region
          _
        $region36: #{tpu_custom_call.1} parent=11 // pred_fallthru
          _
      $region12: #{tpu_custom_call.1} parent=5 // pred_fallthru
        _
      %p227 = scmp.lt.s32.totalorder %s16, 2
      // Predicated region
      $region37: #{tpu_custom_call.1} parent=5 // pred_check
        %p228 = pneg %p227
      $region38: #{tpu_custom_call.1} parent=5 // pred_check_branch
        %230 = sbr.rel (%p228) target = $region40
      $region39: #{tpu_custom_call.1} parent=5 // pred_region
        // Predicated region
        $region41: #{tpu_custom_call.1} parent=39 // pred_check
          %p231 = pneg %p36
        $region42: #{tpu_custom_call.1} parent=39 // pred_check_branch
          %233 = sbr.rel (%p231) target = $region44
        $region43: #{tpu_custom_call.1} parent=39 // pred_region
          %p234 = scmp.lt.s32.totalorder %s16, 1
          %s235 = scalar_select %p234, %s16, 1
          %s236 = smul.addr %s235, 32
          %s237 = smul.addr %s236, 8
          %s238 = scalar_lea.vmem %s0, %s237
        $region44: #{tpu_custom_call.1} parent=39 // pred_fallthru
          _
      $region40: #{tpu_custom_call.1} parent=5 // pred_fallthru
        _
      %p239 = scmp.le.s32.totalorder 1, %s16
      %p240 = scmp.lt.s32.totalorder %s16, 3
      %p241 = pnand %p239, %p240
      %p242 = pneg %p241
      // Predicated region
      $region45: #{tpu_custom_call.1} parent=5 // pred_check
        _
      $region46: #{tpu_custom_call.1} parent=5 // pred_check_branch
        %244 = sbr.rel (%p241) target = $region48
      $region47: #{tpu_custom_call.1} parent=5 // pred_region
        %s245 = ssub.s32 %s16, 1
        %p246 = scmp.lt.s32.totalorder %s21, 1
        %s247 = scalar_select %p246, %s21, 1
        %s248 = smul.addr %s247, 32
        %s249 = smul.addr %s248, 8
        %s250 = scalar_lea.vmem %s0, %s249
        %p251 = pneg %p42
        %p252 = pneg %p39
        %p253 = pneg %p63
        %p254 = pneg %p60
        %p255 = pneg %p84
        %p256 = pneg %p81
        %p257 = pneg %p105
        %p258 = pneg %p102
        %p259 = pneg %p126
        %p260 = pneg %p123
        %p261 = pneg %p147
        %p262 = pneg %p144
        %p263 = pneg %p168
        %p264 = pneg %p165
        %p265 = pneg %p194
        %p266 = pneg %p191
        %s267 = sand.u32 %s181, 1
        %s268 = scalar_lea.sflag [#allocation5], %s267
        %s269 = sand.u32 %s181, 1
        %s270 = smul.addr %s269, 256
        %s271 = scalar_lea.vmem [#allocation4], %s270
        %p272 = scmp.lt.s32.totalorder %s21, 1
        %s273 = scalar_select %p272, %s21, 1
        %s274 = smul.addr %s273, 32
        %s275 = smul.addr %s274, 8
        %s276 = scalar_lea.vmem %s0, %s275
        %vm277 = vcmask 261120
        %278 = vst.msk [vmem:[#allocation2] sm:$0xff] %vm277, 0.0
        %279 = vst.msk [vmem:[#allocation2 + $0x8] sm:$0xff] %vm277, 0.0
        %vm280 = vcmask 254976
        %281 = vst.msk [vmem:[#allocation2 + $0x10] sm:$0x3] %vm280, 0.0
        %s282 = scalar_lea.vmem [#allocation2], 408
        %283 = vst.msk [vmem:[%s282] sm:$0xff] %vm277, 0.0
        %284 = vst.msk [vmem:[%s282 + $0x8] sm:$0xff] %vm277, 0.0
        %285 = vst.msk [vmem:[%s282 + $0x10] sm:$0x3] %vm280, 0.0
        %s286 = scalar_lea.vmem [#allocation2], 24
        %vm287 = vcmask 253952
        %288 = vst.msk [vmem:[%s286] sm:$0x1] %vm287, 0.0
        %289 = vst.msk [vmem:[%s286 + $0x18] sm:$0x1] %vm287, 0.0
        %290 = vst.msk [vmem:[%s286 + $0x30] sm:$0x1] %vm287, 0.0
        %291 = vst.msk [vmem:[%s286 + $0x48] sm:$0x1] %vm287, 0.0
        %292 = vst.msk [vmem:[%s286 + $0x60] sm:$0x1] %vm287, 0.0
        %293 = vst.msk [vmem:[%s286 + $0x78] sm:$0x1] %vm287, 0.0
        %294 = vst.msk [vmem:[%s286 + $0x90] sm:$0x1] %vm287, 0.0
        %295 = vst.msk [vmem:[%s286 + $0xa8] sm:$0x1] %vm287, 0.0
        %296 = vst.msk [vmem:[%s286 + $0xc0] sm:$0x1] %vm287, 0.0
        %297 = vst.msk [vmem:[%s286 + $0xd8] sm:$0x1] %vm287, 0.0
        %298 = vst.msk [vmem:[%s286 + $0xf0] sm:$0x1] %vm287, 0.0
        %299 = vst.msk [vmem:[%s286 + $0x108] sm:$0x1] %vm287, 0.0
        %300 = vst.msk [vmem:[%s286 + $0x120] sm:$0x1] %vm287, 0.0
        %301 = vst.msk [vmem:[%s286 + $0x138] sm:$0x1] %vm287, 0.0
        %302 = vst.msk [vmem:[%s286 + $0x150] sm:$0x1] %vm287, 0.0
        %303 = vst.msk [vmem:[%s286 + $0x168] sm:$0x1] %vm287, 0.0
        %304 = vst.msk [vmem:[%s286 + $0x11] sm:$0x1] %vm287, 0.0
        %305 = vst.msk [vmem:[%s286 + $0x29] sm:$0x1] %vm287, 0.0
        %306 = vst.msk [vmem:[%s286 + $0x41] sm:$0x1] %vm287, 0.0
        %307 = vst.msk [vmem:[%s286 + $0x59] sm:$0x1] %vm287, 0.0
        %308 = vst.msk [vmem:[%s286 + $0x71] sm:$0x1] %vm287, 0.0
        %309 = vst.msk [vmem:[%s286 + $0x89] sm:$0x1] %vm287, 0.0
        %310 = vst.msk [vmem:[%s286 + $0xa1] sm:$0x1] %vm287, 0.0
        %311 = vst.msk [vmem:[%s286 + $0xb9] sm:$0x1] %vm287, 0.0
        %312 = vst.msk [vmem:[%s286 + $0xd1] sm:$0x1] %vm287, 0.0
        %313 = vst.msk [vmem:[%s286 + $0xe9] sm:$0x1] %vm287, 0.0
        %314 = vst.msk [vmem:[%s286 + $0x101] sm:$0x1] %vm287, 0.0
        %315 = vst.msk [vmem:[%s286 + $0x119] sm:$0x1] %vm287, 0.0
        %316 = vst.msk [vmem:[%s286 + $0x131] sm:$0x1] %vm287, 0.0
        %317 = vst.msk [vmem:[%s286 + $0x149] sm:$0x1] %vm287, 0.0
        %318 = vst.msk [vmem:[%s286 + $0x161] sm:$0x1] %vm287, 0.0
        %319 = vst.msk [vmem:[%s286 + $0x179] sm:$0x1] %vm287, 0.0
        %v320 = vld [vmem:[%s276] sm:$0xff]
        %v321 = vld [vmem:[%s276 + $0x8] sm:$0xff]
        %v322 = vld [vmem:[%s276 + $0x10] sm:$0xff]
        %v323 = vld [vmem:[%s276 + $0x18] sm:$0xff]
        %v324 = vld [vmem:[%s276 + $0x20] sm:$0xff]
        %v325 = vld [vmem:[%s276 + $0x28] sm:$0xff]
        %v326 = vld [vmem:[%s276 + $0x30] sm:$0xff]
        %v327 = vld [vmem:[%s276 + $0x38] sm:$0xff]
        %v328 = vld [vmem:[%s276 + $0x40] sm:$0xff]
        %v329 = vld [vmem:[%s276 + $0x48] sm:$0xff]
        %v330 = vld [vmem:[%s276 + $0x50] sm:$0xff]
        %v331 = vld [vmem:[%s276 + $0x58] sm:$0xff]
        %v332 = vld [vmem:[%s276 + $0x60] sm:$0xff]
        %v333 = vld [vmem:[%s276 + $0x68] sm:$0xff]
        %v334 = vld [vmem:[%s276 + $0x70] sm:$0xff]
        %v335 = vld [vmem:[%s276 + $0x78] sm:$0xff]
        %v336 = vld [vmem:[%s276 + $0x80] sm:$0xff]
        %v337 = vld [vmem:[%s276 + $0x88] sm:$0xff]
        %v338 = vld [vmem:[%s276 + $0x90] sm:$0xff]
        %v339 = vld [vmem:[%s276 + $0x98] sm:$0xff]
        %v340 = vld [vmem:[%s276 + $0xa0] sm:$0xff]
        %v341 = vld [vmem:[%s276 + $0xa8] sm:$0xff]
        %v342 = vld [vmem:[%s276 + $0xb0] sm:$0xff]
        %v343 = vld [vmem:[%s276 + $0xb8] sm:$0xff]
        %v344 = vld [vmem:[%s276 + $0xc0] sm:$0xff]
        %v345 = vld [vmem:[%s276 + $0xc8] sm:$0xff]
        %v346 = vld [vmem:[%s276 + $0xd0] sm:$0xff]
        %v347 = vld [vmem:[%s276 + $0xd8] sm:$0xff]
        %v348 = vld [vmem:[%s276 + $0xe0] sm:$0xff]
        %v349 = vld [vmem:[%s276 + $0xe8] sm:$0xff]
        %v350 = vld [vmem:[%s276 + $0xf0] sm:$0xff]
        %v351 = vld [vmem:[%s276 + $0xf8] sm:$0xff]
        %352 = vst.msk [vmem:[%s286 + $0x1] sm:$0xff] %vm277, %v320
        %353 = vst.msk [vmem:[%s286 + $0x9] sm:$0xff] %vm277, %v321
        %354 = vst.msk [vmem:[%s286 + $0x19] sm:$0xff] %vm277, %v322
        %355 = vst.msk [vmem:[%s286 + $0x21] sm:$0xff] %vm277, %v323
        %356 = vst.msk [vmem:[%s286 + $0x31] sm:$0xff] %vm277, %v324
        %357 = vst.msk [vmem:[%s286 + $0x39] sm:$0xff] %vm277, %v325
        %358 = vst.msk [vmem:[%s286 + $0x49] sm:$0xff] %vm277, %v326
        %359 = vst.msk [vmem:[%s286 + $0x51] sm:$0xff] %vm277, %v327
        %360 = vst.msk [vmem:[%s286 + $0x61] sm:$0xff] %vm277, %v328
        %361 = vst.msk [vmem:[%s286 + $0x69] sm:$0xff] %vm277, %v329
        %362 = vst.msk [vmem:[%s286 + $0x79] sm:$0xff] %vm277, %v330
        %363 = vst.msk [vmem:[%s286 + $0x81] sm:$0xff] %vm277, %v331
        %364 = vst.msk [vmem:[%s286 + $0x91] sm:$0xff] %vm277, %v332
        %365 = vst.msk [vmem:[%s286 + $0x99] sm:$0xff] %vm277, %v333
        %366 = vst.msk [vmem:[%s286 + $0xa9] sm:$0xff] %vm277, %v334
        %367 = vst.msk [vmem:[%s286 + $0xb1] sm:$0xff] %vm277, %v335
        %368 = vst.msk [vmem:[%s286 + $0xc1] sm:$0xff] %vm277, %v336
        %369 = vst.msk [vmem:[%s286 + $0xc9] sm:$0xff] %vm277, %v337
        %370 = vst.msk [vmem:[%s286 + $0xd9] sm:$0xff] %vm277, %v338
        %371 = vst.msk [vmem:[%s286 + $0xe1] sm:$0xff] %vm277, %v339
        %372 = vst.msk [vmem:[%s286 + $0xf1] sm:$0xff] %vm277, %v340
        %373 = vst.msk [vmem:[%s286 + $0xf9] sm:$0xff] %vm277, %v341
        %374 = vst.msk [vmem:[%s286 + $0x109] sm:$0xff] %vm277, %v342
        %375 = vst.msk [vmem:[%s286 + $0x111] sm:$0xff] %vm277, %v343
        %376 = vst.msk [vmem:[%s286 + $0x121] sm:$0xff] %vm277, %v344
        %377 = vst.msk [vmem:[%s286 + $0x129] sm:$0xff] %vm277, %v345
        %378 = vst.msk [vmem:[%s286 + $0x139] sm:$0xff] %vm277, %v346
        %379 = vst.msk [vmem:[%s286 + $0x141] sm:$0xff] %vm277, %v347
        %380 = vst.msk [vmem:[%s286 + $0x151] sm:$0xff] %vm277, %v348
        %381 = vst.msk [vmem:[%s286 + $0x159] sm:$0xff] %vm277, %v349
        %382 = vst.msk [vmem:[%s286 + $0x169] sm:$0xff] %vm277, %v350
        %383 = vst.msk [vmem:[%s286 + $0x171] sm:$0xff] %vm277, %v351
        %v384 = vld [vmem:[#allocation2] sm:$0xff]
        %v385 = vld [vmem:[#allocation2 + $0x8] sm:$0xff]
        %v386 = vld [vmem:[#allocation2 + $0x18] sm:$0xff]
        %v387 = vld [vmem:[#allocation2 + $0x20] sm:$0xff]
        %v388 = vld [vmem:[#allocation2 + $0x30] sm:$0xff]
        %v389 = vld [vmem:[#allocation2 + $0x38] sm:$0xff]
        %v390 = vld [vmem:[#allocation2 + $0x48] sm:$0xff]
        %v391 = vld [vmem:[#allocation2 + $0x50] sm:$0xff]
        %v392 = vld [vmem:[#allocation2 + $0x60] sm:$0xff]
        %v393 = vld [vmem:[#allocation2 + $0x68] sm:$0xff]
        %v394 = vld [vmem:[#allocation2 + $0x78] sm:$0xff]
        %v395 = vld [vmem:[#allocation2 + $0x80] sm:$0xff]
        %v396 = vld [vmem:[#allocation2 + $0x90] sm:$0xff]
        %v397 = vld [vmem:[#allocation2 + $0x98] sm:$0xff]
        %v398 = vld [vmem:[#allocation2 + $0xa8] sm:$0xff]
        %v399 = vld [vmem:[#allocation2 + $0xb0] sm:$0xff]
        %v400 = vld [vmem:[#allocation2 + $0xc0] sm:$0xff]
        %v401 = vld [vmem:[#allocation2 + $0xc8] sm:$0xff]
        %v402 = vld [vmem:[#allocation2 + $0xd8] sm:$0xff]
        %v403 = vld [vmem:[#allocation2 + $0xe0] sm:$0xff]
        %v404 = vld [vmem:[#allocation2 + $0xf0] sm:$0xff]
        %v405 = vld [vmem:[#allocation2 + $0xf8] sm:$0xff]
        %v406 = vld [vmem:[#allocation2 + $0x108] sm:$0xff]
        %v407 = vld [vmem:[#allocation2 + $0x110] sm:$0xff]
        %v408 = vld [vmem:[#allocation2 + $0x120] sm:$0xff]
        %v409 = vld [vmem:[#allocation2 + $0x128] sm:$0xff]
        %v410 = vld [vmem:[#allocation2 + $0x138] sm:$0xff]
        %v411 = vld [vmem:[#allocation2 + $0x140] sm:$0xff]
        %v412 = vld [vmem:[#allocation2 + $0x150] sm:$0xff]
        %v413 = vld [vmem:[#allocation2 + $0x158] sm:$0xff]
        %v414 = vld [vmem:[#allocation2 + $0x168] sm:$0xff]
        %v415 = vld [vmem:[#allocation2 + $0x170] sm:$0xff]
        %v416 = vld [vmem:[#allocation2 + $0x1] sm:$0xff]
        %v417 = vld [vmem:[#allocation2 + $0x9] sm:$0xff]
        %v418 = vld [vmem:[#allocation2 + $0x19] sm:$0xff]
        %v419 = vld [vmem:[#allocation2 + $0x21] sm:$0xff]
        %v420 = vld [vmem:[#allocation2 + $0x31] sm:$0xff]
        %v421 = vld [vmem:[#allocation2 + $0x39] sm:$0xff]
        %v422 = vld [vmem:[#allocation2 + $0x49] sm:$0xff]
        %v423 = vld [vmem:[#allocation2 + $0x51] sm:$0xff]
        %v424 = vld [vmem:[#allocation2 + $0x61] sm:$0xff]
        %v425 = vld [vmem:[#allocation2 + $0x69] sm:$0xff]
        %v426 = vld [vmem:[#allocation2 + $0x79] sm:$0xff]
        %v427 = vld [vmem:[#allocation2 + $0x81] sm:$0xff]
        %v428 = vld [vmem:[#allocation2 + $0x91] sm:$0xff]
        %v429 = vld [vmem:[#allocation2 + $0x99] sm:$0xff]
        %v430 = vld [vmem:[#allocation2 + $0xa9] sm:$0xff]
        %v431 = vld [vmem:[#allocation2 + $0xb1] sm:$0xff]
        %v432 = vld [vmem:[#allocation2 + $0xc1] sm:$0xff]
        %v433 = vld [vmem:[#allocation2 + $0xc9] sm:$0xff]
        %v434 = vld [vmem:[#allocation2 + $0xd9] sm:$0xff]
        %v435 = vld [vmem:[#allocation2 + $0xe1] sm:$0xff]
        %v436 = vld [vmem:[#allocation2 + $0xf1] sm:$0xff]
        %v437 = vld [vmem:[#allocation2 + $0xf9] sm:$0xff]
        %v438 = vld [vmem:[#allocation2 + $0x109] sm:$0xff]
        %v439 = vld [vmem:[#allocation2 + $0x111] sm:$0xff]
        %v440 = vld [vmem:[#allocation2 + $0x121] sm:$0xff]
        %v441 = vld [vmem:[#allocation2 + $0x129] sm:$0xff]
        %v442 = vld [vmem:[#allocation2 + $0x139] sm:$0xff]
        %v443 = vld [vmem:[#allocation2 + $0x141] sm:$0xff]
        %v444 = vld [vmem:[#allocation2 + $0x151] sm:$0xff]
        %v445 = vld [vmem:[#allocation2 + $0x159] sm:$0xff]
        %v446 = vld [vmem:[#allocation2 + $0x169] sm:$0xff]
        %v447 = vld [vmem:[#allocation2 + $0x171] sm:$0xff]
        %v448 = vld [vmem:[#allocation2 + $0x2] sm:$0xff]
        %v449 = vld [vmem:[#allocation2 + $0xa] sm:$0xff]
        %v450 = vld [vmem:[#allocation2 + $0x1a] sm:$0xff]
        %v451 = vld [vmem:[#allocation2 + $0x22] sm:$0xff]
        %v452 = vld [vmem:[#allocation2 + $0x32] sm:$0xff]
        %v453 = vld [vmem:[#allocation2 + $0x3a] sm:$0xff]
        %v454 = vld [vmem:[#allocation2 + $0x4a] sm:$0xff]
        %v455 = vld [vmem:[#allocation2 + $0x52] sm:$0xff]
        %v456 = vld [vmem:[#allocation2 + $0x62] sm:$0xff]
        %v457 = vld [vmem:[#allocation2 + $0x6a] sm:$0xff]
        %v458 = vld [vmem:[#allocation2 + $0x7a] sm:$0xff]
        %v459 = vld [vmem:[#allocation2 + $0x82] sm:$0xff]
        %v460 = vld [vmem:[#allocation2 + $0x92] sm:$0xff]
        %v461 = vld [vmem:[#allocation2 + $0x9a] sm:$0xff]
        %v462 = vld [vmem:[#allocation2 + $0xaa] sm:$0xff]
        %v463 = vld [vmem:[#allocation2 + $0xb2] sm:$0xff]
        %v464 = vld [vmem:[#allocation2 + $0xc2] sm:$0xff]
        %v465 = vld [vmem:[#allocation2 + $0xca] sm:$0xff]
        %v466 = vld [vmem:[#allocation2 + $0xda] sm:$0xff]
        %v467 = vld [vmem:[#allocation2 + $0xe2] sm:$0xff]
        %v468 = vld [vmem:[#allocation2 + $0xf2] sm:$0xff]
        %v469 = vld [vmem:[#allocation2 + $0xfa] sm:$0xff]
        %v470 = vld [vmem:[#allocation2 + $0x10a] sm:$0xff]
        %v471 = vld [vmem:[#allocation2 + $0x112] sm:$0xff]
        %v472 = vld [vmem:[#allocation2 + $0x122] sm:$0xff]
        %v473 = vld [vmem:[#allocation2 + $0x12a] sm:$0xff]
        %v474 = vld [vmem:[#allocation2 + $0x13a] sm:$0xff]
        %v475 = vld [vmem:[#allocation2 + $0x142] sm:$0xff]
        %v476 = vld [vmem:[#allocation2 + $0x152] sm:$0xff]
        %v477 = vld [vmem:[#allocation2 + $0x15a] sm:$0xff]
        %v478 = vld [vmem:[#allocation2 + $0x16a] sm:$0xff]
        %v479 = vld [vmem:[#allocation2 + $0x172] sm:$0xff]
        %v480 = vld [vmem:[%s286] sm:$0xff]
        %v481 = vld [vmem:[%s286 + $0x8] sm:$0xff]
        %v482 = vld [vmem:[%s286 + $0x18] sm:$0xff]
        %v483 = vld [vmem:[%s286 + $0x20] sm:$0xff]
        %v484 = vld [vmem:[%s286 + $0x30] sm:$0xff]
        %v485 = vld [vmem:[%s286 + $0x38] sm:$0xff]
        %v486 = vld [vmem:[%s286 + $0x48] sm:$0xff]
        %v487 = vld [vmem:[%s286 + $0x50] sm:$0xff]
        %v488 = vld [vmem:[%s286 + $0x60] sm:$0xff]
        %v489 = vld [vmem:[%s286 + $0x68] sm:$0xff]
        %v490 = vld [vmem:[%s286 + $0x78] sm:$0xff]
        %v491 = vld [vmem:[%s286 + $0x80] sm:$0xff]
        %v492 = vld [vmem:[%s286 + $0x90] sm:$0xff]
        %v493 = vld [vmem:[%s286 + $0x98] sm:$0xff]
        %v494 = vld [vmem:[%s286 + $0xa8] sm:$0xff]
        %v495 = vld [vmem:[%s286 + $0xb0] sm:$0xff]
        %v496 = vld [vmem:[%s286 + $0xc0] sm:$0xff]
        %v497 = vld [vmem:[%s286 + $0xc8] sm:$0xff]
        %v498 = vld [vmem:[%s286 + $0xd8] sm:$0xff]
        %v499 = vld [vmem:[%s286 + $0xe0] sm:$0xff]
        %v500 = vld [vmem:[%s286 + $0xf0] sm:$0xff]
        %v501 = vld [vmem:[%s286 + $0xf8] sm:$0xff]
        %v502 = vld [vmem:[%s286 + $0x108] sm:$0xff]
        %v503 = vld [vmem:[%s286 + $0x110] sm:$0xff]
        %v504 = vld [vmem:[%s286 + $0x120] sm:$0xff]
        %v505 = vld [vmem:[%s286 + $0x128] sm:$0xff]
        %v506 = vld [vmem:[%s286 + $0x138] sm:$0xff]
        %v507 = vld [vmem:[%s286 + $0x140] sm:$0xff]
        %v508 = vld [vmem:[%s286 + $0x150] sm:$0xff]
        %v509 = vld [vmem:[%s286 + $0x158] sm:$0xff]
        %v510 = vld [vmem:[%s286 + $0x168] sm:$0xff]
        %v511 = vld [vmem:[%s286 + $0x170] sm:$0xff]
        %544 = vrot.lane.b32.xlu0 %v416, 32
        %v545 = vpop.permute.xlu0 %544
        %546 = vrot.lane.b32.xlu0 %v417, 32
        %v547 = vpop.permute.xlu0 %546
        %548 = vrot.lane.b32.xlu0 %v418, 32
        %v549 = vpop.permute.xlu0 %548
        %550 = vrot.lane.b32.xlu0 %v419, 32
        %v551 = vpop.permute.xlu0 %550
        %552 = vrot.lane.b32.xlu0 %v420, 32
        %v553 = vpop.permute.xlu0 %552
        %554 = vrot.lane.b32.xlu0 %v421, 32
        %v555 = vpop.permute.xlu0 %554
        %556 = vrot.lane.b32.xlu0 %v422, 32
        %v557 = vpop.permute.xlu0 %556
        %558 = vrot.lane.b32.xlu0 %v423, 32
        %v559 = vpop.permute.xlu0 %558
        %560 = vrot.lane.b32.xlu0 %v424, 32
        %v561 = vpop.permute.xlu0 %560
        %562 = vrot.lane.b32.xlu0 %v425, 32
        %v563 = vpop.permute.xlu0 %562
        %564 = vrot.lane.b32.xlu0 %v426, 32
        %v565 = vpop.permute.xlu0 %564
        %566 = vrot.lane.b32.xlu0 %v427, 32
        %v567 = vpop.permute.xlu0 %566
        %568 = vrot.lane.b32.xlu0 %v428, 32
        %v569 = vpop.permute.xlu0 %568
        %570 = vrot.lane.b32.xlu0 %v429, 32
        %v571 = vpop.permute.xlu0 %570
        %572 = vrot.lane.b32.xlu0 %v430, 32
        %v573 = vpop.permute.xlu0 %572
        %574 = vrot.lane.b32.xlu0 %v431, 32
        %v575 = vpop.permute.xlu0 %574
        %576 = vrot.lane.b32.xlu0 %v432, 32
        %v577 = vpop.permute.xlu0 %576
        %578 = vrot.lane.b32.xlu0 %v433, 32
        %v579 = vpop.permute.xlu0 %578
        %580 = vrot.lane.b32.xlu0 %v434, 32
        %v581 = vpop.permute.xlu0 %580
        %582 = vrot.lane.b32.xlu0 %v435, 32
        %v583 = vpop.permute.xlu0 %582
        %584 = vrot.lane.b32.xlu0 %v436, 32
        %v585 = vpop.permute.xlu0 %584
        %586 = vrot.lane.b32.xlu0 %v437, 32
        %v587 = vpop.permute.xlu0 %586
        %588 = vrot.lane.b32.xlu0 %v438, 32
        %v589 = vpop.permute.xlu0 %588
        %590 = vrot.lane.b32.xlu0 %v439, 32
        %v591 = vpop.permute.xlu0 %590
        %592 = vrot.lane.b32.xlu0 %v440, 32
        %v593 = vpop.permute.xlu0 %592
        %594 = vrot.lane.b32.xlu0 %v441, 32
        %v595 = vpop.permute.xlu0 %594
        %596 = vrot.lane.b32.xlu0 %v442, 32
        %v597 = vpop.permute.xlu0 %596
        %598 = vrot.lane.b32.xlu0 %v443, 32
        %v599 = vpop.permute.xlu0 %598
        %600 = vrot.lane.b32.xlu0 %v444, 32
        %v601 = vpop.permute.xlu0 %600
        %602 = vrot.lane.b32.xlu0 %v445, 32
        %v603 = vpop.permute.xlu0 %602
        %604 = vrot.lane.b32.xlu0 %v446, 32
        %v605 = vpop.permute.xlu0 %604
        %606 = vrot.lane.b32.xlu0 %v447, 32
        %v607 = vpop.permute.xlu0 %606
        %672 = vrot.lane.b32.xlu0 %v448, 64
        %v673 = vpop.permute.xlu0 %672
        %674 = vrot.lane.b32.xlu0 %v449, 64
        %v675 = vpop.permute.xlu0 %674
        %676 = vrot.lane.b32.xlu0 %v450, 64
        %v677 = vpop.permute.xlu0 %676
        %678 = vrot.lane.b32.xlu0 %v451, 64
        %v679 = vpop.permute.xlu0 %678
        %680 = vrot.lane.b32.xlu0 %v452, 64
        %v681 = vpop.permute.xlu0 %680
        %682 = vrot.lane.b32.xlu0 %v453, 64
        %v683 = vpop.permute.xlu0 %682
        %684 = vrot.lane.b32.xlu0 %v454, 64
        %v685 = vpop.permute.xlu0 %684
        %686 = vrot.lane.b32.xlu0 %v455, 64
        %v687 = vpop.permute.xlu0 %686
        %688 = vrot.lane.b32.xlu0 %v456, 64
        %v689 = vpop.permute.xlu0 %688
        %690 = vrot.lane.b32.xlu0 %v457, 64
        %v691 = vpop.permute.xlu0 %690
        %692 = vrot.lane.b32.xlu0 %v458, 64
        %v693 = vpop.permute.xlu0 %692
        %694 = vrot.lane.b32.xlu0 %v459, 64
        %v695 = vpop.permute.xlu0 %694
        %696 = vrot.lane.b32.xlu0 %v460, 64
        %v697 = vpop.permute.xlu0 %696
        %698 = vrot.lane.b32.xlu0 %v461, 64
        %v699 = vpop.permute.xlu0 %698
        %700 = vrot.lane.b32.xlu0 %v462, 64
        %v701 = vpop.permute.xlu0 %700
        %702 = vrot.lane.b32.xlu0 %v463, 64
        %v703 = vpop.permute.xlu0 %702
        %704 = vrot.lane.b32.xlu0 %v464, 64
        %v705 = vpop.permute.xlu0 %704
        %706 = vrot.lane.b32.xlu0 %v465, 64
        %v707 = vpop.permute.xlu0 %706
        %708 = vrot.lane.b32.xlu0 %v466, 64
        %v709 = vpop.permute.xlu0 %708
        %710 = vrot.lane.b32.xlu0 %v467, 64
        %v711 = vpop.permute.xlu0 %710
        %712 = vrot.lane.b32.xlu0 %v468, 64
        %v713 = vpop.permute.xlu0 %712
        %714 = vrot.lane.b32.xlu0 %v469, 64
        %v715 = vpop.permute.xlu0 %714
        %716 = vrot.lane.b32.xlu0 %v470, 64
        %v717 = vpop.permute.xlu0 %716
        %718 = vrot.lane.b32.xlu0 %v471, 64
        %v719 = vpop.permute.xlu0 %718
        %720 = vrot.lane.b32.xlu0 %v472, 64
        %v721 = vpop.permute.xlu0 %720
        %722 = vrot.lane.b32.xlu0 %v473, 64
        %v723 = vpop.permute.xlu0 %722
        %724 = vrot.lane.b32.xlu0 %v474, 64
        %v725 = vpop.permute.xlu0 %724
        %726 = vrot.lane.b32.xlu0 %v475, 64
        %v727 = vpop.permute.xlu0 %726
        %728 = vrot.lane.b32.xlu0 %v476, 64
        %v729 = vpop.permute.xlu0 %728
        %730 = vrot.lane.b32.xlu0 %v477, 64
        %v731 = vpop.permute.xlu0 %730
        %732 = vrot.lane.b32.xlu0 %v478, 64
        %v733 = vpop.permute.xlu0 %732
        %734 = vrot.lane.b32.xlu0 %v479, 64
        %v735 = vpop.permute.xlu0 %734
        %800 = vrot.lane.b32.xlu0 %v480, 96
        %v801 = vpop.permute.xlu0 %800
        %802 = vrot.lane.b32.xlu0 %v481, 96
        %v803 = vpop.permute.xlu0 %802
        %804 = vrot.lane.b32.xlu0 %v482, 96
        %v805 = vpop.permute.xlu0 %804
        %806 = vrot.lane.b32.xlu0 %v483, 96
        %v807 = vpop.permute.xlu0 %806
        %808 = vrot.lane.b32.xlu0 %v484, 96
        %v809 = vpop.permute.xlu0 %808
        %810 = vrot.lane.b32.xlu0 %v485, 96
        %v811 = vpop.permute.xlu0 %810
        %812 = vrot.lane.b32.xlu0 %v486, 96
        %v813 = vpop.permute.xlu0 %812
        %814 = vrot.lane.b32.xlu0 %v487, 96
        %v815 = vpop.permute.xlu0 %814
        %816 = vrot.lane.b32.xlu0 %v488, 96
        %v817 = vpop.permute.xlu0 %816
        %818 = vrot.lane.b32.xlu0 %v489, 96
        %v819 = vpop.permute.xlu0 %818
        %820 = vrot.lane.b32.xlu0 %v490, 96
        %v821 = vpop.permute.xlu0 %820
        %822 = vrot.lane.b32.xlu0 %v491, 96
        %v823 = vpop.permute.xlu0 %822
        %824 = vrot.lane.b32.xlu0 %v492, 96
        %v825 = vpop.permute.xlu0 %824
        %826 = vrot.lane.b32.xlu0 %v493, 96
        %v827 = vpop.permute.xlu0 %826
        %828 = vrot.lane.b32.xlu0 %v494, 96
        %v829 = vpop.permute.xlu0 %828
        %830 = vrot.lane.b32.xlu0 %v495, 96
        %v831 = vpop.permute.xlu0 %830
        %832 = vrot.lane.b32.xlu0 %v496, 96
        %v833 = vpop.permute.xlu0 %832
        %834 = vrot.lane.b32.xlu0 %v497, 96
        %v835 = vpop.permute.xlu0 %834
        %836 = vrot.lane.b32.xlu0 %v498, 96
        %v837 = vpop.permute.xlu0 %836
        %838 = vrot.lane.b32.xlu0 %v499, 96
        %v839 = vpop.permute.xlu0 %838
        %840 = vrot.lane.b32.xlu0 %v500, 96
        %v841 = vpop.permute.xlu0 %840
        %842 = vrot.lane.b32.xlu0 %v501, 96
        %v843 = vpop.permute.xlu0 %842
        %844 = vrot.lane.b32.xlu0 %v502, 96
        %v845 = vpop.permute.xlu0 %844
        %846 = vrot.lane.b32.xlu0 %v503, 96
        %v847 = vpop.permute.xlu0 %846
        %848 = vrot.lane.b32.xlu0 %v504, 96
        %v849 = vpop.permute.xlu0 %848
        %850 = vrot.lane.b32.xlu0 %v505, 96
        %v851 = vpop.permute.xlu0 %850
        %852 = vrot.lane.b32.xlu0 %v506, 96
        %v853 = vpop.permute.xlu0 %852
        %854 = vrot.lane.b32.xlu0 %v507, 96
        %v855 = vpop.permute.xlu0 %854
        %856 = vrot.lane.b32.xlu0 %v508, 96
        %v857 = vpop.permute.xlu0 %856
        %858 = vrot.lane.b32.xlu0 %v509, 96
        %v859 = vpop.permute.xlu0 %858
        %860 = vrot.lane.b32.xlu0 %v510, 96
        %v861 = vpop.permute.xlu0 %860
        %862 = vrot.lane.b32.xlu0 %v511, 96
        %v863 = vpop.permute.xlu0 %862
        %v896 = vsel %vm277, %v384, %v545
        %v897 = vsel %vm277, %v385, %v547
        %v898 = vsel %vm277, %v386, %v549
        %v899 = vsel %vm277, %v387, %v551
        %v900 = vsel %vm277, %v388, %v553
        %v901 = vsel %vm277, %v389, %v555
        %v902 = vsel %vm277, %v390, %v557
        %v903 = vsel %vm277, %v391, %v559
        %v904 = vsel %vm277, %v392, %v561
        %v905 = vsel %vm277, %v393, %v563
        %v906 = vsel %vm277, %v394, %v565
        %v907 = vsel %vm277, %v395, %v567
        %v908 = vsel %vm277, %v396, %v569
        %v909 = vsel %vm277, %v397, %v571
        %v910 = vsel %vm277, %v398, %v573
        %v911 = vsel %vm277, %v399, %v575
        %v912 = vsel %vm277, %v400, %v577
        %v913 = vsel %vm277, %v401, %v579
        %v914 = vsel %vm277, %v402, %v581
        %v915 = vsel %vm277, %v403, %v583
        %v916 = vsel %vm277, %v404, %v585
        %v917 = vsel %vm277, %v405, %v587
        %v918 = vsel %vm277, %v406, %v589
        %v919 = vsel %vm277, %v407, %v591
        %v920 = vsel %vm277, %v408, %v593
        %v921 = vsel %vm277, %v409, %v595
        %v922 = vsel %vm277, %v410, %v597
        %v923 = vsel %vm277, %v411, %v599
        %v924 = vsel %vm277, %v412, %v601
        %v925 = vsel %vm277, %v413, %v603
        %v926 = vsel %vm277, %v414, %v605
        %v927 = vsel %vm277, %v415, %v607
        %vm928 = vcmask 523264
        %v929 = vsel %vm928, %v896, %v673
        %v930 = vsel %vm928, %v897, %v675
        %v931 = vsel %vm928, %v898, %v677
        %v932 = vsel %vm928, %v899, %v679
        %v933 = vsel %vm928, %v900, %v681
        %v934 = vsel %vm928, %v901, %v683
        %v935 = vsel %vm928, %v902, %v685
        %v936 = vsel %vm928, %v903, %v687
        %v937 = vsel %vm928, %v904, %v689
        %v938 = vsel %vm928, %v905, %v691
        %v939 = vsel %vm928, %v906, %v693
        %v940 = vsel %vm928, %v907, %v695
        %v941 = vsel %vm928, %v908, %v697
        %v942 = vsel %vm928, %v909, %v699
        %v943 = vsel %vm928, %v910, %v701
        %v944 = vsel %vm928, %v911, %v703
        %v945 = vsel %vm928, %v912, %v705
        %v946 = vsel %vm928, %v913, %v707
        %v947 = vsel %vm928, %v914, %v709
        %v948 = vsel %vm928, %v915, %v711
        %v949 = vsel %vm928, %v916, %v713
        %v950 = vsel %vm928, %v917, %v715
        %v951 = vsel %vm928, %v918, %v717
        %v952 = vsel %vm928, %v919, %v719
        %v953 = vsel %vm928, %v920, %v721
        %v954 = vsel %vm928, %v921, %v723
        %v955 = vsel %vm928, %v922, %v725
        %v956 = vsel %vm928, %v923, %v727
        %v957 = vsel %vm928, %v924, %v729
        %v958 = vsel %vm928, %v925, %v731
        %v959 = vsel %vm928, %v926, %v733
        %v960 = vsel %vm928, %v927, %v735
        %vm961 = vcmask 785408
        %v962 = vsel %vm961, %v929, %v801
        %v963 = vsel %vm961, %v930, %v803
        %v964 = vsel %vm961, %v931, %v805
        %v965 = vsel %vm961, %v932, %v807
        %v966 = vsel %vm961, %v933, %v809
        %v967 = vsel %vm961, %v934, %v811
        %v968 = vsel %vm961, %v935, %v813
        %v969 = vsel %vm961, %v936, %v815
        %v970 = vsel %vm961, %v937, %v817
        %v971 = vsel %vm961, %v938, %v819
        %v972 = vsel %vm961, %v939, %v821
        %v973 = vsel %vm961, %v940, %v823
        %v974 = vsel %vm961, %v941, %v825
        %v975 = vsel %vm961, %v942, %v827
        %v976 = vsel %vm961, %v943, %v829
        %v977 = vsel %vm961, %v944, %v831
        %v978 = vsel %vm961, %v945, %v833
        %v979 = vsel %vm961, %v946, %v835
        %v980 = vsel %vm961, %v947, %v837
        %v981 = vsel %vm961, %v948, %v839
        %v982 = vsel %vm961, %v949, %v841
        %v983 = vsel %vm961, %v950, %v843
        %v984 = vsel %vm961, %v951, %v845
        %v985 = vsel %vm961, %v952, %v847
        %v986 = vsel %vm961, %v953, %v849
        %v987 = vsel %vm961, %v954, %v851
        %v988 = vsel %vm961, %v955, %v853
        %v989 = vsel %vm961, %v956, %v855
        %v990 = vsel %vm961, %v957, %v857
        %v991 = vsel %vm961, %v958, %v859
        %v992 = vsel %vm961, %v959, %v861
        %v993 = vsel %vm961, %v960, %v863
        %994 = vst [vmem:[#allocation3] sm:$0xff] %v962
        %995 = vst [vmem:[#allocation3 + $0x18] sm:$0xff] %v963
        %996 = vst [vmem:[#allocation3 + $0x30] sm:$0xff] %v964
        %997 = vst [vmem:[#allocation3 + $0x48] sm:$0xff] %v965
        %998 = vst [vmem:[#allocation3 + $0x60] sm:$0xff] %v966
        %999 = vst [vmem:[#allocation3 + $0x78] sm:$0xff] %v967
        %1000 = vst [vmem:[#allocation3 + $0x90] sm:$0xff] %v968
        %1001 = vst [vmem:[#allocation3 + $0xa8] sm:$0xff] %v969
        %1002 = vst [vmem:[#allocation3 + $0xc0] sm:$0xff] %v970
        %1003 = vst [vmem:[#allocation3 + $0xd8] sm:$0xff] %v971
        %1004 = vst [vmem:[#allocation3 + $0xf0] sm:$0xff] %v972
        %1005 = vst [vmem:[#allocation3 + $0x108] sm:$0xff] %v973
        %1006 = vst [vmem:[#allocation3 + $0x120] sm:$0xff] %v974
        %1007 = vst [vmem:[#allocation3 + $0x138] sm:$0xff] %v975
        %1008 = vst [vmem:[#allocation3 + $0x150] sm:$0xff] %v976
        %1009 = vst [vmem:[#allocation3 + $0x168] sm:$0xff] %v977
        %1010 = vst [vmem:[#allocation3 + $0x180] sm:$0xff] %v978
        %1011 = vst [vmem:[#allocation3 + $0x198] sm:$0xff] %v979
        %1012 = vst [vmem:[#allocation3 + $0x1b0] sm:$0xff] %v980
        %1013 = vst [vmem:[#allocation3 + $0x1c8] sm:$0xff] %v981
        %1014 = vst [vmem:[#allocation3 + $0x1e0] sm:$0xff] %v982
        %1015 = vst [vmem:[#allocation3 + $0x1f8] sm:$0xff] %v983
        %1016 = vst [vmem:[#allocation3 + $0x210] sm:$0xff] %v984
        %1017 = vst [vmem:[#allocation3 + $0x228] sm:$0xff] %v985
        %1018 = vst [vmem:[#allocation3 + $0x240] sm:$0xff] %v986
        %1019 = vst [vmem:[#allocation3 + $0x258] sm:$0xff] %v987
        %1020 = vst [vmem:[#allocation3 + $0x270] sm:$0xff] %v988
        %1021 = vst [vmem:[#allocation3 + $0x288] sm:$0xff] %v989
        %1022 = vst [vmem:[#allocation3 + $0x2a0] sm:$0xff] %v990
        %1023 = vst [vmem:[#allocation3 + $0x2b8] sm:$0xff] %v991
        %1024 = vst [vmem:[#allocation3 + $0x2d0] sm:$0xff] %v992
        %1025 = vst [vmem:[#allocation3 + $0x2e8] sm:$0xff] %v993
        %v1026 = vld [vmem:[%s286 + $0x1] sm:$0xff]
        %v1027 = vld [vmem:[%s286 + $0x9] sm:$0xff]
        %v1028 = vld [vmem:[%s286 + $0x19] sm:$0xff]
        %v1029 = vld [vmem:[%s286 + $0x21] sm:$0xff]
        %v1030 = vld [vmem:[%s286 + $0x31] sm:$0xff]
        %v1031 = vld [vmem:[%s286 + $0x39] sm:$0xff]
        %v1032 = vld [vmem:[%s286 + $0x49] sm:$0xff]
        %v1033 = vld [vmem:[%s286 + $0x51] sm:$0xff]
        %v1034 = vld [vmem:[%s286 + $0x61] sm:$0xff]
        %v1035 = vld [vmem:[%s286 + $0x69] sm:$0xff]
        %v1036 = vld [vmem:[%s286 + $0x79] sm:$0xff]
        %v1037 = vld [vmem:[%s286 + $0x81] sm:$0xff]
        %v1038 = vld [vmem:[%s286 + $0x91] sm:$0xff]
        %v1039 = vld [vmem:[%s286 + $0x99] sm:$0xff]
        %v1040 = vld [vmem:[%s286 + $0xa9] sm:$0xff]
        %v1041 = vld [vmem:[%s286 + $0xb1] sm:$0xff]
        %v1042 = vld [vmem:[%s286 + $0xc1] sm:$0xff]
        %v1043 = vld [vmem:[%s286 + $0xc9] sm:$0xff]
        %v1044 = vld [vmem:[%s286 + $0xd9] sm:$0xff]
        %v1045 = vld [vmem:[%s286 + $0xe1] sm:$0xff]
        %v1046 = vld [vmem:[%s286 + $0xf1] sm:$0xff]
        %v1047 = vld [vmem:[%s286 + $0xf9] sm:$0xff]
        %v1048 = vld [vmem:[%s286 + $0x109] sm:$0xff]
        %v1049 = vld [vmem:[%s286 + $0x111] sm:$0xff]
        %v1050 = vld [vmem:[%s286 + $0x121] sm:$0xff]
        %v1051 = vld [vmem:[%s286 + $0x129] sm:$0xff]
        %v1052 = vld [vmem:[%s286 + $0x139] sm:$0xff]
        %v1053 = vld [vmem:[%s286 + $0x141] sm:$0xff]
        %v1054 = vld [vmem:[%s286 + $0x151] sm:$0xff]
        %v1055 = vld [vmem:[%s286 + $0x159] sm:$0xff]
        %v1056 = vld [vmem:[%s286 + $0x169] sm:$0xff]
        %v1057 = vld [vmem:[%s286 + $0x171] sm:$0xff]
        %v1058 = vld [vmem:[%s286 + $0x2] sm:$0xff]
        %v1059 = vld [vmem:[%s286 + $0xa] sm:$0xff]
        %v1060 = vld [vmem:[%s286 + $0x1a] sm:$0xff]
        %v1061 = vld [vmem:[%s286 + $0x22] sm:$0xff]
        %v1062 = vld [vmem:[%s286 + $0x32] sm:$0xff]
        %v1063 = vld [vmem:[%s286 + $0x3a] sm:$0xff]
        %v1064 = vld [vmem:[%s286 + $0x4a] sm:$0xff]
        %v1065 = vld [vmem:[%s286 + $0x52] sm:$0xff]
        %v1066 = vld [vmem:[%s286 + $0x62] sm:$0xff]
        %v1067 = vld [vmem:[%s286 + $0x6a] sm:$0xff]
        %v1068 = vld [vmem:[%s286 + $0x7a] sm:$0xff]
        %v1069 = vld [vmem:[%s286 + $0x82] sm:$0xff]
        %v1070 = vld [vmem:[%s286 + $0x92] sm:$0xff]
        %v1071 = vld [vmem:[%s286 + $0x9a] sm:$0xff]
        %v1072 = vld [vmem:[%s286 + $0xaa] sm:$0xff]
        %v1073 = vld [vmem:[%s286 + $0xb2] sm:$0xff]
        %v1074 = vld [vmem:[%s286 + $0xc2] sm:$0xff]
        %v1075 = vld [vmem:[%s286 + $0xca] sm:$0xff]
        %v1076 = vld [vmem:[%s286 + $0xda] sm:$0xff]
        %v1077 = vld [vmem:[%s286 + $0xe2] sm:$0xff]
        %v1078 = vld [vmem:[%s286 + $0xf2] sm:$0xff]
        %v1079 = vld [vmem:[%s286 + $0xfa] sm:$0xff]
        %v1080 = vld [vmem:[%s286 + $0x10a] sm:$0xff]
        %v1081 = vld [vmem:[%s286 + $0x112] sm:$0xff]
        %v1082 = vld [vmem:[%s286 + $0x122] sm:$0xff]
        %v1083 = vld [vmem:[%s286 + $0x12a] sm:$0xff]
        %v1084 = vld [vmem:[%s286 + $0x13a] sm:$0xff]
        %v1085 = vld [vmem:[%s286 + $0x142] sm:$0xff]
        %v1086 = vld [vmem:[%s286 + $0x152] sm:$0xff]
        %v1087 = vld [vmem:[%s286 + $0x15a] sm:$0xff]
        %v1088 = vld [vmem:[%s286 + $0x16a] sm:$0xff]
        %v1089 = vld [vmem:[%s286 + $0x172] sm:$0xff]
        %s1090 = scalar_lea.vmem [#allocation2], 48
        %v1091 = vld [vmem:[%s1090] sm:$0xff]
        %v1092 = vld [vmem:[%s1090 + $0x8] sm:$0xff]
        %v1093 = vld [vmem:[%s1090 + $0x18] sm:$0xff]
        %v1094 = vld [vmem:[%s1090 + $0x20] sm:$0xff]
        %v1095 = vld [vmem:[%s1090 + $0x30] sm:$0xff]
        %v1096 = vld [vmem:[%s1090 + $0x38] sm:$0xff]
        %v1097 = vld [vmem:[%s1090 + $0x48] sm:$0xff]
        %v1098 = vld [vmem:[%s1090 + $0x50] sm:$0xff]
        %v1099 = vld [vmem:[%s1090 + $0x60] sm:$0xff]
        %v1100 = vld [vmem:[%s1090 + $0x68] sm:$0xff]
        %v1101 = vld [vmem:[%s1090 + $0x78] sm:$0xff]
        %v1102 = vld [vmem:[%s1090 + $0x80] sm:$0xff]
        %v1103 = vld [vmem:[%s1090 + $0x90] sm:$0xff]
        %v1104 = vld [vmem:[%s1090 + $0x98] sm:$0xff]
        %v1105 = vld [vmem:[%s1090 + $0xa8] sm:$0xff]
        %v1106 = vld [vmem:[%s1090 + $0xb0] sm:$0xff]
        %v1107 = vld [vmem:[%s1090 + $0xc0] sm:$0xff]
        %v1108 = vld [vmem:[%s1090 + $0xc8] sm:$0xff]
        %v1109 = vld [vmem:[%s1090 + $0xd8] sm:$0xff]
        %v1110 = vld [vmem:[%s1090 + $0xe0] sm:$0xff]
        %v1111 = vld [vmem:[%s1090 + $0xf0] sm:$0xff]
        %v1112 = vld [vmem:[%s1090 + $0xf8] sm:$0xff]
        %v1113 = vld [vmem:[%s1090 + $0x108] sm:$0xff]
        %v1114 = vld [vmem:[%s1090 + $0x110] sm:$0xff]
        %v1115 = vld [vmem:[%s1090 + $0x120] sm:$0xff]
        %v1116 = vld [vmem:[%s1090 + $0x128] sm:$0xff]
        %v1117 = vld [vmem:[%s1090 + $0x138] sm:$0xff]
        %v1118 = vld [vmem:[%s1090 + $0x140] sm:$0xff]
        %v1119 = vld [vmem:[%s1090 + $0x150] sm:$0xff]
        %v1120 = vld [vmem:[%s1090 + $0x158] sm:$0xff]
        %v1121 = vld [vmem:[%s1090 + $0x168] sm:$0xff]
        %v1122 = vld [vmem:[%s1090 + $0x170] sm:$0xff]
        %v1123 = vld [vmem:[%s1090 + $0x1] sm:$0xff]
        %v1124 = vld [vmem:[%s1090 + $0x9] sm:$0xff]
        %v1125 = vld [vmem:[%s1090 + $0x19] sm:$0xff]
        %v1126 = vld [vmem:[%s1090 + $0x21] sm:$0xff]
        %v1127 = vld [vmem:[%s1090 + $0x31] sm:$0xff]
        %v1128 = vld [vmem:[%s1090 + $0x39] sm:$0xff]
        %v1129 = vld [vmem:[%s1090 + $0x49] sm:$0xff]
        %v1130 = vld [vmem:[%s1090 + $0x51] sm:$0xff]
        %v1131 = vld [vmem:[%s1090 + $0x61] sm:$0xff]
        %v1132 = vld [vmem:[%s1090 + $0x69] sm:$0xff]
        %v1133 = vld [vmem:[%s1090 + $0x79] sm:$0xff]
        %v1134 = vld [vmem:[%s1090 + $0x81] sm:$0xff]
        %v1135 = vld [vmem:[%s1090 + $0x91] sm:$0xff]
        %v1136 = vld [vmem:[%s1090 + $0x99] sm:$0xff]
        %v1137 = vld [vmem:[%s1090 + $0xa9] sm:$0xff]
        %v1138 = vld [vmem:[%s1090 + $0xb1] sm:$0xff]
        %v1139 = vld [vmem:[%s1090 + $0xc1] sm:$0xff]
        %v1140 = vld [vmem:[%s1090 + $0xc9] sm:$0xff]
        %v1141 = vld [vmem:[%s1090 + $0xd9] sm:$0xff]
        %v1142 = vld [vmem:[%s1090 + $0xe1] sm:$0xff]
        %v1143 = vld [vmem:[%s1090 + $0xf1] sm:$0xff]
        %v1144 = vld [vmem:[%s1090 + $0xf9] sm:$0xff]
        %v1145 = vld [vmem:[%s1090 + $0x109] sm:$0xff]
        %v1146 = vld [vmem:[%s1090 + $0x111] sm:$0xff]
        %v1147 = vld [vmem:[%s1090 + $0x121] sm:$0xff]
        %v1148 = vld [vmem:[%s1090 + $0x129] sm:$0xff]
        %v1149 = vld [vmem:[%s1090 + $0x139] sm:$0xff]
        %v1150 = vld [vmem:[%s1090 + $0x141] sm:$0xff]
        %v1151 = vld [vmem:[%s1090 + $0x151] sm:$0xff]
        %v1152 = vld [vmem:[%s1090 + $0x159] sm:$0xff]
        %v1153 = vld [vmem:[%s1090 + $0x169] sm:$0xff]
        %v1154 = vld [vmem:[%s1090 + $0x171] sm:$0xff]
        %1187 = vrot.lane.b32.xlu0 %v1058, 32
        %v1188 = vpop.permute.xlu0 %1187
        %1189 = vrot.lane.b32.xlu0 %v1059, 32
        %v1190 = vpop.permute.xlu0 %1189
        %1191 = vrot.lane.b32.xlu0 %v1060, 32
        %v1192 = vpop.permute.xlu0 %1191
        %1193 = vrot.lane.b32.xlu0 %v1061, 32
        %v1194 = vpop.permute.xlu0 %1193
        %1195 = vrot.lane.b32.xlu0 %v1062, 32
        %v1196 = vpop.permute.xlu0 %1195
        %1197 = vrot.lane.b32.xlu0 %v1063, 32
        %v1198 = vpop.permute.xlu0 %1197
        %1199 = vrot.lane.b32.xlu0 %v1064, 32
        %v1200 = vpop.permute.xlu0 %1199
        %1201 = vrot.lane.b32.xlu0 %v1065, 32
        %v1202 = vpop.permute.xlu0 %1201
        %1203 = vrot.lane.b32.xlu0 %v1066, 32
        %v1204 = vpop.permute.xlu0 %1203
        %1205 = vrot.lane.b32.xlu0 %v1067, 32
        %v1206 = vpop.permute.xlu0 %1205
        %1207 = vrot.lane.b32.xlu0 %v1068, 32
        %v1208 = vpop.permute.xlu0 %1207
        %1209 = vrot.lane.b32.xlu0 %v1069, 32
        %v1210 = vpop.permute.xlu0 %1209
        %1211 = vrot.lane.b32.xlu0 %v1070, 32
        %v1212 = vpop.permute.xlu0 %1211
        %1213 = vrot.lane.b32.xlu0 %v1071, 32
        %v1214 = vpop.permute.xlu0 %1213
        %1215 = vrot.lane.b32.xlu0 %v1072, 32
        %v1216 = vpop.permute.xlu0 %1215
        %1217 = vrot.lane.b32.xlu0 %v1073, 32
        %v1218 = vpop.permute.xlu0 %1217
        %1219 = vrot.lane.b32.xlu0 %v1074, 32
        %v1220 = vpop.permute.xlu0 %1219
        %1221 = vrot.lane.b32.xlu0 %v1075, 32
        %v1222 = vpop.permute.xlu0 %1221
        %1223 = vrot.lane.b32.xlu0 %v1076, 32
        %v1224 = vpop.permute.xlu0 %1223
        %1225 = vrot.lane.b32.xlu0 %v1077, 32
        %v1226 = vpop.permute.xlu0 %1225
        %1227 = vrot.lane.b32.xlu0 %v1078, 32
        %v1228 = vpop.permute.xlu0 %1227
        %1229 = vrot.lane.b32.xlu0 %v1079, 32
        %v1230 = vpop.permute.xlu0 %1229
        %1231 = vrot.lane.b32.xlu0 %v1080, 32
        %v1232 = vpop.permute.xlu0 %1231
        %1233 = vrot.lane.b32.xlu0 %v1081, 32
        %v1234 = vpop.permute.xlu0 %1233
        %1235 = vrot.lane.b32.xlu0 %v1082, 32
        %v1236 = vpop.permute.xlu0 %1235
        %1237 = vrot.lane.b32.xlu0 %v1083, 32
        %v1238 = vpop.permute.xlu0 %1237
        %1239 = vrot.lane.b32.xlu0 %v1084, 32
        %v1240 = vpop.permute.xlu0 %1239
        %1241 = vrot.lane.b32.xlu0 %v1085, 32
        %v1242 = vpop.permute.xlu0 %1241
        %1243 = vrot.lane.b32.xlu0 %v1086, 32
        %v1244 = vpop.permute.xlu0 %1243
        %1245 = vrot.lane.b32.xlu0 %v1087, 32
        %v1246 = vpop.permute.xlu0 %1245
        %1247 = vrot.lane.b32.xlu0 %v1088, 32
        %v1248 = vpop.permute.xlu0 %1247
        %1249 = vrot.lane.b32.xlu0 %v1089, 32
        %v1250 = vpop.permute.xlu0 %1249
        %1315 = vrot.lane.b32.xlu0 %v1091, 64
        %v1316 = vpop.permute.xlu0 %1315
        %1317 = vrot.lane.b32.xlu0 %v1092, 64
        %v1318 = vpop.permute.xlu0 %1317
        %1319 = vrot.lane.b32.xlu0 %v1093, 64
        %v1320 = vpop.permute.xlu0 %1319
        %1321 = vrot.lane.b32.xlu0 %v1094, 64
        %v1322 = vpop.permute.xlu0 %1321
        %1323 = vrot.lane.b32.xlu0 %v1095, 64
        %v1324 = vpop.permute.xlu0 %1323
        %1325 = vrot.lane.b32.xlu0 %v1096, 64
        %v1326 = vpop.permute.xlu0 %1325
        %1327 = vrot.lane.b32.xlu0 %v1097, 64
        %v1328 = vpop.permute.xlu0 %1327
        %1329 = vrot.lane.b32.xlu0 %v1098, 64
        %v1330 = vpop.permute.xlu0 %1329
        %1331 = vrot.lane.b32.xlu0 %v1099, 64
        %v1332 = vpop.permute.xlu0 %1331
        %1333 = vrot.lane.b32.xlu0 %v1100, 64
        %v1334 = vpop.permute.xlu0 %1333
        %1335 = vrot.lane.b32.xlu0 %v1101, 64
        %v1336 = vpop.permute.xlu0 %1335
        %1337 = vrot.lane.b32.xlu0 %v1102, 64
        %v1338 = vpop.permute.xlu0 %1337
        %1339 = vrot.lane.b32.xlu0 %v1103, 64
        %v1340 = vpop.permute.xlu0 %1339
        %1341 = vrot.lane.b32.xlu0 %v1104, 64
        %v1342 = vpop.permute.xlu0 %1341
        %1343 = vrot.lane.b32.xlu0 %v1105, 64
        %v1344 = vpop.permute.xlu0 %1343
        %1345 = vrot.lane.b32.xlu0 %v1106, 64
        %v1346 = vpop.permute.xlu0 %1345
        %1347 = vrot.lane.b32.xlu0 %v1107, 64
        %v1348 = vpop.permute.xlu0 %1347
        %1349 = vrot.lane.b32.xlu0 %v1108, 64
        %v1350 = vpop.permute.xlu0 %1349
        %1351 = vrot.lane.b32.xlu0 %v1109, 64
        %v1352 = vpop.permute.xlu0 %1351
        %1353 = vrot.lane.b32.xlu0 %v1110, 64
        %v1354 = vpop.permute.xlu0 %1353
        %1355 = vrot.lane.b32.xlu0 %v1111, 64
        %v1356 = vpop.permute.xlu0 %1355
        %1357 = vrot.lane.b32.xlu0 %v1112, 64
        %v1358 = vpop.permute.xlu0 %1357
        %1359 = vrot.lane.b32.xlu0 %v1113, 64
        %v1360 = vpop.permute.xlu0 %1359
        %1361 = vrot.lane.b32.xlu0 %v1114, 64
        %v1362 = vpop.permute.xlu0 %1361
        %1363 = vrot.lane.b32.xlu0 %v1115, 64
        %v1364 = vpop.permute.xlu0 %1363
        %1365 = vrot.lane.b32.xlu0 %v1116, 64
        %v1366 = vpop.permute.xlu0 %1365
        %1367 = vrot.lane.b32.xlu0 %v1117, 64
        %v1368 = vpop.permute.xlu0 %1367
        %1369 = vrot.lane.b32.xlu0 %v1118, 64
        %v1370 = vpop.permute.xlu0 %1369
        %1371 = vrot.lane.b32.xlu0 %v1119, 64
        %v1372 = vpop.permute.xlu0 %1371
        %1373 = vrot.lane.b32.xlu0 %v1120, 64
        %v1374 = vpop.permute.xlu0 %1373
        %1375 = vrot.lane.b32.xlu0 %v1121, 64
        %v1376 = vpop.permute.xlu0 %1375
        %1377 = vrot.lane.b32.xlu0 %v1122, 64
        %v1378 = vpop.permute.xlu0 %1377
        %1443 = vrot.lane.b32.xlu0 %v1123, 96
        %v1444 = vpop.permute.xlu0 %1443
        %1445 = vrot.lane.b32.xlu0 %v1124, 96
        %v1446 = vpop.permute.xlu0 %1445
        %1447 = vrot.lane.b32.xlu0 %v1125, 96
        %v1448 = vpop.permute.xlu0 %1447
        %1449 = vrot.lane.b32.xlu0 %v1126, 96
        %v1450 = vpop.permute.xlu0 %1449
        %1451 = vrot.lane.b32.xlu0 %v1127, 96
        %v1452 = vpop.permute.xlu0 %1451
        %1453 = vrot.lane.b32.xlu0 %v1128, 96
        %v1454 = vpop.permute.xlu0 %1453
        %1455 = vrot.lane.b32.xlu0 %v1129, 96
        %v1456 = vpop.permute.xlu0 %1455
        %1457 = vrot.lane.b32.xlu0 %v1130, 96
        %v1458 = vpop.permute.xlu0 %1457
        %1459 = vrot.lane.b32.xlu0 %v1131, 96
        %v1460 = vpop.permute.xlu0 %1459
        %1461 = vrot.lane.b32.xlu0 %v1132, 96
        %v1462 = vpop.permute.xlu0 %1461
        %1463 = vrot.lane.b32.xlu0 %v1133, 96
        %v1464 = vpop.permute.xlu0 %1463
        %1465 = vrot.lane.b32.xlu0 %v1134, 96
        %v1466 = vpop.permute.xlu0 %1465
        %1467 = vrot.lane.b32.xlu0 %v1135, 96
        %v1468 = vpop.permute.xlu0 %1467
        %1469 = vrot.lane.b32.xlu0 %v1136, 96
        %v1470 = vpop.permute.xlu0 %1469
        %1471 = vrot.lane.b32.xlu0 %v1137, 96
        %v1472 = vpop.permute.xlu0 %1471
        %1473 = vrot.lane.b32.xlu0 %v1138, 96
        %v1474 = vpop.permute.xlu0 %1473
        %1475 = vrot.lane.b32.xlu0 %v1139, 96
        %v1476 = vpop.permute.xlu0 %1475
        %1477 = vrot.lane.b32.xlu0 %v1140, 96
        %v1478 = vpop.permute.xlu0 %1477
        %1479 = vrot.lane.b32.xlu0 %v1141, 96
        %v1480 = vpop.permute.xlu0 %1479
        %1481 = vrot.lane.b32.xlu0 %v1142, 96
        %v1482 = vpop.permute.xlu0 %1481
        %1483 = vrot.lane.b32.xlu0 %v1143, 96
        %v1484 = vpop.permute.xlu0 %1483
        %1485 = vrot.lane.b32.xlu0 %v1144, 96
        %v1486 = vpop.permute.xlu0 %1485
        %1487 = vrot.lane.b32.xlu0 %v1145, 96
        %v1488 = vpop.permute.xlu0 %1487
        %1489 = vrot.lane.b32.xlu0 %v1146, 96
        %v1490 = vpop.permute.xlu0 %1489
        %1491 = vrot.lane.b32.xlu0 %v1147, 96
        %v1492 = vpop.permute.xlu0 %1491
        %1493 = vrot.lane.b32.xlu0 %v1148, 96
        %v1494 = vpop.permute.xlu0 %1493
        %1495 = vrot.lane.b32.xlu0 %v1149, 96
        %v1496 = vpop.permute.xlu0 %1495
        %1497 = vrot.lane.b32.xlu0 %v1150, 96
        %v1498 = vpop.permute.xlu0 %1497
        %1499 = vrot.lane.b32.xlu0 %v1151, 96
        %v1500 = vpop.permute.xlu0 %1499
        %1501 = vrot.lane.b32.xlu0 %v1152, 96
        %v1502 = vpop.permute.xlu0 %1501
        %1503 = vrot.lane.b32.xlu0 %v1153, 96
        %v1504 = vpop.permute.xlu0 %1503
        %1505 = vrot.lane.b32.xlu0 %v1154, 96
        %v1506 = vpop.permute.xlu0 %1505
        %v1539 = vsel %vm277, %v1026, %v1188
        %v1540 = vsel %vm277, %v1027, %v1190
        %v1541 = vsel %vm277, %v1028, %v1192
        %v1542 = vsel %vm277, %v1029, %v1194
        %v1543 = vsel %vm277, %v1030, %v1196
        %v1544 = vsel %vm277, %v1031, %v1198
        %v1545 = vsel %vm277, %v1032, %v1200
        %v1546 = vsel %vm277, %v1033, %v1202
        %v1547 = vsel %vm277, %v1034, %v1204
        %v1548 = vsel %vm277, %v1035, %v1206
        %v1549 = vsel %vm277, %v1036, %v1208
        %v1550 = vsel %vm277, %v1037, %v1210
        %v1551 = vsel %vm277, %v1038, %v1212
        %v1552 = vsel %vm277, %v1039, %v1214
        %v1553 = vsel %vm277, %v1040, %v1216
        %v1554 = vsel %vm277, %v1041, %v1218
        %v1555 = vsel %vm277, %v1042, %v1220
        %v1556 = vsel %vm277, %v1043, %v1222
        %v1557 = vsel %vm277, %v1044, %v1224
        %v1558 = vsel %vm277, %v1045, %v1226
        %v1559 = vsel %vm277, %v1046, %v1228
        %v1560 = vsel %vm277, %v1047, %v1230
        %v1561 = vsel %vm277, %v1048, %v1232
        %v1562 = vsel %vm277, %v1049, %v1234
        %v1563 = vsel %vm277, %v1050, %v1236
        %v1564 = vsel %vm277, %v1051, %v1238
        %v1565 = vsel %vm277, %v1052, %v1240
        %v1566 = vsel %vm277, %v1053, %v1242
        %v1567 = vsel %vm277, %v1054, %v1244
        %v1568 = vsel %vm277, %v1055, %v1246
        %v1569 = vsel %vm277, %v1056, %v1248
        %v1570 = vsel %vm277, %v1057, %v1250
        %v1571 = vsel %vm928, %v1539, %v1316
        %v1572 = vsel %vm928, %v1540, %v1318
        %v1573 = vsel %vm928, %v1541, %v1320
        %v1574 = vsel %vm928, %v1542, %v1322
        %v1575 = vsel %vm928, %v1543, %v1324
        %v1576 = vsel %vm928, %v1544, %v1326
        %v1577 = vsel %vm928, %v1545, %v1328
        %v1578 = vsel %vm928, %v1546, %v1330
        %v1579 = vsel %vm928, %v1547, %v1332
        %v1580 = vsel %vm928, %v1548, %v1334
        %v1581 = vsel %vm928, %v1549, %v1336
        %v1582 = vsel %vm928, %v1550, %v1338
        %v1583 = vsel %vm928, %v1551, %v1340
        %v1584 = vsel %vm928, %v1552, %v1342
        %v1585 = vsel %vm928, %v1553, %v1344
        %v1586 = vsel %vm928, %v1554, %v1346
        %v1587 = vsel %vm928, %v1555, %v1348
        %v1588 = vsel %vm928, %v1556, %v1350
        %v1589 = vsel %vm928, %v1557, %v1352
        %v1590 = vsel %vm928, %v1558, %v1354
        %v1591 = vsel %vm928, %v1559, %v1356
        %v1592 = vsel %vm928, %v1560, %v1358
        %v1593 = vsel %vm928, %v1561, %v1360
        %v1594 = vsel %vm928, %v1562, %v1362
        %v1595 = vsel %vm928, %v1563, %v1364
        %v1596 = vsel %vm928, %v1564, %v1366
        %v1597 = vsel %vm928, %v1565, %v1368
        %v1598 = vsel %vm928, %v1566, %v1370
        %v1599 = vsel %vm928, %v1567, %v1372
        %v1600 = vsel %vm928, %v1568, %v1374
        %v1601 = vsel %vm928, %v1569, %v1376
        %v1602 = vsel %vm928, %v1570, %v1378
        %v1603 = vsel %vm961, %v1571, %v1444
        %v1604 = vsel %vm961, %v1572, %v1446
        %v1605 = vsel %vm961, %v1573, %v1448
        %v1606 = vsel %vm961, %v1574, %v1450
        %v1607 = vsel %vm961, %v1575, %v1452
        %v1608 = vsel %vm961, %v1576, %v1454
        %v1609 = vsel %vm961, %v1577, %v1456
        %v1610 = vsel %vm961, %v1578, %v1458
        %v1611 = vsel %vm961, %v1579, %v1460
        %v1612 = vsel %vm961, %v1580, %v1462
        %v1613 = vsel %vm961, %v1581, %v1464
        %v1614 = vsel %vm961, %v1582, %v1466
        %v1615 = vsel %vm961, %v1583, %v1468
        %v1616 = vsel %vm961, %v1584, %v1470
        %v1617 = vsel %vm961, %v1585, %v1472
        %v1618 = vsel %vm961, %v1586, %v1474
        %v1619 = vsel %vm961, %v1587, %v1476
        %v1620 = vsel %vm961, %v1588, %v1478
        %v1621 = vsel %vm961, %v1589, %v1480
        %v1622 = vsel %vm961, %v1590, %v1482
        %v1623 = vsel %vm961, %v1591, %v1484
        %v1624 = vsel %vm961, %v1592, %v1486
        %v1625 = vsel %vm961, %v1593, %v1488
        %v1626 = vsel %vm961, %v1594, %v1490
        %v1627 = vsel %vm961, %v1595, %v1492
        %v1628 = vsel %vm961, %v1596, %v1494
        %v1629 = vsel %vm961, %v1597, %v1496
        %v1630 = vsel %vm961, %v1598, %v1498
        %v1631 = vsel %vm961, %v1599, %v1500
        %v1632 = vsel %vm961, %v1600, %v1502
        %v1633 = vsel %vm961, %v1601, %v1504
        %v1634 = vsel %vm961, %v1602, %v1506
        %1635 = vst [vmem:[#allocation3 + $0x8] sm:$0xff] %v1603
        %1636 = vst [vmem:[#allocation3 + $0x20] sm:$0xff] %v1604
        %1637 = vst [vmem:[#allocation3 + $0x38] sm:$0xff] %v1605
        %1638 = vst [vmem:[#allocation3 + $0x50] sm:$0xff] %v1606
        %1639 = vst [vmem:[#allocation3 + $0x68] sm:$0xff] %v1607
        %1640 = vst [vmem:[#allocation3 + $0x80] sm:$0xff] %v1608
        %1641 = vst [vmem:[#allocation3 + $0x98] sm:$0xff] %v1609
        %1642 = vst [vmem:[#allocation3 + $0xb0] sm:$0xff] %v1610
        %1643 = vst [vmem:[#allocation3 + $0xc8] sm:$0xff] %v1611
        %1644 = vst [vmem:[#allocation3 + $0xe0] sm:$0xff] %v1612
        %1645 = vst [vmem:[#allocation3 + $0xf8] sm:$0xff] %v1613
        %1646 = vst [vmem:[#allocation3 + $0x110] sm:$0xff] %v1614
        %1647 = vst [vmem:[#allocation3 + $0x128] sm:$0xff] %v1615
        %1648 = vst [vmem:[#allocation3 + $0x140] sm:$0xff] %v1616
        %1649 = vst [vmem:[#allocation3 + $0x158] sm:$0xff] %v1617
        %1650 = vst [vmem:[#allocation3 + $0x170] sm:$0xff] %v1618
        %1651 = vst [vmem:[#allocation3 + $0x188] sm:$0xff] %v1619
        %1652 = vst [vmem:[#allocation3 + $0x1a0] sm:$0xff] %v1620
        %1653 = vst [vmem:[#allocation3 + $0x1b8] sm:$0xff] %v1621
        %1654 = vst [vmem:[#allocation3 + $0x1d0] sm:$0xff] %v1622
        %1655 = vst [vmem:[#allocation3 + $0x1e8] sm:$0xff] %v1623
        %1656 = vst [vmem:[#allocation3 + $0x200] sm:$0xff] %v1624
        %1657 = vst [vmem:[#allocation3 + $0x218] sm:$0xff] %v1625
        %1658 = vst [vmem:[#allocation3 + $0x230] sm:$0xff] %v1626
        %1659 = vst [vmem:[#allocation3 + $0x248] sm:$0xff] %v1627
        %1660 = vst [vmem:[#allocation3 + $0x260] sm:$0xff] %v1628
        %1661 = vst [vmem:[#allocation3 + $0x278] sm:$0xff] %v1629
        %1662 = vst [vmem:[#allocation3 + $0x290] sm:$0xff] %v1630
        %1663 = vst [vmem:[#allocation3 + $0x2a8] sm:$0xff] %v1631
        %1664 = vst [vmem:[#allocation3 + $0x2c0] sm:$0xff] %v1632
        %1665 = vst [vmem:[#allocation3 + $0x2d8] sm:$0xff] %v1633
        %1666 = vst [vmem:[#allocation3 + $0x2f0] sm:$0xff] %v1634
        %v1667 = vld [vmem:[%s1090 + $0x2] sm:$0xff]
        %v1668 = vld [vmem:[%s1090 + $0xa] sm:$0xff]
        %v1669 = vld [vmem:[%s1090 + $0x1a] sm:$0xff]
        %v1670 = vld [vmem:[%s1090 + $0x22] sm:$0xff]
        %v1671 = vld [vmem:[%s1090 + $0x32] sm:$0xff]
        %v1672 = vld [vmem:[%s1090 + $0x3a] sm:$0xff]
        %v1673 = vld [vmem:[%s1090 + $0x4a] sm:$0xff]
        %v1674 = vld [vmem:[%s1090 + $0x52] sm:$0xff]
        %v1675 = vld [vmem:[%s1090 + $0x62] sm:$0xff]
        %v1676 = vld [vmem:[%s1090 + $0x6a] sm:$0xff]
        %v1677 = vld [vmem:[%s1090 + $0x7a] sm:$0xff]
        %v1678 = vld [vmem:[%s1090 + $0x82] sm:$0xff]
        %v1679 = vld [vmem:[%s1090 + $0x92] sm:$0xff]
        %v1680 = vld [vmem:[%s1090 + $0x9a] sm:$0xff]
        %v1681 = vld [vmem:[%s1090 + $0xaa] sm:$0xff]
        %v1682 = vld [vmem:[%s1090 + $0xb2] sm:$0xff]
        %v1683 = vld [vmem:[%s1090 + $0xc2] sm:$0xff]
        %v1684 = vld [vmem:[%s1090 + $0xca] sm:$0xff]
        %v1685 = vld [vmem:[%s1090 + $0xda] sm:$0xff]
        %v1686 = vld [vmem:[%s1090 + $0xe2] sm:$0xff]
        %v1687 = vld [vmem:[%s1090 + $0xf2] sm:$0xff]
        %v1688 = vld [vmem:[%s1090 + $0xfa] sm:$0xff]
        %v1689 = vld [vmem:[%s1090 + $0x10a] sm:$0xff]
        %v1690 = vld [vmem:[%s1090 + $0x112] sm:$0xff]
        %v1691 = vld [vmem:[%s1090 + $0x122] sm:$0xff]
        %v1692 = vld [vmem:[%s1090 + $0x12a] sm:$0xff]
        %v1693 = vld [vmem:[%s1090 + $0x13a] sm:$0xff]
        %v1694 = vld [vmem:[%s1090 + $0x142] sm:$0xff]
        %v1695 = vld [vmem:[%s1090 + $0x152] sm:$0xff]
        %v1696 = vld [vmem:[%s1090 + $0x15a] sm:$0xff]
        %v1697 = vld [vmem:[%s1090 + $0x16a] sm:$0xff]
        %v1698 = vld [vmem:[%s1090 + $0x172] sm:$0xff]
        %v1699 = vsel %vm277, %v1667, 0.0
        %v1700 = vsel %vm277, %v1668, 0.0
        %v1701 = vsel %vm277, %v1669, 0.0
        %v1702 = vsel %vm277, %v1670, 0.0
        %v1703 = vsel %vm277, %v1671, 0.0
        %v1704 = vsel %vm277, %v1672, 0.0
        %v1705 = vsel %vm277, %v1673, 0.0
        %v1706 = vsel %vm277, %v1674, 0.0
        %v1707 = vsel %vm277, %v1675, 0.0
        %v1708 = vsel %vm277, %v1676, 0.0
        %v1709 = vsel %vm277, %v1677, 0.0
        %v1710 = vsel %vm277, %v1678, 0.0
        %v1711 = vsel %vm277, %v1679, 0.0
        %v1712 = vsel %vm277, %v1680, 0.0
        %v1713 = vsel %vm277, %v1681, 0.0
        %v1714 = vsel %vm277, %v1682, 0.0
        %v1715 = vsel %vm277, %v1683, 0.0
        %v1716 = vsel %vm277, %v1684, 0.0
        %v1717 = vsel %vm277, %v1685, 0.0
        %v1718 = vsel %vm277, %v1686, 0.0
        %v1719 = vsel %vm277, %v1687, 0.0
        %v1720 = vsel %vm277, %v1688, 0.0
        %v1721 = vsel %vm277, %v1689, 0.0
        %v1722 = vsel %vm277, %v1690, 0.0
        %v1723 = vsel %vm277, %v1691, 0.0
        %v1724 = vsel %vm277, %v1692, 0.0
        %v1725 = vsel %vm277, %v1693, 0.0
        %v1726 = vsel %vm277, %v1694, 0.0
        %v1727 = vsel %vm277, %v1695, 0.0
        %v1728 = vsel %vm277, %v1696, 0.0
        %v1729 = vsel %vm277, %v1697, 0.0
        %v1730 = vsel %vm277, %v1698, 0.0
        %1731 = vst [vmem:[#allocation3 + $0x10] sm:$0xff] %v1699
        %1732 = vst [vmem:[#allocation3 + $0x28] sm:$0xff] %v1700
        %1733 = vst [vmem:[#allocation3 + $0x40] sm:$0xff] %v1701
        %1734 = vst [vmem:[#allocation3 + $0x58] sm:$0xff] %v1702
        %1735 = vst [vmem:[#allocation3 + $0x70] sm:$0xff] %v1703
        %1736 = vst [vmem:[#allocation3 + $0x88] sm:$0xff] %v1704
        %1737 = vst [vmem:[#allocation3 + $0xa0] sm:$0xff] %v1705
        %1738 = vst [vmem:[#allocation3 + $0xb8] sm:$0xff] %v1706
        %1739 = vst [vmem:[#allocation3 + $0xd0] sm:$0xff] %v1707
        %1740 = vst [vmem:[#allocation3 + $0xe8] sm:$0xff] %v1708
        %1741 = vst [vmem:[#allocation3 + $0x100] sm:$0xff] %v1709
        %1742 = vst [vmem:[#allocation3 + $0x118] sm:$0xff] %v1710
        %1743 = vst [vmem:[#allocation3 + $0x130] sm:$0xff] %v1711
        %1744 = vst [vmem:[#allocation3 + $0x148] sm:$0xff] %v1712
        %1745 = vst [vmem:[#allocation3 + $0x160] sm:$0xff] %v1713
        %1746 = vst [vmem:[#allocation3 + $0x178] sm:$0xff] %v1714
        %1747 = vst [vmem:[#allocation3 + $0x190] sm:$0xff] %v1715
        %1748 = vst [vmem:[#allocation3 + $0x1a8] sm:$0xff] %v1716
        %1749 = vst [vmem:[#allocation3 + $0x1c0] sm:$0xff] %v1717
        %1750 = vst [vmem:[#allocation3 + $0x1d8] sm:$0xff] %v1718
        %1751 = vst [vmem:[#allocation3 + $0x1f0] sm:$0xff] %v1719
        %1752 = vst [vmem:[#allocation3 + $0x208] sm:$0xff] %v1720
        %1753 = vst [vmem:[#allocation3 + $0x220] sm:$0xff] %v1721
        %1754 = vst [vmem:[#allocation3 + $0x238] sm:$0xff] %v1722
        %1755 = vst [vmem:[#allocation3 + $0x250] sm:$0xff] %v1723
        %1756 = vst [vmem:[#allocation3 + $0x268] sm:$0xff] %v1724
        %1757 = vst [vmem:[#allocation3 + $0x280] sm:$0xff] %v1725
        %1758 = vst [vmem:[#allocation3 + $0x298] sm:$0xff] %v1726
        %1759 = vst [vmem:[#allocation3 + $0x2b0] sm:$0xff] %v1727
        %1760 = vst [vmem:[#allocation3 + $0x2c8] sm:$0xff] %v1728
        %1761 = vst [vmem:[#allocation3 + $0x2e0] sm:$0xff] %v1729
        %1762 = vst [vmem:[#allocation3 + $0x2f8] sm:$0xff] %v1730
        %v1763 = vld [vmem:[#allocation3] sm:$0xff]
        %v1764 = vld [vmem:[#allocation3 + $0x8] sm:$0xff]
        %v1765 = vld [vmem:[#allocation3 + $0x10] sm:$0xff]
        %v1766 = vld [vmem:[#allocation3 + $0x18] sm:$0xff]
        %v1767 = vld [vmem:[#allocation3 + $0x20] sm:$0xff]
        %v1768 = vld [vmem:[#allocation3 + $0x28] sm:$0xff]
        %v1769 = vld [vmem:[#allocation3 + $0x30] sm:$0xff]
        %v1770 = vld [vmem:[#allocation3 + $0x38] sm:$0xff]
        %v1771 = vld [vmem:[#allocation3 + $0x40] sm:$0xff]
        %v1772 = vld [vmem:[#allocation3 + $0x48] sm:$0xff]
        %v1773 = vld [vmem:[#allocation3 + $0x50] sm:$0xff]
        %v1774 = vld [vmem:[#allocation3 + $0x58] sm:$0xff]
        %v1775 = vld [vmem:[#allocation3 + $0x60] sm:$0xff]
        %v1776 = vld [vmem:[#allocation3 + $0x68] sm:$0xff]
        %v1777 = vld [vmem:[#allocation3 + $0x70] sm:$0xff]
        %v1778 = vld [vmem:[#allocation3 + $0x78] sm:$0xff]
        %v1779 = vld [vmem:[#allocation3 + $0x80] sm:$0xff]
        %v1780 = vld [vmem:[#allocation3 + $0x88] sm:$0xff]
        %v1781 = vld [vmem:[#allocation3 + $0x90] sm:$0xff]
        %v1782 = vld [vmem:[#allocation3 + $0x98] sm:$0xff]
        %v1783 = vld [vmem:[#allocation3 + $0xa0] sm:$0xff]
        %v1784 = vld [vmem:[#allocation3 + $0xa8] sm:$0xff]
        %v1785 = vld [vmem:[#allocation3 + $0xb0] sm:$0xff]
        %v1786 = vld [vmem:[#allocation3 + $0xb8] sm:$0xff]
        %v1787 = vld [vmem:[#allocation3 + $0xc0] sm:$0xff]
        %v1788 = vld [vmem:[#allocation3 + $0xc8] sm:$0xff]
        %v1789 = vld [vmem:[#allocation3 + $0xd0] sm:$0xff]
        %v1790 = vld [vmem:[#allocation3 + $0xd8] sm:$0xff]
        %v1791 = vld [vmem:[#allocation3 + $0xe0] sm:$0xff]
        %v1792 = vld [vmem:[#allocation3 + $0xe8] sm:$0xff]
        %v1793 = vld [vmem:[#allocation3 + $0xf0] sm:$0xff]
        %v1794 = vld [vmem:[#allocation3 + $0xf8] sm:$0xff]
        %v1795 = vld [vmem:[#allocation3 + $0x100] sm:$0xff]
        %v1796 = vld [vmem:[#allocation3 + $0x108] sm:$0xff]
        %v1797 = vld [vmem:[#allocation3 + $0x110] sm:$0xff]
        %v1798 = vld [vmem:[#allocation3 + $0x118] sm:$0xff]
        %v1799 = vld [vmem:[#allocation3 + $0x120] sm:$0xff]
        %v1800 = vld [vmem:[#allocation3 + $0x128] sm:$0xff]
        %v1801 = vld [vmem:[#allocation3 + $0x130] sm:$0xff]
        %v1802 = vld [vmem:[#allocation3 + $0x138] sm:$0xff]
        %v1803 = vld [vmem:[#allocation3 + $0x140] sm:$0xff]
        %v1804 = vld [vmem:[#allocation3 + $0x148] sm:$0xff]
        %v1805 = vld [vmem:[#allocation3 + $0x150] sm:$0xff]
        %v1806 = vld [vmem:[#allocation3 + $0x158] sm:$0xff]
        %v1807 = vld [vmem:[#allocation3 + $0x160] sm:$0xff]
        %v1808 = vld [vmem:[#allocation3 + $0x168] sm:$0xff]
        %v1809 = vld [vmem:[#allocation3 + $0x170] sm:$0xff]
        %v1810 = vld [vmem:[#allocation3 + $0x178] sm:$0xff]
        %v1811 = vld [vmem:[#allocation3 + $0x180] sm:$0xff]
        %v1812 = vld [vmem:[#allocation3 + $0x188] sm:$0xff]
        %v1813 = vld [vmem:[#allocation3 + $0x190] sm:$0xff]
        %v1814 = vld [vmem:[#allocation3 + $0x198] sm:$0xff]
        %v1815 = vld [vmem:[#allocation3 + $0x1a0] sm:$0xff]
        %v1816 = vld [vmem:[#allocation3 + $0x1a8] sm:$0xff]
        %v1817 = vld [vmem:[#allocation3 + $0x1b0] sm:$0xff]
        %v1818 = vld [vmem:[#allocation3 + $0x1b8] sm:$0xff]
        %v1819 = vld [vmem:[#allocation3 + $0x1c0] sm:$0xff]
        %v1820 = vld [vmem:[#allocation3 + $0x1c8] sm:$0xff]
        %v1821 = vld [vmem:[#allocation3 + $0x1d0] sm:$0xff]
        %v1822 = vld [vmem:[#allocation3 + $0x1d8] sm:$0xff]
        %v1823 = vld [vmem:[#allocation3 + $0x1e0] sm:$0xff]
        %v1824 = vld [vmem:[#allocation3 + $0x1e8] sm:$0xff]
        %v1825 = vld [vmem:[#allocation3 + $0x1f0] sm:$0xff]
        %v1826 = vld [vmem:[#allocation3 + $0x1f8] sm:$0xff]
        %v1827 = vld [vmem:[#allocation3 + $0x200] sm:$0xff]
        %v1828 = vld [vmem:[#allocation3 + $0x208] sm:$0xff]
        %v1829 = vld [vmem:[#allocation3 + $0x210] sm:$0xff]
        %v1830 = vld [vmem:[#allocation3 + $0x218] sm:$0xff]
        %v1831 = vld [vmem:[#allocation3 + $0x220] sm:$0xff]
        %v1832 = vld [vmem:[#allocation3 + $0x228] sm:$0xff]
        %v1833 = vld [vmem:[#allocation3 + $0x230] sm:$0xff]
        %v1834 = vld [vmem:[#allocation3 + $0x238] sm:$0xff]
        %v1835 = vld [vmem:[#allocation3 + $0x240] sm:$0xff]
        %v1836 = vld [vmem:[#allocation3 + $0x248] sm:$0xff]
        %v1837 = vld [vmem:[#allocation3 + $0x250] sm:$0xff]
        %v1838 = vld [vmem:[#allocation3 + $0x258] sm:$0xff]
        %v1839 = vld [vmem:[#allocation3 + $0x260] sm:$0xff]
        %v1840 = vld [vmem:[#allocation3 + $0x268] sm:$0xff]
        %v1841 = vld [vmem:[#allocation3 + $0x270] sm:$0xff]
        %v1842 = vld [vmem:[#allocation3 + $0x278] sm:$0xff]
        %v1843 = vld [vmem:[#allocation3 + $0x280] sm:$0xff]
        %v1844 = vld [vmem:[#allocation3 + $0x288] sm:$0xff]
        %v1845 = vld [vmem:[#allocation3 + $0x290] sm:$0xff]
        %v1846 = vld [vmem:[#allocation3 + $0x298] sm:$0xff]
        %v1847 = vld [vmem:[#allocation3 + $0x2a0] sm:$0xff]
        %v1848 = vld [vmem:[#allocation3 + $0x2a8] sm:$0xff]
        %v1849 = vld [vmem:[#allocation3 + $0x2b0] sm:$0xff]
        %v1850 = vld [vmem:[#allocation3 + $0x2b8] sm:$0xff]
        %v1851 = vld [vmem:[#allocation3 + $0x2c0] sm:$0xff]
        %v1852 = vld [vmem:[#allocation3 + $0x2c8] sm:$0xff]
        %v1853 = vld [vmem:[#allocation3 + $0x2d0] sm:$0xff]
        %v1854 = vld [vmem:[#allocation3 + $0x2d8] sm:$0xff]
        %v1855 = vld [vmem:[#allocation3 + $0x2e0] sm:$0xff]
        %v1856 = vld [vmem:[#allocation3 + $0x2e8] sm:$0xff]
        %v1857 = vld [vmem:[#allocation3 + $0x2f0] sm:$0xff]
        %v1858 = vld [vmem:[#allocation3 + $0x2f8] sm:$0xff]
        %v1859 = vld [vmem:[%s1] sm:$0xff]
        %v1860 = vld [vmem:[%s1 + $0x8] sm:$0xff]
        %v1861 = vld [vmem:[%s1 + $0x10] sm:$0xff]
        %v1862 = vld [vmem:[%s1 + $0x18] sm:$0xff]
        %v1863 = vld [vmem:[%s1 + $0x20] sm:$0xff]
        %v1864 = vld [vmem:[%s1 + $0x28] sm:$0xff]
        %v1865 = vld [vmem:[%s1 + $0x30] sm:$0xff]
        %v1866 = vld [vmem:[%s1 + $0x38] sm:$0xff]
        %v1867 = vld [vmem:[%s1 + $0x40] sm:$0xff]
        %v1868 = vld [vmem:[%s1 + $0x48] sm:$0xff]
        %v1869 = vld [vmem:[%s1 + $0x50] sm:$0xff]
        %v1870 = vld [vmem:[%s1 + $0x58] sm:$0xff]
        %v1871 = vld [vmem:[%s1 + $0x60] sm:$0xff]
        %v1872 = vld [vmem:[%s1 + $0x68] sm:$0xff]
        %v1873 = vld [vmem:[%s1 + $0x70] sm:$0xff]
        %v1874 = vld [vmem:[%s1 + $0x78] sm:$0xff]
        %v1875 = vld [vmem:[%s1 + $0x80] sm:$0xff]
        %v1876 = vld [vmem:[%s1 + $0x88] sm:$0xff]
        %v1877 = vld [vmem:[%s1 + $0x90] sm:$0xff]
        %v1878 = vld [vmem:[%s1 + $0x98] sm:$0xff]
        %v1879 = vld [vmem:[%s1 + $0xa0] sm:$0xff]
        %v1880 = vld [vmem:[%s1 + $0xa8] sm:$0xff]
        %v1881 = vld [vmem:[%s1 + $0xb0] sm:$0xff]
        %v1882 = vld [vmem:[%s1 + $0xb8] sm:$0xff]
        %v1883 = vld [vmem:[%s1 + $0xc0] sm:$0xff]
        %v1884 = vld [vmem:[%s1 + $0xc8] sm:$0xff]
        %v1885 = vld [vmem:[%s1 + $0xd0] sm:$0xff]
        %v1886 = vld [vmem:[%s1 + $0xd8] sm:$0xff]
        %v1887 = vld [vmem:[%s1 + $0xe0] sm:$0xff]
        %v1888 = vld [vmem:[%s1 + $0xe8] sm:$0xff]
        %v1889 = vld [vmem:[%s1 + $0xf0] sm:$0xff]
        %v1890 = vld [vmem:[%s1 + $0xf8] sm:$0xff]
        %v1891 = vld [vmem:[%s1 + $0x100] sm:$0xff]
        %v1892 = vld [vmem:[%s1 + $0x108] sm:$0xff]
        %v1893 = vld [vmem:[%s1 + $0x110] sm:$0xff]
        %v1894 = vld [vmem:[%s1 + $0x118] sm:$0xff]
        %v1895 = vld [vmem:[%s1 + $0x120] sm:$0xff]
        %v1896 = vld [vmem:[%s1 + $0x128] sm:$0xff]
        %v1897 = vld [vmem:[%s1 + $0x130] sm:$0xff]
        %v1898 = vld [vmem:[%s1 + $0x138] sm:$0xff]
        %v1899 = vld [vmem:[%s1 + $0x140] sm:$0xff]
        %v1900 = vld [vmem:[%s1 + $0x148] sm:$0xff]
        %v1901 = vld [vmem:[%s1 + $0x150] sm:$0xff]
        %v1902 = vld [vmem:[%s1 + $0x158] sm:$0xff]
        %v1903 = vld [vmem:[%s1 + $0x160] sm:$0xff]
        %v1904 = vld [vmem:[%s1 + $0x168] sm:$0xff]
        %v1905 = vld [vmem:[%s1 + $0x170] sm:$0xff]
        %v1906 = vld [vmem:[%s1 + $0x178] sm:$0xff]
        %v1907 = vld [vmem:[%s2] sm:$0x1]
        %v1909 = vlaneseq
        %v1910 = vshrl.u32 %v1909, 7
        %v1911 = vsub.s32 0, %v1910
        %v1912 = vrot.slane %v1907, %v1911
        %1914 = vmatprep.subr.mxu0 0.0
        %1915 = vmatpush1.msra.mxu0 %v1859
        %1916 = vmatprep.subr.mxu0 0.0
        %1917 = vmatpush1.msra.mxu0 %v1860
        %1918 = vmatprep.subr.mxu0 0.0
        %1919 = vmatpush1.msra.mxu0 %v1861
        %1920 = vmatprep.subr.mxu0 0.0
        %1921 = vmatpush1.msra.mxu0 %v1862
        %1922 = vmatprep.subr.mxu0 0.0
        %1923 = vmatpush1.msra.mxu0 %v1863
        %1924 = vmatprep.subr.mxu0 0.0
        %1925 = vmatpush1.msra.mxu0 %v1864
        %1926 = vmatprep.subr.mxu0 0.0
        %1927 = vmatpush1.msra.mxu0 %v1865
        %1928 = vmatprep.subr.mxu0 0.0
        %1929 = vmatpush1.msra.mxu0 %v1866
        %1930 = vmatprep.subr.mxu0 0.0
        %1931 = vmatpush1.msra.mxu0 %v1867
        %1932 = vmatprep.subr.mxu0 0.0
        %1933 = vmatpush1.msra.mxu0 %v1868
        %1934 = vmatprep.subr.mxu0 0.0
        %1935 = vmatpush1.msra.mxu0 %v1869
        %1936 = vmatprep.subr.mxu0 0.0
        %1937 = vmatpush1.msra.mxu0 %v1870
        %1938 = vmatprep.subr.mxu0 0.0
        %1939 = vmatpush1.msra.mxu0 %v1871
        %1940 = vmatprep.subr.mxu0 0.0
        %1941 = vmatpush1.msra.mxu0 %v1872
        %1942 = vmatprep.subr.mxu0 0.0
        %1943 = vmatpush1.msra.mxu0 %v1873
        %1944 = vmatprep.subr.mxu0 0.0
        %1945 = vmatpush1.msra.mxu0 %v1874
        %1946 = vmatprep.subr.mxu0 0.0
        %1947 = vmatpush1.msra.mxu0 %v1875
        %1948 = vmatprep.subr.mxu0 0.0
        %1949 = vmatpush1.msra.mxu0 %v1876
        %1950 = vmatprep.subr.mxu0 0.0
        %1951 = vmatpush1.msra.mxu0 %v1877
        %1952 = vmatprep.subr.mxu0 0.0
        %1953 = vmatpush1.msra.mxu0 %v1878
        %1954 = vmatprep.subr.mxu0 0.0
        %1955 = vmatpush1.msra.mxu0 %v1879
        %1956 = vmatprep.subr.mxu0 0.0
        %1957 = vmatpush1.msra.mxu0 %v1880
        %1958 = vmatprep.subr.mxu0 0.0
        %1959 = vmatpush1.msra.mxu0 %v1881
        %1960 = vmatprep.subr.mxu0 0.0
        %1961 = vmatpush1.msra.mxu0 %v1882
        %1962 = vmatprep.subr.mxu0 0.0
        %1963 = vmatpush1.msra.mxu0 %v1883
        %1964 = vmatprep.subr.mxu0 0.0
        %1965 = vmatpush1.msra.mxu0 %v1884
        %1966 = vmatprep.subr.mxu0 0.0
        %1967 = vmatpush1.msra.mxu0 %v1885
        %1968 = vmatprep.subr.mxu0 0.0
        %1969 = vmatpush1.msra.mxu0 %v1886
        %1970 = vmatprep.subr.mxu0 0.0
        %1971 = vmatpush1.msra.mxu0 %v1887
        %1972 = vmatprep.subr.mxu0 0.0
        %1973 = vmatpush1.msra.mxu0 %v1888
        %1974 = vmatprep.subr.mxu0 0.0
        %1975 = vmatpush1.msra.mxu0 %v1889
        %1976 = vmatprep.subr.mxu0 0.0
        %1977 = vmatpush1.msra.mxu0 %v1890
        %1978 = vmatprep.mubr.f32.mxu0 %v1764
        %1979 = vmatmul.mubr.f32.gmra.mrb[0].mxu0 %v1763
        %v1980 = vpop.f32.mrb[0].mxu0
        %v1981 = vadd.f32 %v1912, %v1980
        %v1982 = vpop.f32.mrb[0].mxu0
        %1983 = vmatprep.mubr.f32.mxu0 %v1767
        %1984 = vmatmul.mubr.f32.gmra.mrb[0].mxu0 %v1766
        %v1985 = vpop.f32.mrb[0].mxu0
        %v1986 = vadd.f32 %v1912, %v1985
        %v1987 = vpop.f32.mrb[0].mxu0
        %1988 = vmatprep.mubr.f32.mxu0 %v1770
        %1989 = vmatmul.mubr.f32.gmra.mrb[0].mxu0 %v1769
        %v1990 = vpop.f32.mrb[0].mxu0
        %v1991 = vadd.f32 %v1912, %v1990
        %v1992 = vpop.f32.mrb[0].mxu0
        %1993 = vmatprep.mubr.f32.mxu0 %v1773
        %1994 = vmatmul.mubr.f32.gmra.mrb[0].mxu0 %v1772
        %v1995 = vpop.f32.mrb[0].mxu0
        %v1996 = vadd.f32 %v1912, %v1995
        %v1997 = vpop.f32.mrb[0].mxu0
        %1998 = vmatprep.mubr.f32.mxu0 %v1776
        %1999 = vmatmul.mubr.f32.gmra.mrb[0].mxu0 %v1775
        %v2000 = vpop.f32.mrb[0].mxu0
        %v2001 = vadd.f32 %v1912, %v2000
        %v2002 = vpop.f32.mrb[0].mxu0
        %2003 = vmatprep.mubr.f32.mxu0 %v1779
        %2004 = vmatmul.mubr.f32.gmra.mrb[0].mxu0 %v1778
        %v2005 = vpop.f32.mrb[0].mxu0
        %v2006 = vadd.f32 %v1912, %v2005
        %v2007 = vpop.f32.mrb[0].mxu0
        %2008 = vmatprep.mubr.f32.mxu0 %v1782
        %2009 = vmatmul.mubr.f32.gmra.mrb[0].mxu0 %v1781
        %v2010 = vpop.f32.mrb[0].mxu0
        %v2011 = vadd.f32 %v1912, %v2010
        %v2012 = vpop.f32.mrb[0].mxu0
        %2013 = vmatprep.mubr.f32.mxu0 %v1785
        %2014 = vmatmul.mubr.f32.gmra.mrb[0].mxu0 %v1784
        %v2015 = vpop.f32.mrb[0].mxu0
        %v2016 = vadd.f32 %v1912, %v2015
        %v2017 = vpop.f32.mrb[0].mxu0
        %2018 = vmatprep.mubr.f32.mxu0 %v1788
        %2019 = vmatmul.mubr.f32.gmra.mrb[0].mxu0 %v1787
        %v2020 = vpop.f32.mrb[0].mxu0
        %v2021 = vadd.f32 %v1912, %v2020
        %v2022 = vpop.f32.mrb[0].mxu0
        %2023 = vmatprep.mubr.f32.mxu0 %v1791
        %2024 = vmatmul.mubr.f32.gmra.mrb[0].mxu0 %v1790
        %v2025 = vpop.f32.mrb[0].mxu0
        %v2026 = vadd.f32 %v1912, %v2025
        %v2027 = vpop.f32.mrb[0].mxu0
        %2028 = vmatprep.mubr.f32.mxu0 %v1794
        %2029 = vmatmul.mubr.f32.gmra.mrb[0].mxu0 %v1793
        %v2030 = vpop.f32.mrb[0].mxu0
        %v2031 = vadd.f32 %v1912, %v2030
        %v2032 = vpop.f32.mrb[0].mxu0
        %2033 = vmatprep.mubr.f32.mxu0 %v1797
        %2034 = vmatmul.mubr.f32.gmra.mrb[0].mxu0 %v1796
        %v2035 = vpop.f32.mrb[0].mxu0
        %v2036 = vadd.f32 %v1912, %v2035
        %v2037 = vpop.f32.mrb[0].mxu0
        %2038 = vmatprep.mubr.f32.mxu0 %v1800
        %2039 = vmatmul.mubr.f32.gmra.mrb[0].mxu0 %v1799
        %v2040 = vpop.f32.mrb[0].mxu0
        %v2041 = vadd.f32 %v1912, %v2040
        %v2042 = vpop.f32.mrb[0].mxu0
        %2043 = vmatprep.mubr.f32.mxu0 %v1803
        %2044 = vmatmul.mubr.f32.gmra.mrb[0].mxu0 %v1802
        %v2045 = vpop.f32.mrb[0].mxu0
        %v2046 = vadd.f32 %v1912, %v2045
        %v2047 = vpop.f32.mrb[0].mxu0
        %2048 = vmatprep.mubr.f32.mxu0 %v1806
        %2049 = vmatmul.mubr.f32.gmra.mrb[0].mxu0 %v1805
        %v2050 = vpop.f32.mrb[0].mxu0
        %v2051 = vadd.f32 %v1912, %v2050
        %v2052 = vpop.f32.mrb[0].mxu0
        %2053 = vmatprep.mubr.f32.mxu0 %v1809
        %2054 = vmatmul.mubr.f32.gmra.mrb[0].mxu0 %v1808
        %v2055 = vpop.f32.mrb[0].mxu0
        %v2056 = vadd.f32 %v1912, %v2055
        %v2057 = vpop.f32.mrb[0].mxu0
        %2058 = vmatprep.mubr.f32.mxu0 %v1812
        %2059 = vmatmul.mubr.f32.gmra.mrb[0].mxu0 %v1811
        %v2060 = vpop.f32.mrb[0].mxu0
        %v2061 = vadd.f32 %v1912, %v2060
        %v2062 = vpop.f32.mrb[0].mxu0
        %2063 = vmatprep.mubr.f32.mxu0 %v1815
        %2064 = vmatmul.mubr.f32.gmra.mrb[0].mxu0 %v1814
        %v2065 = vpop.f32.mrb[0].mxu0
        %v2066 = vadd.f32 %v1912, %v2065
        %v2067 = vpop.f32.mrb[0].mxu0
        %2068 = vmatprep.mubr.f32.mxu0 %v1818
        %2069 = vmatmul.mubr.f32.gmra.mrb[0].mxu0 %v1817
        %v2070 = vpop.f32.mrb[0].mxu0
        %v2071 = vadd.f32 %v1912, %v2070
        %v2072 = vpop.f32.mrb[0].mxu0
        %2073 = vmatprep.mubr.f32.mxu0 %v1821
        %2074 = vmatmul.mubr.f32.gmra.mrb[0].mxu0 %v1820
        %v2075 = vpop.f32.mrb[0].mxu0
        %v2076 = vadd.f32 %v1912, %v2075
        %v2077 = vpop.f32.mrb[0].mxu0
        %2078 = vmatprep.mubr.f32.mxu0 %v1824
        %2079 = vmatmul.mubr.f32.gmra.mrb[0].mxu0 %v1823
        %v2080 = vpop.f32.mrb[0].mxu0
        %v2081 = vadd.f32 %v1912, %v2080
        %v2082 = vpop.f32.mrb[0].mxu0
        %2083 = vmatprep.mubr.f32.mxu0 %v1827
        %2084 = vmatmul.mubr.f32.gmra.mrb[0].mxu0 %v1826
        %v2085 = vpop.f32.mrb[0].mxu0
        %v2086 = vadd.f32 %v1912, %v2085
        %v2087 = vpop.f32.mrb[0].mxu0
        %2088 = vmatprep.mubr.f32.mxu0 %v1830
        %2089 = vmatmul.mubr.f32.gmra.mrb[0].mxu0 %v1829
        %v2090 = vpop.f32.mrb[0].mxu0
        %v2091 = vadd.f32 %v1912, %v2090
        %v2092 = vpop.f32.mrb[0].mxu0
        %2093 = vmatprep.mubr.f32.mxu0 %v1833
        %2094 = vmatmul.mubr.f32.gmra.mrb[0].mxu0 %v1832
        %v2095 = vpop.f32.mrb[0].mxu0
        %v2096 = vadd.f32 %v1912, %v2095
        %v2097 = vpop.f32.mrb[0].mxu0
        %2098 = vmatprep.mubr.f32.mxu0 %v1836
        %2099 = vmatmul.mubr.f32.gmra.mrb[0].mxu0 %v1835
        %v2100 = vpop.f32.mrb[0].mxu0
        %v2101 = vadd.f32 %v1912, %v2100
        %v2102 = vpop.f32.mrb[0].mxu0
        %2103 = vmatprep.mubr.f32.mxu0 %v1839
        %2104 = vmatmul.mubr.f32.gmra.mrb[0].mxu0 %v1838
        %v2105 = vpop.f32.mrb[0].mxu0
        %v2106 = vadd.f32 %v1912, %v2105
        %v2107 = vpop.f32.mrb[0].mxu0
        %2108 = vmatprep.mubr.f32.mxu0 %v1842
        %2109 = vmatmul.mubr.f32.gmra.mrb[0].mxu0 %v1841
        %v2110 = vpop.f32.mrb[0].mxu0
        %v2111 = vadd.f32 %v1912, %v2110
        %v2112 = vpop.f32.mrb[0].mxu0
        %2113 = vmatprep.mubr.f32.mxu0 %v1845
        %2114 = vmatmul.mubr.f32.gmra.mrb[0].mxu0 %v1844
        %v2115 = vpop.f32.mrb[0].mxu0
        %v2116 = vadd.f32 %v1912, %v2115
        %v2117 = vpop.f32.mrb[0].mxu0
        %2118 = vmatprep.mubr.f32.mxu0 %v1848
        %2119 = vmatmul.mubr.f32.gmra.mrb[0].mxu0 %v1847
        %v2120 = vpop.f32.mrb[0].mxu0
        %v2121 = vadd.f32 %v1912, %v2120
        %v2122 = vpop.f32.mrb[0].mxu0
        %2123 = vmatprep.mubr.f32.mxu0 %v1851
        %2124 = vmatmul.mubr.f32.gmra.mrb[0].mxu0 %v1850
        %v2125 = vpop.f32.mrb[0].mxu0
        %v2126 = vadd.f32 %v1912, %v2125
        %v2127 = vpop.f32.mrb[0].mxu0
        %2128 = vmatprep.mubr.f32.mxu0 %v1854
        %2129 = vmatmul.mubr.f32.gmra.mrb[0].mxu0 %v1853
        %v2130 = vpop.f32.mrb[0].mxu0
        %v2131 = vadd.f32 %v1912, %v2130
        %v2132 = vpop.f32.mrb[0].mxu0
        %2133 = vmatprep.mubr.f32.mxu0 %v1857
        %2134 = vmatmul.mubr.f32.gmra.mrb[0].mxu0 %v1856
        %v2135 = vpop.f32.mrb[0].mxu0
        %v2136 = vadd.f32 %v1912, %v2135
        %v2137 = vpop.f32.mrb[0].mxu0
        %2138 = vdwg.mxu0
        %2139 = vmatprep.subr.mxu0 0.0
        %2140 = vmatpush1.msra.mxu0 %v1891
        %2141 = vmatprep.subr.mxu0 0.0
        %2142 = vmatpush1.msra.mxu0 %v1892
        %2143 = vmatprep.subr.mxu0 0.0
        %2144 = vmatpush1.msra.mxu0 %v1893
        %2145 = vmatprep.subr.mxu0 0.0
        %2146 = vmatpush1.msra.mxu0 %v1894
        %2147 = vmatprep.subr.mxu0 0.0
        %2148 = vmatpush1.msra.mxu0 %v1895
        %2149 = vmatprep.subr.mxu0 0.0
        %2150 = vmatpush1.msra.mxu0 %v1896
        %2151 = vmatprep.subr.mxu0 0.0
        %2152 = vmatpush1.msra.mxu0 %v1897
        %2153 = vmatprep.subr.mxu0 0.0
        %2154 = vmatpush1.msra.mxu0 %v1898
        %2155 = vmatprep.subr.mxu0 0.0
        %2156 = vmatpush1.msra.mxu0 %v1899
        %2157 = vmatprep.subr.mxu0 0.0
        %2158 = vmatpush1.msra.mxu0 %v1900
        %2159 = vmatprep.subr.mxu0 0.0
        %2160 = vmatpush1.msra.mxu0 %v1901
        %2161 = vmatprep.subr.mxu0 0.0
        %2162 = vmatpush1.msra.mxu0 %v1902
        %2163 = vmatprep.subr.mxu0 0.0
        %2164 = vmatpush1.msra.mxu0 %v1903
        %2165 = vmatprep.subr.mxu0 0.0
        %2166 = vmatpush1.msra.mxu0 %v1904
        %2167 = vmatprep.subr.mxu0 0.0
        %2168 = vmatpush1.msra.mxu0 %v1905
        %2169 = vmatprep.subr.mxu0 0.0
        %2170 = vmatpush1.msra.mxu0 %v1906
        %2171 = vmatprep.subr.mxu0 0.0
        %2172 = vmatpush1.msra.mxu0 0.0
        %2173 = vmatprep.subr.mxu0 0.0
        %2174 = vmatpush1.msra.mxu0 0.0
        %2175 = vmatprep.subr.mxu0 0.0
        %2176 = vmatpush1.msra.mxu0 0.0
        %2177 = vmatprep.subr.mxu0 0.0
        %2178 = vmatpush1.msra.mxu0 0.0
        %2179 = vmatprep.subr.mxu0 0.0
        %2180 = vmatpush1.msra.mxu0 0.0
        %2181 = vmatprep.subr.mxu0 0.0
        %2182 = vmatpush1.msra.mxu0 0.0
        %2183 = vmatprep.subr.mxu0 0.0
        %2184 = vmatpush1.msra.mxu0 0.0
        %2185 = vmatprep.subr.mxu0 0.0
        %2186 = vmatpush1.msra.mxu0 0.0
        %2187 = vmatprep.subr.mxu0 0.0
        %2188 = vmatpush1.msra.mxu0 0.0
        %2189 = vmatprep.subr.mxu0 0.0
        %2190 = vmatpush1.msra.mxu0 0.0
        %2191 = vmatprep.subr.mxu0 0.0
        %2192 = vmatpush1.msra.mxu0 0.0
        %2193 = vmatprep.subr.mxu0 0.0
        %2194 = vmatpush1.msra.mxu0 0.0
        %2195 = vmatprep.subr.mxu0 0.0
        %2196 = vmatpush1.msra.mxu0 0.0
        %2197 = vmatprep.subr.mxu0 0.0
        %2198 = vmatpush1.msra.mxu0 0.0
        %2199 = vmatprep.subr.mxu0 0.0
        %2200 = vmatpush1.msra.mxu0 0.0
        %2201 = vmatprep.subr.mxu0 0.0
        %2202 = vmatpush1.msra.mxu0 0.0
        %2203 = vmatprep.mubr.f32.mxu0 0.0
        %2204 = vmatmul.mubr.f32.gmra.mrb[0].mxu0 %v1765
        %v2205 = vpop.f32.mrb[0].mxu0
        %v2206 = vadd.f32 %v1981, %v2205
        %v2207 = vpop.f32.mrb[0].mxu0
        %2208 = vmatprep.mubr.f32.mxu0 0.0
        %2209 = vmatmul.mubr.f32.gmra.mrb[0].mxu0 %v1768
        %v2210 = vpop.f32.mrb[0].mxu0
        %v2211 = vadd.f32 %v1986, %v2210
        %v2212 = vpop.f32.mrb[0].mxu0
        %2213 = vmatprep.mubr.f32.mxu0 0.0
        %2214 = vmatmul.mubr.f32.gmra.mrb[0].mxu0 %v1771
        %v2215 = vpop.f32.mrb[0].mxu0
        %v2216 = vadd.f32 %v1991, %v2215
        %v2217 = vpop.f32.mrb[0].mxu0
        %2218 = vmatprep.mubr.f32.mxu0 0.0
        %2219 = vmatmul.mubr.f32.gmra.mrb[0].mxu0 %v1774
        %v2220 = vpop.f32.mrb[0].mxu0
        %v2221 = vadd.f32 %v1996, %v2220
        %v2222 = vpop.f32.mrb[0].mxu0
        %2223 = vmatprep.mubr.f32.mxu0 0.0
        %2224 = vmatmul.mubr.f32.gmra.mrb[0].mxu0 %v1777
        %v2225 = vpop.f32.mrb[0].mxu0
        %v2226 = vadd.f32 %v2001, %v2225
        %v2227 = vpop.f32.mrb[0].mxu0
        %2228 = vmatprep.mubr.f32.mxu0 0.0
        %2229 = vmatmul.mubr.f32.gmra.mrb[0].mxu0 %v1780
        %v2230 = vpop.f32.mrb[0].mxu0
        %v2231 = vadd.f32 %v2006, %v2230
        %v2232 = vpop.f32.mrb[0].mxu0
        %2233 = vmatprep.mubr.f32.mxu0 0.0
        %2234 = vmatmul.mubr.f32.gmra.mrb[0].mxu0 %v1783
        %v2235 = vpop.f32.mrb[0].mxu0
        %v2236 = vadd.f32 %v2011, %v2235
        %v2237 = vpop.f32.mrb[0].mxu0
        %2238 = vmatprep.mubr.f32.mxu0 0.0
        %2239 = vmatmul.mubr.f32.gmra.mrb[0].mxu0 %v1786
        %v2240 = vpop.f32.mrb[0].mxu0
        %v2241 = vadd.f32 %v2016, %v2240
        %v2242 = vpop.f32.mrb[0].mxu0
        %2243 = vmatprep.mubr.f32.mxu0 0.0
        %2244 = vmatmul.mubr.f32.gmra.mrb[0].mxu0 %v1789
        %v2245 = vpop.f32.mrb[0].mxu0
        %v2246 = vadd.f32 %v2021, %v2245
        %v2247 = vpop.f32.mrb[0].mxu0
        %2248 = vmatprep.mubr.f32.mxu0 0.0
        %2249 = vmatmul.mubr.f32.gmra.mrb[0].mxu0 %v1792
        %v2250 = vpop.f32.mrb[0].mxu0
        %v2251 = vadd.f32 %v2026, %v2250
        %v2252 = vpop.f32.mrb[0].mxu0
        %2253 = vmatprep.mubr.f32.mxu0 0.0
        %2254 = vmatmul.mubr.f32.gmra.mrb[0].mxu0 %v1795
        %v2255 = vpop.f32.mrb[0].mxu0
        %v2256 = vadd.f32 %v2031, %v2255
        %v2257 = vpop.f32.mrb[0].mxu0
        %2258 = vmatprep.mubr.f32.mxu0 0.0
        %2259 = vmatmul.mubr.f32.gmra.mrb[0].mxu0 %v1798
        %v2260 = vpop.f32.mrb[0].mxu0
        %v2261 = vadd.f32 %v2036, %v2260
        %v2262 = vpop.f32.mrb[0].mxu0
        %2263 = vmatprep.mubr.f32.mxu0 0.0
        %2264 = vmatmul.mubr.f32.gmra.mrb[0].mxu0 %v1801
        %v2265 = vpop.f32.mrb[0].mxu0
        %v2266 = vadd.f32 %v2041, %v2265
        %v2267 = vpop.f32.mrb[0].mxu0
        %2268 = vmatprep.mubr.f32.mxu0 0.0
        %2269 = vmatmul.mubr.f32.gmra.mrb[0].mxu0 %v1804
        %v2270 = vpop.f32.mrb[0].mxu0
        %v2271 = vadd.f32 %v2046, %v2270
        %v2272 = vpop.f32.mrb[0].mxu0
        %2273 = vmatprep.mubr.f32.mxu0 0.0
        %2274 = vmatmul.mubr.f32.gmra.mrb[0].mxu0 %v1807
        %v2275 = vpop.f32.mrb[0].mxu0
        %v2276 = vadd.f32 %v2051, %v2275
        %v2277 = vpop.f32.mrb[0].mxu0
        %2278 = vmatprep.mubr.f32.mxu0 0.0
        %2279 = vmatmul.mubr.f32.gmra.mrb[0].mxu0 %v1810
        %v2280 = vpop.f32.mrb[0].mxu0
        %v2281 = vadd.f32 %v2056, %v2280
        %v2282 = vpop.f32.mrb[0].mxu0
        %2283 = vmatprep.mubr.f32.mxu0 0.0
        %2284 = vmatmul.mubr.f32.gmra.mrb[0].mxu0 %v1813
        %v2285 = vpop.f32.mrb[0].mxu0
        %v2286 = vadd.f32 %v2061, %v2285
        %v2287 = vpop.f32.mrb[0].mxu0
        %2288 = vmatprep.mubr.f32.mxu0 0.0
        %2289 = vmatmul.mubr.f32.gmra.mrb[0].mxu0 %v1816
        %v2290 = vpop.f32.mrb[0].mxu0
        %v2291 = vadd.f32 %v2066, %v2290
        %v2292 = vpop.f32.mrb[0].mxu0
        %2293 = vmatprep.mubr.f32.mxu0 0.0
        %2294 = vmatmul.mubr.f32.gmra.mrb[0].mxu0 %v1819
        %v2295 = vpop.f32.mrb[0].mxu0
        %v2296 = vadd.f32 %v2071, %v2295
        %v2297 = vpop.f32.mrb[0].mxu0
        %2298 = vmatprep.mubr.f32.mxu0 0.0
        %2299 = vmatmul.mubr.f32.gmra.mrb[0].mxu0 %v1822
        %v2300 = vpop.f32.mrb[0].mxu0
        %v2301 = vadd.f32 %v2076, %v2300
        %v2302 = vpop.f32.mrb[0].mxu0
        %2303 = vmatprep.mubr.f32.mxu0 0.0
        %2304 = vmatmul.mubr.f32.gmra.mrb[0].mxu0 %v1825
        %v2305 = vpop.f32.mrb[0].mxu0
        %v2306 = vadd.f32 %v2081, %v2305
        %v2307 = vpop.f32.mrb[0].mxu0
        %2308 = vmatprep.mubr.f32.mxu0 0.0
        %2309 = vmatmul.mubr.f32.gmra.mrb[0].mxu0 %v1828
        %v2310 = vpop.f32.mrb[0].mxu0
        %v2311 = vadd.f32 %v2086, %v2310
        %v2312 = vpop.f32.mrb[0].mxu0
        %2313 = vmatprep.mubr.f32.mxu0 0.0
        %2314 = vmatmul.mubr.f32.gmra.mrb[0].mxu0 %v1831
        %v2315 = vpop.f32.mrb[0].mxu0
        %v2316 = vadd.f32 %v2091, %v2315
        %v2317 = vpop.f32.mrb[0].mxu0
        %2318 = vmatprep.mubr.f32.mxu0 0.0
        %2319 = vmatmul.mubr.f32.gmra.mrb[0].mxu0 %v1834
        %v2320 = vpop.f32.mrb[0].mxu0
        %v2321 = vadd.f32 %v2096, %v2320
        %v2322 = vpop.f32.mrb[0].mxu0
        %2323 = vmatprep.mubr.f32.mxu0 0.0
        %2324 = vmatmul.mubr.f32.gmra.mrb[0].mxu0 %v1837
        %v2325 = vpop.f32.mrb[0].mxu0
        %v2326 = vadd.f32 %v2101, %v2325
        %v2327 = vpop.f32.mrb[0].mxu0
        %2328 = vmatprep.mubr.f32.mxu0 0.0
        %2329 = vmatmul.mubr.f32.gmra.mrb[0].mxu0 %v1840
        %v2330 = vpop.f32.mrb[0].mxu0
        %v2331 = vadd.f32 %v2106, %v2330
        %v2332 = vpop.f32.mrb[0].mxu0
        %2333 = vmatprep.mubr.f32.mxu0 0.0
        %2334 = vmatmul.mubr.f32.gmra.mrb[0].mxu0 %v1843
        %v2335 = vpop.f32.mrb[0].mxu0
        %v2336 = vadd.f32 %v2111, %v2335
        %v2337 = vpop.f32.mrb[0].mxu0
        %2338 = vmatprep.mubr.f32.mxu0 0.0
        %2339 = vmatmul.mubr.f32.gmra.mrb[0].mxu0 %v1846
        %v2340 = vpop.f32.mrb[0].mxu0
        %v2341 = vadd.f32 %v2116, %v2340
        %v2342 = vpop.f32.mrb[0].mxu0
        %2343 = vmatprep.mubr.f32.mxu0 0.0
        %2344 = vmatmul.mubr.f32.gmra.mrb[0].mxu0 %v1849
        %v2345 = vpop.f32.mrb[0].mxu0
        %v2346 = vadd.f32 %v2121, %v2345
        %v2347 = vpop.f32.mrb[0].mxu0
        %2348 = vmatprep.mubr.f32.mxu0 0.0
        %2349 = vmatmul.mubr.f32.gmra.mrb[0].mxu0 %v1852
        %v2350 = vpop.f32.mrb[0].mxu0
        %v2351 = vadd.f32 %v2126, %v2350
        %v2352 = vpop.f32.mrb[0].mxu0
        %2353 = vmatprep.mubr.f32.mxu0 0.0
        %2354 = vmatmul.mubr.f32.gmra.mrb[0].mxu0 %v1855
        %v2355 = vpop.f32.mrb[0].mxu0
        %v2356 = vadd.f32 %v2131, %v2355
        %v2357 = vpop.f32.mrb[0].mxu0
        %2358 = vmatprep.mubr.f32.mxu0 0.0
        %2359 = vmatmul.mubr.f32.gmra.mrb[0].mxu0 %v1858
        %v2360 = vpop.f32.mrb[0].mxu0
        %v2361 = vadd.f32 %v2136, %v2360
        %v2362 = vpop.f32.mrb[0].mxu0
        %2363 = vdwg.mxu0
        %v2364 = vmax.f32 %v2206, 0.0
        %v2365 = vmax.f32 %v2211, 0.0
        %v2366 = vmax.f32 %v2216, 0.0
        %v2367 = vmax.f32 %v2221, 0.0
        %v2368 = vmax.f32 %v2226, 0.0
        %v2369 = vmax.f32 %v2231, 0.0
        %v2370 = vmax.f32 %v2236, 0.0
        %v2371 = vmax.f32 %v2241, 0.0
        %v2372 = vmax.f32 %v2246, 0.0
        %v2373 = vmax.f32 %v2251, 0.0
        %v2374 = vmax.f32 %v2256, 0.0
        %v2375 = vmax.f32 %v2261, 0.0
        %v2376 = vmax.f32 %v2266, 0.0
        %v2377 = vmax.f32 %v2271, 0.0
        %v2378 = vmax.f32 %v2276, 0.0
        %v2379 = vmax.f32 %v2281, 0.0
        %v2380 = vmax.f32 %v2286, 0.0
        %v2381 = vmax.f32 %v2291, 0.0
        %v2382 = vmax.f32 %v2296, 0.0
        %v2383 = vmax.f32 %v2301, 0.0
        %v2384 = vmax.f32 %v2306, 0.0
        %v2385 = vmax.f32 %v2311, 0.0
        %v2386 = vmax.f32 %v2316, 0.0
        %v2387 = vmax.f32 %v2321, 0.0
        %v2388 = vmax.f32 %v2326, 0.0
        %v2389 = vmax.f32 %v2331, 0.0
        %v2390 = vmax.f32 %v2336, 0.0
        %v2391 = vmax.f32 %v2341, 0.0
        %v2392 = vmax.f32 %v2346, 0.0
        %v2393 = vmax.f32 %v2351, 0.0
        %v2394 = vmax.f32 %v2356, 0.0
        %v2395 = vmax.f32 %v2361, 0.0
        %v2396 = vsel %vm277, %v2364, 0.0
        %v2397 = vsel %vm277, %v2365, 0.0
        %v2398 = vadd.f32 %v2396, %v2397
        %v2399 = vsel %vm277, %v2366, 0.0
        %v2400 = vadd.f32 %v2398, %v2399
        %v2401 = vsel %vm277, %v2367, 0.0
        %v2402 = vadd.f32 %v2400, %v2401
        %v2403 = vsel %vm277, %v2368, 0.0
        %v2404 = vadd.f32 %v2402, %v2403
        %v2405 = vsel %vm277, %v2369, 0.0
        %v2406 = vadd.f32 %v2404, %v2405
        %v2407 = vsel %vm277, %v2370, 0.0
        %v2408 = vadd.f32 %v2406, %v2407
        %v2409 = vsel %vm277, %v2371, 0.0
        %v2410 = vadd.f32 %v2408, %v2409
        %v2411 = vsel %vm277, %v2372, 0.0
        %v2412 = vadd.f32 %v2410, %v2411
        %v2413 = vsel %vm277, %v2373, 0.0
        %v2414 = vadd.f32 %v2412, %v2413
        %v2415 = vsel %vm277, %v2374, 0.0
        %v2416 = vadd.f32 %v2414, %v2415
        %v2417 = vsel %vm277, %v2375, 0.0
        %v2418 = vadd.f32 %v2416, %v2417
        %v2419 = vsel %vm277, %v2376, 0.0
        %v2420 = vadd.f32 %v2418, %v2419
        %v2421 = vsel %vm277, %v2377, 0.0
        %v2422 = vadd.f32 %v2420, %v2421
        %v2423 = vsel %vm277, %v2378, 0.0
        %v2424 = vadd.f32 %v2422, %v2423
        %v2425 = vsel %vm277, %v2379, 0.0
        %v2426 = vadd.f32 %v2424, %v2425
        %v2427 = vsel %vm277, %v2380, 0.0
        %v2428 = vadd.f32 %v2426, %v2427
        %v2429 = vsel %vm277, %v2381, 0.0
        %v2430 = vadd.f32 %v2428, %v2429
        %v2431 = vsel %vm277, %v2382, 0.0
        %v2432 = vadd.f32 %v2430, %v2431
        %v2433 = vsel %vm277, %v2383, 0.0
        %v2434 = vadd.f32 %v2432, %v2433
        %v2435 = vsel %vm277, %v2384, 0.0
        %v2436 = vadd.f32 %v2434, %v2435
        %v2437 = vsel %vm277, %v2385, 0.0
        %v2438 = vadd.f32 %v2436, %v2437
        %v2439 = vsel %vm277, %v2386, 0.0
        %v2440 = vadd.f32 %v2438, %v2439
        %v2441 = vsel %vm277, %v2387, 0.0
        %v2442 = vadd.f32 %v2440, %v2441
        %v2443 = vsel %vm277, %v2388, 0.0
        %v2444 = vadd.f32 %v2442, %v2443
        %v2445 = vsel %vm277, %v2389, 0.0
        %v2446 = vadd.f32 %v2444, %v2445
        %v2447 = vsel %vm277, %v2390, 0.0
        %v2448 = vadd.f32 %v2446, %v2447
        %v2449 = vsel %vm277, %v2391, 0.0
        %v2450 = vadd.f32 %v2448, %v2449
        %v2451 = vsel %vm277, %v2392, 0.0
        %v2452 = vadd.f32 %v2450, %v2451
        %v2453 = vsel %vm277, %v2393, 0.0
        %v2454 = vadd.f32 %v2452, %v2453
        %v2455 = vsel %vm277, %v2394, 0.0
        %v2456 = vadd.f32 %v2454, %v2455
        %v2457 = vsel %vm277, %v2395, 0.0
        %v2458 = vadd.f32 %v2456, %v2457
        %v2459 = vrot.slane %v2458, 4
        %v2460 = vadd.f32 %v2458, %v2459
        %v2461 = vrot.slane %v2460, 2
        %v2462 = vadd.f32 %v2460, %v2461
        %v2463 = vrot.slane %v2462, 1
        %v2464 = vadd.f32 %v2462, %v2463
        %v2465 = vrcp.pop 256.0
        %v2466 = vmul.f32 %v2464, %v2465
        %2467 = vst.msk [vmem:[%s286 + $0x1] sm:$0xff] %vm277, %v2364
        %2468 = vst.msk [vmem:[%s286 + $0x9] sm:$0xff] %vm277, %v2365
        %2469 = vst.msk [vmem:[%s286 + $0x19] sm:$0xff] %vm277, %v2366
        %2470 = vst.msk [vmem:[%s286 + $0x21] sm:$0xff] %vm277, %v2367
        %2471 = vst.msk [vmem:[%s286 + $0x31] sm:$0xff] %vm277, %v2368
        %2472 = vst.msk [vmem:[%s286 + $0x39] sm:$0xff] %vm277, %v2369
        %2473 = vst.msk [vmem:[%s286 + $0x49] sm:$0xff] %vm277, %v2370
        %2474 = vst.msk [vmem:[%s286 + $0x51] sm:$0xff] %vm277, %v2371
        %2475 = vst.msk [vmem:[%s286 + $0x61] sm:$0xff] %vm277, %v2372
        %2476 = vst.msk [vmem:[%s286 + $0x69] sm:$0xff] %vm277, %v2373
        %2477 = vst.msk [vmem:[%s286 + $0x79] sm:$0xff] %vm277, %v2374
        %2478 = vst.msk [vmem:[%s286 + $0x81] sm:$0xff] %vm277, %v2375
        %2479 = vst.msk [vmem:[%s286 + $0x91] sm:$0xff] %vm277, %v2376
        %2480 = vst.msk [vmem:[%s286 + $0x99] sm:$0xff] %vm277, %v2377
        %2481 = vst.msk [vmem:[%s286 + $0xa9] sm:$0xff] %vm277, %v2378
        %2482 = vst.msk [vmem:[%s286 + $0xb1] sm:$0xff] %vm277, %v2379
        %2483 = vst.msk [vmem:[%s286 + $0xc1] sm:$0xff] %vm277, %v2380
        %2484 = vst.msk [vmem:[%s286 + $0xc9] sm:$0xff] %vm277, %v2381
        %2485 = vst.msk [vmem:[%s286 + $0xd9] sm:$0xff] %vm277, %v2382
        %2486 = vst.msk [vmem:[%s286 + $0xe1] sm:$0xff] %vm277, %v2383
        %2487 = vst.msk [vmem:[%s286 + $0xf1] sm:$0xff] %vm277, %v2384
        %2488 = vst.msk [vmem:[%s286 + $0xf9] sm:$0xff] %vm277, %v2385
        %2489 = vst.msk [vmem:[%s286 + $0x109] sm:$0xff] %vm277, %v2386
        %2490 = vst.msk [vmem:[%s286 + $0x111] sm:$0xff] %vm277, %v2387
        %2491 = vst.msk [vmem:[%s286 + $0x121] sm:$0xff] %vm277, %v2388
        %2492 = vst.msk [vmem:[%s286 + $0x129] sm:$0xff] %vm277, %v2389
        %2493 = vst.msk [vmem:[%s286 + $0x139] sm:$0xff] %vm277, %v2390
        %2494 = vst.msk [vmem:[%s286 + $0x141] sm:$0xff] %vm277, %v2391
        %2495 = vst.msk [vmem:[%s286 + $0x151] sm:$0xff] %vm277, %v2392
        %2496 = vst.msk [vmem:[%s286 + $0x159] sm:$0xff] %vm277, %v2393
        %2497 = vst.msk [vmem:[%s286 + $0x169] sm:$0xff] %vm277, %v2394
        %2498 = vst.msk [vmem:[%s286 + $0x171] sm:$0xff] %vm277, %v2395
        %v2499 = vld [vmem:[%s3] sm:$0xff]
        %v2500 = vld [vmem:[%s3 + $0x8] sm:$0xff]
        %v2501 = vld [vmem:[%s3 + $0x10] sm:$0xff]
        %v2502 = vld [vmem:[%s3 + $0x18] sm:$0xff]
        %v2504 = vsel %vm277, %v2466, 0
        %2506 = vmatprep.subr.mxu0 0.0
        %2507 = vmatpush1.msra.mxu0 %v2499
        %2508 = vmatprep.subr.mxu0 0.0
        %2509 = vmatpush1.msra.mxu0 %v2500
        %2510 = vmatprep.subr.mxu0 0.0
        %2511 = vmatpush1.msra.mxu0 %v2501
        %2512 = vmatprep.subr.mxu0 0.0
        %2513 = vmatpush1.msra.mxu0 %v2502
        %2514 = vmatprep.subr.mxu0 0.0
        %2515 = vmatpush1.msra.mxu0 0.0
        %2516 = vmatprep.subr.mxu0 0.0
        %2517 = vmatpush1.msra.mxu0 0.0
        %2518 = vmatprep.subr.mxu0 0.0
        %2519 = vmatpush1.msra.mxu0 0.0
        %2520 = vmatprep.subr.mxu0 0.0
        %2521 = vmatpush1.msra.mxu0 0.0
        %2522 = vmatprep.subr.mxu0 0.0
        %2523 = vmatpush1.msra.mxu0 0.0
        %2524 = vmatprep.subr.mxu0 0.0
        %2525 = vmatpush1.msra.mxu0 0.0
        %2526 = vmatprep.subr.mxu0 0.0
        %2527 = vmatpush1.msra.mxu0 0.0
        %2528 = vmatprep.subr.mxu0 0.0
        %2529 = vmatpush1.msra.mxu0 0.0
        %2530 = vmatprep.subr.mxu0 0.0
        %2531 = vmatpush1.msra.mxu0 0.0
        %2532 = vmatprep.subr.mxu0 0.0
        %2533 = vmatpush1.msra.mxu0 0.0
        %2534 = vmatprep.subr.mxu0 0.0
        %2535 = vmatpush1.msra.mxu0 0.0
        %2536 = vmatprep.subr.mxu0 0.0
        %2537 = vmatpush1.msra.mxu0 0.0
        %2538 = vmatprep.subr.mxu0 0.0
        %2539 = vmatpush1.msra.mxu0 0.0
        %2540 = vmatprep.subr.mxu0 0.0
        %2541 = vmatpush1.msra.mxu0 0.0
        %2542 = vmatprep.subr.mxu0 0.0
        %2543 = vmatpush1.msra.mxu0 0.0
        %2544 = vmatprep.subr.mxu0 0.0
        %2545 = vmatpush1.msra.mxu0 0.0
        %2546 = vmatprep.subr.mxu0 0.0
        %2547 = vmatpush1.msra.mxu0 0.0
        %2548 = vmatprep.subr.mxu0 0.0
        %2549 = vmatpush1.msra.mxu0 0.0
        %2550 = vmatprep.subr.mxu0 0.0
        %2551 = vmatpush1.msra.mxu0 0.0
        %2552 = vmatprep.subr.mxu0 0.0
        %2553 = vmatpush1.msra.mxu0 0.0
        %2554 = vmatprep.subr.mxu0 0.0
        %2555 = vmatpush1.msra.mxu0 0.0
        %2556 = vmatprep.subr.mxu0 0.0
        %2557 = vmatpush1.msra.mxu0 0.0
        %2558 = vmatprep.subr.mxu0 0.0
        %2559 = vmatpush1.msra.mxu0 0.0
        %2560 = vmatprep.subr.mxu0 0.0
        %2561 = vmatpush1.msra.mxu0 0.0
        %2562 = vmatprep.subr.mxu0 0.0
        %2563 = vmatpush1.msra.mxu0 0.0
        %2564 = vmatprep.subr.mxu0 0.0
        %2565 = vmatpush1.msra.mxu0 0.0
        %2566 = vmatprep.subr.mxu0 0.0
        %2567 = vmatpush1.msra.mxu0 0.0
        %2568 = vmatprep.subr.mxu0 0.0
        %2569 = vmatpush1.msra.mxu0 0.0
        %2570 = vmatprep.mubr.f32.mxu0 0.0
        %2571 = vmatmul.mubr.f32.gmra.mrb[0].mxu0 %v2504
        %v2572 = vpop.f32.mrb[0].mxu0
        %v2573 = vadd.f32 0.0, %v2572
        %v2574 = vpop.f32.mrb[0].mxu0
        %2575 = vdwg.mxu0
        %v2576 = vmax.f32 %v2573, 0.0
        %v2577 = vld [vmem:[%s4] sm:$0x3]
        %vm2578 = vcmask 15360
        %v2580 = vsel %vm2578, %v2576, 0
        %vm2582 = vcmask 1041408
        %v2584 = vsel %vm2582, %v2577, 0
        %2586 = vmatprep.subr.mxu0 0.0
        %2587 = vmatpush1.msra.mxu0 %v2584
        %2588 = vmatprep.subr.mxu0 0.0
        %2589 = vmatpush1.msra.mxu0 0.0
        %2590 = vmatprep.subr.mxu0 0.0
        %2591 = vmatpush1.msra.mxu0 0.0
        %2592 = vmatprep.subr.mxu0 0.0
        %2593 = vmatpush1.msra.mxu0 0.0
        %2594 = vmatprep.subr.mxu0 0.0
        %2595 = vmatpush1.msra.mxu0 0.0
        %2596 = vmatprep.subr.mxu0 0.0
        %2597 = vmatpush1.msra.mxu0 0.0
        %2598 = vmatprep.subr.mxu0 0.0
        %2599 = vmatpush1.msra.mxu0 0.0
        %2600 = vmatprep.subr.mxu0 0.0
        %2601 = vmatpush1.msra.mxu0 0.0
        %2602 = vmatprep.subr.mxu0 0.0
        %2603 = vmatpush1.msra.mxu0 0.0
        %2604 = vmatprep.subr.mxu0 0.0
        %2605 = vmatpush1.msra.mxu0 0.0
        %2606 = vmatprep.subr.mxu0 0.0
        %2607 = vmatpush1.msra.mxu0 0.0
        %2608 = vmatprep.subr.mxu0 0.0
        %2609 = vmatpush1.msra.mxu0 0.0
        %2610 = vmatprep.subr.mxu0 0.0
        %2611 = vmatpush1.msra.mxu0 0.0
        %2612 = vmatprep.subr.mxu0 0.0
        %2613 = vmatpush1.msra.mxu0 0.0
        %2614 = vmatprep.subr.mxu0 0.0
        %2615 = vmatpush1.msra.mxu0 0.0
        %2616 = vmatprep.subr.mxu0 0.0
        %2617 = vmatpush1.msra.mxu0 0.0
        %2618 = vmatprep.subr.mxu0 0.0
        %2619 = vmatpush1.msra.mxu0 0.0
        %2620 = vmatprep.subr.mxu0 0.0
        %2621 = vmatpush1.msra.mxu0 0.0
        %2622 = vmatprep.subr.mxu0 0.0
        %2623 = vmatpush1.msra.mxu0 0.0
        %2624 = vmatprep.subr.mxu0 0.0
        %2625 = vmatpush1.msra.mxu0 0.0
        %2626 = vmatprep.subr.mxu0 0.0
        %2627 = vmatpush1.msra.mxu0 0.0
        %2628 = vmatprep.subr.mxu0 0.0
        %2629 = vmatpush1.msra.mxu0 0.0
        %2630 = vmatprep.subr.mxu0 0.0
        %2631 = vmatpush1.msra.mxu0 0.0
        %2632 = vmatprep.subr.mxu0 0.0
        %2633 = vmatpush1.msra.mxu0 0.0
        %2634 = vmatprep.subr.mxu0 0.0
        %2635 = vmatpush1.msra.mxu0 0.0
        %2636 = vmatprep.subr.mxu0 0.0
        %2637 = vmatpush1.msra.mxu0 0.0
        %2638 = vmatprep.subr.mxu0 0.0
        %2639 = vmatpush1.msra.mxu0 0.0
        %2640 = vmatprep.subr.mxu0 0.0
        %2641 = vmatpush1.msra.mxu0 0.0
        %2642 = vmatprep.subr.mxu0 0.0
        %2643 = vmatpush1.msra.mxu0 0.0
        %2644 = vmatprep.subr.mxu0 0.0
        %2645 = vmatpush1.msra.mxu0 0.0
        %2646 = vmatprep.subr.mxu0 0.0
        %2647 = vmatpush1.msra.mxu0 0.0
        %2648 = vmatprep.subr.mxu0 0.0
        %2649 = vmatpush1.msra.mxu0 0.0
        %2650 = vmatprep.mubr.f32.mxu0 0.0
        %2651 = vmatmul.mubr.f32.gmra.mrb[0].mxu0 %v2580
        %v2652 = vpop.f32.mrb[0].mxu0
        %v2653 = vadd.f32 0.0, %v2652
        %v2654 = vpop.f32.mrb[0].mxu0
        %2655 = vdwg.mxu0
        %v2656 = vxor.u32 %v2653, 2147483648
        %v2657 = vmul.f32 %v2656, 1.442695
        %v2658 = vpow.pop %v2657
        %v2659 = vadd.f32 %v2658, 1.0
        %v2660 = vrcp.pop %v2659
        %v2661 = vmul.f32 1.0, %v2660
        %v2662 = vld [vmem:[%s286 + $0x1] sm:$0xff]
        %v2663 = vld [vmem:[%s286 + $0x9] sm:$0xff]
        %v2664 = vld [vmem:[%s286 + $0x19] sm:$0xff]
        %v2665 = vld [vmem:[%s286 + $0x21] sm:$0xff]
        %v2666 = vld [vmem:[%s286 + $0x31] sm:$0xff]
        %v2667 = vld [vmem:[%s286 + $0x39] sm:$0xff]
        %v2668 = vld [vmem:[%s286 + $0x49] sm:$0xff]
        %v2669 = vld [vmem:[%s286 + $0x51] sm:$0xff]
        %v2670 = vld [vmem:[%s286 + $0x61] sm:$0xff]
        %v2671 = vld [vmem:[%s286 + $0x69] sm:$0xff]
        %v2672 = vld [vmem:[%s286 + $0x79] sm:$0xff]
        %v2673 = vld [vmem:[%s286 + $0x81] sm:$0xff]
        %v2674 = vld [vmem:[%s286 + $0x91] sm:$0xff]
        %v2675 = vld [vmem:[%s286 + $0x99] sm:$0xff]
        %v2676 = vld [vmem:[%s286 + $0xa9] sm:$0xff]
        %v2677 = vld [vmem:[%s286 + $0xb1] sm:$0xff]
        %v2678 = vld [vmem:[%s286 + $0xc1] sm:$0xff]
        %v2679 = vld [vmem:[%s286 + $0xc9] sm:$0xff]
        %v2680 = vld [vmem:[%s286 + $0xd9] sm:$0xff]
        %v2681 = vld [vmem:[%s286 + $0xe1] sm:$0xff]
        %v2682 = vld [vmem:[%s286 + $0xf1] sm:$0xff]
        %v2683 = vld [vmem:[%s286 + $0xf9] sm:$0xff]
        %v2684 = vld [vmem:[%s286 + $0x109] sm:$0xff]
        %v2685 = vld [vmem:[%s286 + $0x111] sm:$0xff]
        %v2686 = vld [vmem:[%s286 + $0x121] sm:$0xff]
        %v2687 = vld [vmem:[%s286 + $0x129] sm:$0xff]
        %v2688 = vld [vmem:[%s286 + $0x139] sm:$0xff]
        %v2689 = vld [vmem:[%s286 + $0x141] sm:$0xff]
        %v2690 = vld [vmem:[%s286 + $0x151] sm:$0xff]
        %v2691 = vld [vmem:[%s286 + $0x159] sm:$0xff]
        %v2692 = vld [vmem:[%s286 + $0x169] sm:$0xff]
        %v2693 = vld [vmem:[%s286 + $0x171] sm:$0xff]
        %v2694 = vlaneseq
        %v2695 = vshrl.u32 %v2694, 7
        %v2696 = vsub.s32 0, %v2695
        %v2697 = vrot.slane %v2661, %v2696
        %v2698 = vmul.f32 %v2662, %v2697
        %v2699 = vmul.f32 %v2663, %v2697
        %v2700 = vmul.f32 %v2664, %v2697
        %v2701 = vmul.f32 %v2665, %v2697
        %v2702 = vmul.f32 %v2666, %v2697
        %v2703 = vmul.f32 %v2667, %v2697
        %v2704 = vmul.f32 %v2668, %v2697
        %v2705 = vmul.f32 %v2669, %v2697
        %v2706 = vmul.f32 %v2670, %v2697
        %v2707 = vmul.f32 %v2671, %v2697
        %v2708 = vmul.f32 %v2672, %v2697
        %v2709 = vmul.f32 %v2673, %v2697
        %v2710 = vmul.f32 %v2674, %v2697
        %v2711 = vmul.f32 %v2675, %v2697
        %v2712 = vmul.f32 %v2676, %v2697
        %v2713 = vmul.f32 %v2677, %v2697
        %v2714 = vmul.f32 %v2678, %v2697
        %v2715 = vmul.f32 %v2679, %v2697
        %v2716 = vmul.f32 %v2680, %v2697
        %v2717 = vmul.f32 %v2681, %v2697
        %v2718 = vmul.f32 %v2682, %v2697
        %v2719 = vmul.f32 %v2683, %v2697
        %v2720 = vmul.f32 %v2684, %v2697
        %v2721 = vmul.f32 %v2685, %v2697
        %v2722 = vmul.f32 %v2686, %v2697
        %v2723 = vmul.f32 %v2687, %v2697
        %v2724 = vmul.f32 %v2688, %v2697
        %v2725 = vmul.f32 %v2689, %v2697
        %v2726 = vmul.f32 %v2690, %v2697
        %v2727 = vmul.f32 %v2691, %v2697
        %v2728 = vmul.f32 %v2692, %v2697
        %v2729 = vmul.f32 %v2693, %v2697
        %2730 = vst.msk [vmem:[%s286 + $0x1] sm:$0xff] %vm277, %v2698
        %2731 = vst.msk [vmem:[%s286 + $0x9] sm:$0xff] %vm277, %v2699
        %2732 = vst.msk [vmem:[%s286 + $0x19] sm:$0xff] %vm277, %v2700
        %2733 = vst.msk [vmem:[%s286 + $0x21] sm:$0xff] %vm277, %v2701
        %2734 = vst.msk [vmem:[%s286 + $0x31] sm:$0xff] %vm277, %v2702
        %2735 = vst.msk [vmem:[%s286 + $0x39] sm:$0xff] %vm277, %v2703
        %2736 = vst.msk [vmem:[%s286 + $0x49] sm:$0xff] %vm277, %v2704
        %2737 = vst.msk [vmem:[%s286 + $0x51] sm:$0xff] %vm277, %v2705
        %2738 = vst.msk [vmem:[%s286 + $0x61] sm:$0xff] %vm277, %v2706
        %2739 = vst.msk [vmem:[%s286 + $0x69] sm:$0xff] %vm277, %v2707
        %2740 = vst.msk [vmem:[%s286 + $0x79] sm:$0xff] %vm277, %v2708
        %2741 = vst.msk [vmem:[%s286 + $0x81] sm:$0xff] %vm277, %v2709
        %2742 = vst.msk [vmem:[%s286 + $0x91] sm:$0xff] %vm277, %v2710
        %2743 = vst.msk [vmem:[%s286 + $0x99] sm:$0xff] %vm277, %v2711
        %2744 = vst.msk [vmem:[%s286 + $0xa9] sm:$0xff] %vm277, %v2712
        %2745 = vst.msk [vmem:[%s286 + $0xb1] sm:$0xff] %vm277, %v2713
        %2746 = vst.msk [vmem:[%s286 + $0xc1] sm:$0xff] %vm277, %v2714
        %2747 = vst.msk [vmem:[%s286 + $0xc9] sm:$0xff] %vm277, %v2715
        %2748 = vst.msk [vmem:[%s286 + $0xd9] sm:$0xff] %vm277, %v2716
        %2749 = vst.msk [vmem:[%s286 + $0xe1] sm:$0xff] %vm277, %v2717
        %2750 = vst.msk [vmem:[%s286 + $0xf1] sm:$0xff] %vm277, %v2718
        %2751 = vst.msk [vmem:[%s286 + $0xf9] sm:$0xff] %vm277, %v2719
        %2752 = vst.msk [vmem:[%s286 + $0x109] sm:$0xff] %vm277, %v2720
        %2753 = vst.msk [vmem:[%s286 + $0x111] sm:$0xff] %vm277, %v2721
        %2754 = vst.msk [vmem:[%s286 + $0x121] sm:$0xff] %vm277, %v2722
        %2755 = vst.msk [vmem:[%s286 + $0x129] sm:$0xff] %vm277, %v2723
        %2756 = vst.msk [vmem:[%s286 + $0x139] sm:$0xff] %vm277, %v2724
        %2757 = vst.msk [vmem:[%s286 + $0x141] sm:$0xff] %vm277, %v2725
        %2758 = vst.msk [vmem:[%s286 + $0x151] sm:$0xff] %vm277, %v2726
        %2759 = vst.msk [vmem:[%s286 + $0x159] sm:$0xff] %vm277, %v2727
        %2760 = vst.msk [vmem:[%s286 + $0x169] sm:$0xff] %vm277, %v2728
        %2761 = vst.msk [vmem:[%s286 + $0x171] sm:$0xff] %vm277, %v2729
        %v2762 = vld [vmem:[#allocation2] sm:$0xff]
        %v2763 = vld [vmem:[#allocation2 + $0x8] sm:$0xff]
        %v2764 = vld [vmem:[#allocation2 + $0x18] sm:$0xff]
        %v2765 = vld [vmem:[#allocation2 + $0x20] sm:$0xff]
        %v2766 = vld [vmem:[#allocation2 + $0x30] sm:$0xff]
        %v2767 = vld [vmem:[#allocation2 + $0x38] sm:$0xff]
        %v2768 = vld [vmem:[#allocation2 + $0x48] sm:$0xff]
        %v2769 = vld [vmem:[#allocation2 + $0x50] sm:$0xff]
        %v2770 = vld [vmem:[#allocation2 + $0x60] sm:$0xff]
        %v2771 = vld [vmem:[#allocation2 + $0x68] sm:$0xff]
        %v2772 = vld [vmem:[#allocation2 + $0x78] sm:$0xff]
        %v2773 = vld [vmem:[#allocation2 + $0x80] sm:$0xff]
        %v2774 = vld [vmem:[#allocation2 + $0x90] sm:$0xff]
        %v2775 = vld [vmem:[#allocation2 + $0x98] sm:$0xff]
        %v2776 = vld [vmem:[#allocation2 + $0xa8] sm:$0xff]
        %v2777 = vld [vmem:[#allocation2 + $0xb0] sm:$0xff]
        %v2778 = vld [vmem:[#allocation2 + $0xc0] sm:$0xff]
        %v2779 = vld [vmem:[#allocation2 + $0xc8] sm:$0xff]
        %v2780 = vld [vmem:[#allocation2 + $0xd8] sm:$0xff]
        %v2781 = vld [vmem:[#allocation2 + $0xe0] sm:$0xff]
        %v2782 = vld [vmem:[#allocation2 + $0xf0] sm:$0xff]
        %v2783 = vld [vmem:[#allocation2 + $0xf8] sm:$0xff]
        %v2784 = vld [vmem:[#allocation2 + $0x108] sm:$0xff]
        %v2785 = vld [vmem:[#allocation2 + $0x110] sm:$0xff]
        %v2786 = vld [vmem:[#allocation2 + $0x120] sm:$0xff]
        %v2787 = vld [vmem:[#allocation2 + $0x128] sm:$0xff]
        %v2788 = vld [vmem:[#allocation2 + $0x138] sm:$0xff]
        %v2789 = vld [vmem:[#allocation2 + $0x140] sm:$0xff]
        %v2790 = vld [vmem:[#allocation2 + $0x150] sm:$0xff]
        %v2791 = vld [vmem:[#allocation2 + $0x158] sm:$0xff]
        %v2792 = vld [vmem:[#allocation2 + $0x168] sm:$0xff]
        %v2793 = vld [vmem:[#allocation2 + $0x170] sm:$0xff]
        %v2794 = vld [vmem:[#allocation2 + $0x1] sm:$0xff]
        %v2795 = vld [vmem:[#allocation2 + $0x9] sm:$0xff]
        %v2796 = vld [vmem:[#allocation2 + $0x19] sm:$0xff]
        %v2797 = vld [vmem:[#allocation2 + $0x21] sm:$0xff]
        %v2798 = vld [vmem:[#allocation2 + $0x31] sm:$0xff]
        %v2799 = vld [vmem:[#allocation2 + $0x39] sm:$0xff]
        %v2800 = vld [vmem:[#allocation2 + $0x49] sm:$0xff]
        %v2801 = vld [vmem:[#allocation2 + $0x51] sm:$0xff]
        %v2802 = vld [vmem:[#allocation2 + $0x61] sm:$0xff]
        %v2803 = vld [vmem:[#allocation2 + $0x69] sm:$0xff]
        %v2804 = vld [vmem:[#allocation2 + $0x79] sm:$0xff]
        %v2805 = vld [vmem:[#allocation2 + $0x81] sm:$0xff]
        %v2806 = vld [vmem:[#allocation2 + $0x91] sm:$0xff]
        %v2807 = vld [vmem:[#allocation2 + $0x99] sm:$0xff]
        %v2808 = vld [vmem:[#allocation2 + $0xa9] sm:$0xff]
        %v2809 = vld [vmem:[#allocation2 + $0xb1] sm:$0xff]
        %v2810 = vld [vmem:[#allocation2 + $0xc1] sm:$0xff]
        %v2811 = vld [vmem:[#allocation2 + $0xc9] sm:$0xff]
        %v2812 = vld [vmem:[#allocation2 + $0xd9] sm:$0xff]
        %v2813 = vld [vmem:[#allocation2 + $0xe1] sm:$0xff]
        %v2814 = vld [vmem:[#allocation2 + $0xf1] sm:$0xff]
        %v2815 = vld [vmem:[#allocation2 + $0xf9] sm:$0xff]
        %v2816 = vld [vmem:[#allocation2 + $0x109] sm:$0xff]
        %v2817 = vld [vmem:[#allocation2 + $0x111] sm:$0xff]
        %v2818 = vld [vmem:[#allocation2 + $0x121] sm:$0xff]
        %v2819 = vld [vmem:[#allocation2 + $0x129] sm:$0xff]
        %v2820 = vld [vmem:[#allocation2 + $0x139] sm:$0xff]
        %v2821 = vld [vmem:[#allocation2 + $0x141] sm:$0xff]
        %v2822 = vld [vmem:[#allocation2 + $0x151] sm:$0xff]
        %v2823 = vld [vmem:[#allocation2 + $0x159] sm:$0xff]
        %v2824 = vld [vmem:[#allocation2 + $0x169] sm:$0xff]
        %v2825 = vld [vmem:[#allocation2 + $0x171] sm:$0xff]
        %v2826 = vld [vmem:[#allocation2 + $0x2] sm:$0xff]
        %v2827 = vld [vmem:[#allocation2 + $0xa] sm:$0xff]
        %v2828 = vld [vmem:[#allocation2 + $0x1a] sm:$0xff]
        %v2829 = vld [vmem:[#allocation2 + $0x22] sm:$0xff]
        %v2830 = vld [vmem:[#allocation2 + $0x32] sm:$0xff]
        %v2831 = vld [vmem:[#allocation2 + $0x3a] sm:$0xff]
        %v2832 = vld [vmem:[#allocation2 + $0x4a] sm:$0xff]
        %v2833 = vld [vmem:[#allocation2 + $0x52] sm:$0xff]
        %v2834 = vld [vmem:[#allocation2 + $0x62] sm:$0xff]
        %v2835 = vld [vmem:[#allocation2 + $0x6a] sm:$0xff]
        %v2836 = vld [vmem:[#allocation2 + $0x7a] sm:$0xff]
        %v2837 = vld [vmem:[#allocation2 + $0x82] sm:$0xff]
        %v2838 = vld [vmem:[#allocation2 + $0x92] sm:$0xff]
        %v2839 = vld [vmem:[#allocation2 + $0x9a] sm:$0xff]
        %v2840 = vld [vmem:[#allocation2 + $0xaa] sm:$0xff]
        %v2841 = vld [vmem:[#allocation2 + $0xb2] sm:$0xff]
        %v2842 = vld [vmem:[#allocation2 + $0xc2] sm:$0xff]
        %v2843 = vld [vmem:[#allocation2 + $0xca] sm:$0xff]
        %v2844 = vld [vmem:[#allocation2 + $0xda] sm:$0xff]
        %v2845 = vld [vmem:[#allocation2 + $0xe2] sm:$0xff]
        %v2846 = vld [vmem:[#allocation2 + $0xf2] sm:$0xff]
        %v2847 = vld [vmem:[#allocation2 + $0xfa] sm:$0xff]
        %v2848 = vld [vmem:[#allocation2 + $0x10a] sm:$0xff]
        %v2849 = vld [vmem:[#allocation2 + $0x112] sm:$0xff]
        %v2850 = vld [vmem:[#allocation2 + $0x122] sm:$0xff]
        %v2851 = vld [vmem:[#allocation2 + $0x12a] sm:$0xff]
        %v2852 = vld [vmem:[#allocation2 + $0x13a] sm:$0xff]
        %v2853 = vld [vmem:[#allocation2 + $0x142] sm:$0xff]
        %v2854 = vld [vmem:[#allocation2 + $0x152] sm:$0xff]
        %v2855 = vld [vmem:[#allocation2 + $0x15a] sm:$0xff]
        %v2856 = vld [vmem:[#allocation2 + $0x16a] sm:$0xff]
        %v2857 = vld [vmem:[#allocation2 + $0x172] sm:$0xff]
        %v2858 = vld [vmem:[%s286] sm:$0xff]
        %v2859 = vld [vmem:[%s286 + $0x8] sm:$0xff]
        %v2860 = vld [vmem:[%s286 + $0x18] sm:$0xff]
        %v2861 = vld [vmem:[%s286 + $0x20] sm:$0xff]
        %v2862 = vld [vmem:[%s286 + $0x30] sm:$0xff]
        %v2863 = vld [vmem:[%s286 + $0x38] sm:$0xff]
        %v2864 = vld [vmem:[%s286 + $0x48] sm:$0xff]
        %v2865 = vld [vmem:[%s286 + $0x50] sm:$0xff]
        %v2866 = vld [vmem:[%s286 + $0x60] sm:$0xff]
        %v2867 = vld [vmem:[%s286 + $0x68] sm:$0xff]
        %v2868 = vld [vmem:[%s286 + $0x78] sm:$0xff]
        %v2869 = vld [vmem:[%s286 + $0x80] sm:$0xff]
        %v2870 = vld [vmem:[%s286 + $0x90] sm:$0xff]
        %v2871 = vld [vmem:[%s286 + $0x98] sm:$0xff]
        %v2872 = vld [vmem:[%s286 + $0xa8] sm:$0xff]
        %v2873 = vld [vmem:[%s286 + $0xb0] sm:$0xff]
        %v2874 = vld [vmem:[%s286 + $0xc0] sm:$0xff]
        %v2875 = vld [vmem:[%s286 + $0xc8] sm:$0xff]
        %v2876 = vld [vmem:[%s286 + $0xd8] sm:$0xff]
        %v2877 = vld [vmem:[%s286 + $0xe0] sm:$0xff]
        %v2878 = vld [vmem:[%s286 + $0xf0] sm:$0xff]
        %v2879 = vld [vmem:[%s286 + $0xf8] sm:$0xff]
        %v2880 = vld [vmem:[%s286 + $0x108] sm:$0xff]
        %v2881 = vld [vmem:[%s286 + $0x110] sm:$0xff]
        %v2882 = vld [vmem:[%s286 + $0x120] sm:$0xff]
        %v2883 = vld [vmem:[%s286 + $0x128] sm:$0xff]
        %v2884 = vld [vmem:[%s286 + $0x138] sm:$0xff]
        %v2885 = vld [vmem:[%s286 + $0x140] sm:$0xff]
        %v2886 = vld [vmem:[%s286 + $0x150] sm:$0xff]
        %v2887 = vld [vmem:[%s286 + $0x158] sm:$0xff]
        %v2888 = vld [vmem:[%s286 + $0x168] sm:$0xff]
        %v2889 = vld [vmem:[%s286 + $0x170] sm:$0xff]
        %2922 = vrot.lane.b32.xlu0 %v2794, 32
        %v2923 = vpop.permute.xlu0 %2922
        %2924 = vrot.lane.b32.xlu0 %v2795, 32
        %v2925 = vpop.permute.xlu0 %2924
        %2926 = vrot.lane.b32.xlu0 %v2796, 32
        %v2927 = vpop.permute.xlu0 %2926
        %2928 = vrot.lane.b32.xlu0 %v2797, 32
        %v2929 = vpop.permute.xlu0 %2928
        %2930 = vrot.lane.b32.xlu0 %v2798, 32
        %v2931 = vpop.permute.xlu0 %2930
        %2932 = vrot.lane.b32.xlu0 %v2799, 32
        %v2933 = vpop.permute.xlu0 %2932
        %2934 = vrot.lane.b32.xlu0 %v2800, 32
        %v2935 = vpop.permute.xlu0 %2934
        %2936 = vrot.lane.b32.xlu0 %v2801, 32
        %v2937 = vpop.permute.xlu0 %2936
        %2938 = vrot.lane.b32.xlu0 %v2802, 32
        %v2939 = vpop.permute.xlu0 %2938
        %2940 = vrot.lane.b32.xlu0 %v2803, 32
        %v2941 = vpop.permute.xlu0 %2940
        %2942 = vrot.lane.b32.xlu0 %v2804, 32
        %v2943 = vpop.permute.xlu0 %2942
        %2944 = vrot.lane.b32.xlu0 %v2805, 32
        %v2945 = vpop.permute.xlu0 %2944
        %2946 = vrot.lane.b32.xlu0 %v2806, 32
        %v2947 = vpop.permute.xlu0 %2946
        %2948 = vrot.lane.b32.xlu0 %v2807, 32
        %v2949 = vpop.permute.xlu0 %2948
        %2950 = vrot.lane.b32.xlu0 %v2808, 32
        %v2951 = vpop.permute.xlu0 %2950
        %2952 = vrot.lane.b32.xlu0 %v2809, 32
        %v2953 = vpop.permute.xlu0 %2952
        %2954 = vrot.lane.b32.xlu0 %v2810, 32
        %v2955 = vpop.permute.xlu0 %2954
        %2956 = vrot.lane.b32.xlu0 %v2811, 32
        %v2957 = vpop.permute.xlu0 %2956
        %2958 = vrot.lane.b32.xlu0 %v2812, 32
        %v2959 = vpop.permute.xlu0 %2958
        %2960 = vrot.lane.b32.xlu0 %v2813, 32
        %v2961 = vpop.permute.xlu0 %2960
        %2962 = vrot.lane.b32.xlu0 %v2814, 32
        %v2963 = vpop.permute.xlu0 %2962
        %2964 = vrot.lane.b32.xlu0 %v2815, 32
        %v2965 = vpop.permute.xlu0 %2964
        %2966 = vrot.lane.b32.xlu0 %v2816, 32
        %v2967 = vpop.permute.xlu0 %2966
        %2968 = vrot.lane.b32.xlu0 %v2817, 32
        %v2969 = vpop.permute.xlu0 %2968
        %2970 = vrot.lane.b32.xlu0 %v2818, 32
        %v2971 = vpop.permute.xlu0 %2970
        %2972 = vrot.lane.b32.xlu0 %v2819, 32
        %v2973 = vpop.permute.xlu0 %2972
        %2974 = vrot.lane.b32.xlu0 %v2820, 32
        %v2975 = vpop.permute.xlu0 %2974
        %2976 = vrot.lane.b32.xlu0 %v2821, 32
        %v2977 = vpop.permute.xlu0 %2976
        %2978 = vrot.lane.b32.xlu0 %v2822, 32
        %v2979 = vpop.permute.xlu0 %2978
        %2980 = vrot.lane.b32.xlu0 %v2823, 32
        %v2981 = vpop.permute.xlu0 %2980
        %2982 = vrot.lane.b32.xlu0 %v2824, 32
        %v2983 = vpop.permute.xlu0 %2982
        %2984 = vrot.lane.b32.xlu0 %v2825, 32
        %v2985 = vpop.permute.xlu0 %2984
        %3050 = vrot.lane.b32.xlu0 %v2826, 64
        %v3051 = vpop.permute.xlu0 %3050
        %3052 = vrot.lane.b32.xlu0 %v2827, 64
        %v3053 = vpop.permute.xlu0 %3052
        %3054 = vrot.lane.b32.xlu0 %v2828, 64
        %v3055 = vpop.permute.xlu0 %3054
        %3056 = vrot.lane.b32.xlu0 %v2829, 64
        %v3057 = vpop.permute.xlu0 %3056
        %3058 = vrot.lane.b32.xlu0 %v2830, 64
        %v3059 = vpop.permute.xlu0 %3058
        %3060 = vrot.lane.b32.xlu0 %v2831, 64
        %v3061 = vpop.permute.xlu0 %3060
        %3062 = vrot.lane.b32.xlu0 %v2832, 64
        %v3063 = vpop.permute.xlu0 %3062
        %3064 = vrot.lane.b32.xlu0 %v2833, 64
        %v3065 = vpop.permute.xlu0 %3064
        %3066 = vrot.lane.b32.xlu0 %v2834, 64
        %v3067 = vpop.permute.xlu0 %3066
        %3068 = vrot.lane.b32.xlu0 %v2835, 64
        %v3069 = vpop.permute.xlu0 %3068
        %3070 = vrot.lane.b32.xlu0 %v2836, 64
        %v3071 = vpop.permute.xlu0 %3070
        %3072 = vrot.lane.b32.xlu0 %v2837, 64
        %v3073 = vpop.permute.xlu0 %3072
        %3074 = vrot.lane.b32.xlu0 %v2838, 64
        %v3075 = vpop.permute.xlu0 %3074
        %3076 = vrot.lane.b32.xlu0 %v2839, 64
        %v3077 = vpop.permute.xlu0 %3076
        %3078 = vrot.lane.b32.xlu0 %v2840, 64
        %v3079 = vpop.permute.xlu0 %3078
        %3080 = vrot.lane.b32.xlu0 %v2841, 64
        %v3081 = vpop.permute.xlu0 %3080
        %3082 = vrot.lane.b32.xlu0 %v2842, 64
        %v3083 = vpop.permute.xlu0 %3082
        %3084 = vrot.lane.b32.xlu0 %v2843, 64
        %v3085 = vpop.permute.xlu0 %3084
        %3086 = vrot.lane.b32.xlu0 %v2844, 64
        %v3087 = vpop.permute.xlu0 %3086
        %3088 = vrot.lane.b32.xlu0 %v2845, 64
        %v3089 = vpop.permute.xlu0 %3088
        %3090 = vrot.lane.b32.xlu0 %v2846, 64
        %v3091 = vpop.permute.xlu0 %3090
        %3092 = vrot.lane.b32.xlu0 %v2847, 64
        %v3093 = vpop.permute.xlu0 %3092
        %3094 = vrot.lane.b32.xlu0 %v2848, 64
        %v3095 = vpop.permute.xlu0 %3094
        %3096 = vrot.lane.b32.xlu0 %v2849, 64
        %v3097 = vpop.permute.xlu0 %3096
        %3098 = vrot.lane.b32.xlu0 %v2850, 64
        %v3099 = vpop.permute.xlu0 %3098
        %3100 = vrot.lane.b32.xlu0 %v2851, 64
        %v3101 = vpop.permute.xlu0 %3100
        %3102 = vrot.lane.b32.xlu0 %v2852, 64
        %v3103 = vpop.permute.xlu0 %3102
        %3104 = vrot.lane.b32.xlu0 %v2853, 64
        %v3105 = vpop.permute.xlu0 %3104
        %3106 = vrot.lane.b32.xlu0 %v2854, 64
        %v3107 = vpop.permute.xlu0 %3106
        %3108 = vrot.lane.b32.xlu0 %v2855, 64
        %v3109 = vpop.permute.xlu0 %3108
        %3110 = vrot.lane.b32.xlu0 %v2856, 64
        %v3111 = vpop.permute.xlu0 %3110
        %3112 = vrot.lane.b32.xlu0 %v2857, 64
        %v3113 = vpop.permute.xlu0 %3112
        %3178 = vrot.lane.b32.xlu0 %v2858, 96
        %v3179 = vpop.permute.xlu0 %3178
        %3180 = vrot.lane.b32.xlu0 %v2859, 96
        %v3181 = vpop.permute.xlu0 %3180
        %3182 = vrot.lane.b32.xlu0 %v2860, 96
        %v3183 = vpop.permute.xlu0 %3182
        %3184 = vrot.lane.b32.xlu0 %v2861, 96
        %v3185 = vpop.permute.xlu0 %3184
        %3186 = vrot.lane.b32.xlu0 %v2862, 96
        %v3187 = vpop.permute.xlu0 %3186
        %3188 = vrot.lane.b32.xlu0 %v2863, 96
        %v3189 = vpop.permute.xlu0 %3188
        %3190 = vrot.lane.b32.xlu0 %v2864, 96
        %v3191 = vpop.permute.xlu0 %3190
        %3192 = vrot.lane.b32.xlu0 %v2865, 96
        %v3193 = vpop.permute.xlu0 %3192
        %3194 = vrot.lane.b32.xlu0 %v2866, 96
        %v3195 = vpop.permute.xlu0 %3194
        %3196 = vrot.lane.b32.xlu0 %v2867, 96
        %v3197 = vpop.permute.xlu0 %3196
        %3198 = vrot.lane.b32.xlu0 %v2868, 96
        %v3199 = vpop.permute.xlu0 %3198
        %3200 = vrot.lane.b32.xlu0 %v2869, 96
        %v3201 = vpop.permute.xlu0 %3200
        %3202 = vrot.lane.b32.xlu0 %v2870, 96
        %v3203 = vpop.permute.xlu0 %3202
        %3204 = vrot.lane.b32.xlu0 %v2871, 96
        %v3205 = vpop.permute.xlu0 %3204
        %3206 = vrot.lane.b32.xlu0 %v2872, 96
        %v3207 = vpop.permute.xlu0 %3206
        %3208 = vrot.lane.b32.xlu0 %v2873, 96
        %v3209 = vpop.permute.xlu0 %3208
        %3210 = vrot.lane.b32.xlu0 %v2874, 96
        %v3211 = vpop.permute.xlu0 %3210
        %3212 = vrot.lane.b32.xlu0 %v2875, 96
        %v3213 = vpop.permute.xlu0 %3212
        %3214 = vrot.lane.b32.xlu0 %v2876, 96
        %v3215 = vpop.permute.xlu0 %3214
        %3216 = vrot.lane.b32.xlu0 %v2877, 96
        %v3217 = vpop.permute.xlu0 %3216
        %3218 = vrot.lane.b32.xlu0 %v2878, 96
        %v3219 = vpop.permute.xlu0 %3218
        %3220 = vrot.lane.b32.xlu0 %v2879, 96
        %v3221 = vpop.permute.xlu0 %3220
        %3222 = vrot.lane.b32.xlu0 %v2880, 96
        %v3223 = vpop.permute.xlu0 %3222
        %3224 = vrot.lane.b32.xlu0 %v2881, 96
        %v3225 = vpop.permute.xlu0 %3224
        %3226 = vrot.lane.b32.xlu0 %v2882, 96
        %v3227 = vpop.permute.xlu0 %3226
        %3228 = vrot.lane.b32.xlu0 %v2883, 96
        %v3229 = vpop.permute.xlu0 %3228
        %3230 = vrot.lane.b32.xlu0 %v2884, 96
        %v3231 = vpop.permute.xlu0 %3230
        %3232 = vrot.lane.b32.xlu0 %v2885, 96
        %v3233 = vpop.permute.xlu0 %3232
        %3234 = vrot.lane.b32.xlu0 %v2886, 96
        %v3235 = vpop.permute.xlu0 %3234
        %3236 = vrot.lane.b32.xlu0 %v2887, 96
        %v3237 = vpop.permute.xlu0 %3236
        %3238 = vrot.lane.b32.xlu0 %v2888, 96
        %v3239 = vpop.permute.xlu0 %3238
        %3240 = vrot.lane.b32.xlu0 %v2889, 96
        %v3241 = vpop.permute.xlu0 %3240
        %v3274 = vsel %vm277, %v2762, %v2923
        %v3275 = vsel %vm277, %v2763, %v2925
        %v3276 = vsel %vm277, %v2764, %v2927
        %v3277 = vsel %vm277, %v2765, %v2929
        %v3278 = vsel %vm277, %v2766, %v2931
        %v3279 = vsel %vm277, %v2767, %v2933
        %v3280 = vsel %vm277, %v2768, %v2935
        %v3281 = vsel %vm277, %v2769, %v2937
        %v3282 = vsel %vm277, %v2770, %v2939
        %v3283 = vsel %vm277, %v2771, %v2941
        %v3284 = vsel %vm277, %v2772, %v2943
        %v3285 = vsel %vm277, %v2773, %v2945
        %v3286 = vsel %vm277, %v2774, %v2947
        %v3287 = vsel %vm277, %v2775, %v2949
        %v3288 = vsel %vm277, %v2776, %v2951
        %v3289 = vsel %vm277, %v2777, %v2953
        %v3290 = vsel %vm277, %v2778, %v2955
        %v3291 = vsel %vm277, %v2779, %v2957
        %v3292 = vsel %vm277, %v2780, %v2959
        %v3293 = vsel %vm277, %v2781, %v2961
        %v3294 = vsel %vm277, %v2782, %v2963
        %v3295 = vsel %vm277, %v2783, %v2965
        %v3296 = vsel %vm277, %v2784, %v2967
        %v3297 = vsel %vm277, %v2785, %v2969
        %v3298 = vsel %vm277, %v2786, %v2971
        %v3299 = vsel %vm277, %v2787, %v2973
        %v3300 = vsel %vm277, %v2788, %v2975
        %v3301 = vsel %vm277, %v2789, %v2977
        %v3302 = vsel %vm277, %v2790, %v2979
        %v3303 = vsel %vm277, %v2791, %v2981
        %v3304 = vsel %vm277, %v2792, %v2983
        %v3305 = vsel %vm277, %v2793, %v2985
        %v3306 = vsel %vm928, %v3274, %v3051
        %v3307 = vsel %vm928, %v3275, %v3053
        %v3308 = vsel %vm928, %v3276, %v3055
        %v3309 = vsel %vm928, %v3277, %v3057
        %v3310 = vsel %vm928, %v3278, %v3059
        %v3311 = vsel %vm928, %v3279, %v3061
        %v3312 = vsel %vm928, %v3280, %v3063
        %v3313 = vsel %vm928, %v3281, %v3065
        %v3314 = vsel %vm928, %v3282, %v3067
        %v3315 = vsel %vm928, %v3283, %v3069
        %v3316 = vsel %vm928, %v3284, %v3071
        %v3317 = vsel %vm928, %v3285, %v3073
        %v3318 = vsel %vm928, %v3286, %v3075
        %v3319 = vsel %vm928, %v3287, %v3077
        %v3320 = vsel %vm928, %v3288, %v3079
        %v3321 = vsel %vm928, %v3289, %v3081
        %v3322 = vsel %vm928, %v3290, %v3083
        %v3323 = vsel %vm928, %v3291, %v3085
        %v3324 = vsel %vm928, %v3292, %v3087
        %v3325 = vsel %vm928, %v3293, %v3089
        %v3326 = vsel %vm928, %v3294, %v3091
        %v3327 = vsel %vm928, %v3295, %v3093
        %v3328 = vsel %vm928, %v3296, %v3095
        %v3329 = vsel %vm928, %v3297, %v3097
        %v3330 = vsel %vm928, %v3298, %v3099
        %v3331 = vsel %vm928, %v3299, %v3101
        %v3332 = vsel %vm928, %v3300, %v3103
        %v3333 = vsel %vm928, %v3301, %v3105
        %v3334 = vsel %vm928, %v3302, %v3107
        %v3335 = vsel %vm928, %v3303, %v3109
        %v3336 = vsel %vm928, %v3304, %v3111
        %v3337 = vsel %vm928, %v3305, %v3113
        %v3338 = vsel %vm961, %v3306, %v3179
        %v3339 = vsel %vm961, %v3307, %v3181
        %v3340 = vsel %vm961, %v3308, %v3183
        %v3341 = vsel %vm961, %v3309, %v3185
        %v3342 = vsel %vm961, %v3310, %v3187
        %v3343 = vsel %vm961, %v3311, %v3189
        %v3344 = vsel %vm961, %v3312, %v3191
        %v3345 = vsel %vm961, %v3313, %v3193
        %v3346 = vsel %vm961, %v3314, %v3195
        %v3347 = vsel %vm961, %v3315, %v3197
        %v3348 = vsel %vm961, %v3316, %v3199
        %v3349 = vsel %vm961, %v3317, %v3201
        %v3350 = vsel %vm961, %v3318, %v3203
        %v3351 = vsel %vm961, %v3319, %v3205
        %v3352 = vsel %vm961, %v3320, %v3207
        %v3353 = vsel %vm961, %v3321, %v3209
        %v3354 = vsel %vm961, %v3322, %v3211
        %v3355 = vsel %vm961, %v3323, %v3213
        %v3356 = vsel %vm961, %v3324, %v3215
        %v3357 = vsel %vm961, %v3325, %v3217
        %v3358 = vsel %vm961, %v3326, %v3219
        %v3359 = vsel %vm961, %v3327, %v3221
        %v3360 = vsel %vm961, %v3328, %v3223
        %v3361 = vsel %vm961, %v3329, %v3225
        %v3362 = vsel %vm961, %v3330, %v3227
        %v3363 = vsel %vm961, %v3331, %v3229
        %v3364 = vsel %vm961, %v3332, %v3231
        %v3365 = vsel %vm961, %v3333, %v3233
        %v3366 = vsel %vm961, %v3334, %v3235
        %v3367 = vsel %vm961, %v3335, %v3237
        %v3368 = vsel %vm961, %v3336, %v3239
        %v3369 = vsel %vm961, %v3337, %v3241
        %3370 = vst [vmem:[#allocation3] sm:$0xff] %v3338
        %3371 = vst [vmem:[#allocation3 + $0x18] sm:$0xff] %v3339
        %3372 = vst [vmem:[#allocation3 + $0x30] sm:$0xff] %v3340
        %3373 = vst [vmem:[#allocation3 + $0x48] sm:$0xff] %v3341
        %3374 = vst [vmem:[#allocation3 + $0x60] sm:$0xff] %v3342
        %3375 = vst [vmem:[#allocation3 + $0x78] sm:$0xff] %v3343
        %3376 = vst [vmem:[#allocation3 + $0x90] sm:$0xff] %v3344
        %3377 = vst [vmem:[#allocation3 + $0xa8] sm:$0xff] %v3345
        %3378 = vst [vmem:[#allocation3 + $0xc0] sm:$0xff] %v3346
        %3379 = vst [vmem:[#allocation3 + $0xd8] sm:$0xff] %v3347
        %3380 = vst [vmem:[#allocation3 + $0xf0] sm:$0xff] %v3348
        %3381 = vst [vmem:[#allocation3 + $0x108] sm:$0xff] %v3349
        %3382 = vst [vmem:[#allocation3 + $0x120] sm:$0xff] %v3350
        %3383 = vst [vmem:[#allocation3 + $0x138] sm:$0xff] %v3351
        %3384 = vst [vmem:[#allocation3 + $0x150] sm:$0xff] %v3352
        %3385 = vst [vmem:[#allocation3 + $0x168] sm:$0xff] %v3353
        %3386 = vst [vmem:[#allocation3 + $0x180] sm:$0xff] %v3354
        %3387 = vst [vmem:[#allocation3 + $0x198] sm:$0xff] %v3355
        %3388 = vst [vmem:[#allocation3 + $0x1b0] sm:$0xff] %v3356
        %3389 = vst [vmem:[#allocation3 + $0x1c8] sm:$0xff] %v3357
        %3390 = vst [vmem:[#allocation3 + $0x1e0] sm:$0xff] %v3358
        %3391 = vst [vmem:[#allocation3 + $0x1f8] sm:$0xff] %v3359
        %3392 = vst [vmem:[#allocation3 + $0x210] sm:$0xff] %v3360
        %3393 = vst [vmem:[#allocation3 + $0x228] sm:$0xff] %v3361
        %3394 = vst [vmem:[#allocation3 + $0x240] sm:$0xff] %v3362
        %3395 = vst [vmem:[#allocation3 + $0x258] sm:$0xff] %v3363
        %3396 = vst [vmem:[#allocation3 + $0x270] sm:$0xff] %v3364
        %3397 = vst [vmem:[#allocation3 + $0x288] sm:$0xff] %v3365
        %3398 = vst [vmem:[#allocation3 + $0x2a0] sm:$0xff] %v3366
        %3399 = vst [vmem:[#allocation3 + $0x2b8] sm:$0xff] %v3367
        %3400 = vst [vmem:[#allocation3 + $0x2d0] sm:$0xff] %v3368
        %3401 = vst [vmem:[#allocation3 + $0x2e8] sm:$0xff] %v3369
        %v3402 = vld [vmem:[%s286 + $0x1] sm:$0xff]
        %v3403 = vld [vmem:[%s286 + $0x9] sm:$0xff]
        %v3404 = vld [vmem:[%s286 + $0x19] sm:$0xff]
        %v3405 = vld [vmem:[%s286 + $0x21] sm:$0xff]
        %v3406 = vld [vmem:[%s286 + $0x31] sm:$0xff]
        %v3407 = vld [vmem:[%s286 + $0x39] sm:$0xff]
        %v3408 = vld [vmem:[%s286 + $0x49] sm:$0xff]
        %v3409 = vld [vmem:[%s286 + $0x51] sm:$0xff]
        %v3410 = vld [vmem:[%s286 + $0x61] sm:$0xff]
        %v3411 = vld [vmem:[%s286 + $0x69] sm:$0xff]
        %v3412 = vld [vmem:[%s286 + $0x79] sm:$0xff]
        %v3413 = vld [vmem:[%s286 + $0x81] sm:$0xff]
        %v3414 = vld [vmem:[%s286 + $0x91] sm:$0xff]
        %v3415 = vld [vmem:[%s286 + $0x99] sm:$0xff]
        %v3416 = vld [vmem:[%s286 + $0xa9] sm:$0xff]
        %v3417 = vld [vmem:[%s286 + $0xb1] sm:$0xff]
        %v3418 = vld [vmem:[%s286 + $0xc1] sm:$0xff]
        %v3419 = vld [vmem:[%s286 + $0xc9] sm:$0xff]
        %v3420 = vld [vmem:[%s286 + $0xd9] sm:$0xff]
        %v3421 = vld [vmem:[%s286 + $0xe1] sm:$0xff]
        %v3422 = vld [vmem:[%s286 + $0xf1] sm:$0xff]
        %v3423 = vld [vmem:[%s286 + $0xf9] sm:$0xff]
        %v3424 = vld [vmem:[%s286 + $0x109] sm:$0xff]
        %v3425 = vld [vmem:[%s286 + $0x111] sm:$0xff]
        %v3426 = vld [vmem:[%s286 + $0x121] sm:$0xff]
        %v3427 = vld [vmem:[%s286 + $0x129] sm:$0xff]
        %v3428 = vld [vmem:[%s286 + $0x139] sm:$0xff]
        %v3429 = vld [vmem:[%s286 + $0x141] sm:$0xff]
        %v3430 = vld [vmem:[%s286 + $0x151] sm:$0xff]
        %v3431 = vld [vmem:[%s286 + $0x159] sm:$0xff]
        %v3432 = vld [vmem:[%s286 + $0x169] sm:$0xff]
        %v3433 = vld [vmem:[%s286 + $0x171] sm:$0xff]
        %v3434 = vld [vmem:[%s286 + $0x2] sm:$0xff]
        %v3435 = vld [vmem:[%s286 + $0xa] sm:$0xff]
        %v3436 = vld [vmem:[%s286 + $0x1a] sm:$0xff]
        %v3437 = vld [vmem:[%s286 + $0x22] sm:$0xff]
        %v3438 = vld [vmem:[%s286 + $0x32] sm:$0xff]
        %v3439 = vld [vmem:[%s286 + $0x3a] sm:$0xff]
        %v3440 = vld [vmem:[%s286 + $0x4a] sm:$0xff]
        %v3441 = vld [vmem:[%s286 + $0x52] sm:$0xff]
        %v3442 = vld [vmem:[%s286 + $0x62] sm:$0xff]
        %v3443 = vld [vmem:[%s286 + $0x6a] sm:$0xff]
        %v3444 = vld [vmem:[%s286 + $0x7a] sm:$0xff]
        %v3445 = vld [vmem:[%s286 + $0x82] sm:$0xff]
        %v3446 = vld [vmem:[%s286 + $0x92] sm:$0xff]
        %v3447 = vld [vmem:[%s286 + $0x9a] sm:$0xff]
        %v3448 = vld [vmem:[%s286 + $0xaa] sm:$0xff]
        %v3449 = vld [vmem:[%s286 + $0xb2] sm:$0xff]
        %v3450 = vld [vmem:[%s286 + $0xc2] sm:$0xff]
        %v3451 = vld [vmem:[%s286 + $0xca] sm:$0xff]
        %v3452 = vld [vmem:[%s286 + $0xda] sm:$0xff]
        %v3453 = vld [vmem:[%s286 + $0xe2] sm:$0xff]
        %v3454 = vld [vmem:[%s286 + $0xf2] sm:$0xff]
        %v3455 = vld [vmem:[%s286 + $0xfa] sm:$0xff]
        %v3456 = vld [vmem:[%s286 + $0x10a] sm:$0xff]
        %v3457 = vld [vmem:[%s286 + $0x112] sm:$0xff]
        %v3458 = vld [vmem:[%s286 + $0x122] sm:$0xff]
        %v3459 = vld [vmem:[%s286 + $0x12a] sm:$0xff]
        %v3460 = vld [vmem:[%s286 + $0x13a] sm:$0xff]
        %v3461 = vld [vmem:[%s286 + $0x142] sm:$0xff]
        %v3462 = vld [vmem:[%s286 + $0x152] sm:$0xff]
        %v3463 = vld [vmem:[%s286 + $0x15a] sm:$0xff]
        %v3464 = vld [vmem:[%s286 + $0x16a] sm:$0xff]
        %v3465 = vld [vmem:[%s286 + $0x172] sm:$0xff]
        %v3466 = vld [vmem:[%s1090] sm:$0xff]
        %v3467 = vld [vmem:[%s1090 + $0x8] sm:$0xff]
        %v3468 = vld [vmem:[%s1090 + $0x18] sm:$0xff]
        %v3469 = vld [vmem:[%s1090 + $0x20] sm:$0xff]
        %v3470 = vld [vmem:[%s1090 + $0x30] sm:$0xff]
        %v3471 = vld [vmem:[%s1090 + $0x38] sm:$0xff]
        %v3472 = vld [vmem:[%s1090 + $0x48] sm:$0xff]
        %v3473 = vld [vmem:[%s1090 + $0x50] sm:$0xff]
        %v3474 = vld [vmem:[%s1090 + $0x60] sm:$0xff]
        %v3475 = vld [vmem:[%s1090 + $0x68] sm:$0xff]
        %v3476 = vld [vmem:[%s1090 + $0x78] sm:$0xff]
        %v3477 = vld [vmem:[%s1090 + $0x80] sm:$0xff]
        %v3478 = vld [vmem:[%s1090 + $0x90] sm:$0xff]
        %v3479 = vld [vmem:[%s1090 + $0x98] sm:$0xff]
        %v3480 = vld [vmem:[%s1090 + $0xa8] sm:$0xff]
        %v3481 = vld [vmem:[%s1090 + $0xb0] sm:$0xff]
        %v3482 = vld [vmem:[%s1090 + $0xc0] sm:$0xff]
        %v3483 = vld [vmem:[%s1090 + $0xc8] sm:$0xff]
        %v3484 = vld [vmem:[%s1090 + $0xd8] sm:$0xff]
        %v3485 = vld [vmem:[%s1090 + $0xe0] sm:$0xff]
        %v3486 = vld [vmem:[%s1090 + $0xf0] sm:$0xff]
        %v3487 = vld [vmem:[%s1090 + $0xf8] sm:$0xff]
        %v3488 = vld [vmem:[%s1090 + $0x108] sm:$0xff]
        %v3489 = vld [vmem:[%s1090 + $0x110] sm:$0xff]
        %v3490 = vld [vmem:[%s1090 + $0x120] sm:$0xff]
        %v3491 = vld [vmem:[%s1090 + $0x128] sm:$0xff]
        %v3492 = vld [vmem:[%s1090 + $0x138] sm:$0xff]
        %v3493 = vld [vmem:[%s1090 + $0x140] sm:$0xff]
        %v3494 = vld [vmem:[%s1090 + $0x150] sm:$0xff]
        %v3495 = vld [vmem:[%s1090 + $0x158] sm:$0xff]
        %v3496 = vld [vmem:[%s1090 + $0x168] sm:$0xff]
        %v3497 = vld [vmem:[%s1090 + $0x170] sm:$0xff]
        %v3498 = vld [vmem:[%s1090 + $0x1] sm:$0xff]
        %v3499 = vld [vmem:[%s1090 + $0x9] sm:$0xff]
        %v3500 = vld [vmem:[%s1090 + $0x19] sm:$0xff]
        %v3501 = vld [vmem:[%s1090 + $0x21] sm:$0xff]
        %v3502 = vld [vmem:[%s1090 + $0x31] sm:$0xff]
        %v3503 = vld [vmem:[%s1090 + $0x39] sm:$0xff]
        %v3504 = vld [vmem:[%s1090 + $0x49] sm:$0xff]
        %v3505 = vld [vmem:[%s1090 + $0x51] sm:$0xff]
        %v3506 = vld [vmem:[%s1090 + $0x61] sm:$0xff]
        %v3507 = vld [vmem:[%s1090 + $0x69] sm:$0xff]
        %v3508 = vld [vmem:[%s1090 + $0x79] sm:$0xff]
        %v3509 = vld [vmem:[%s1090 + $0x81] sm:$0xff]
        %v3510 = vld [vmem:[%s1090 + $0x91] sm:$0xff]
        %v3511 = vld [vmem:[%s1090 + $0x99] sm:$0xff]
        %v3512 = vld [vmem:[%s1090 + $0xa9] sm:$0xff]
        %v3513 = vld [vmem:[%s1090 + $0xb1] sm:$0xff]
        %v3514 = vld [vmem:[%s1090 + $0xc1] sm:$0xff]
        %v3515 = vld [vmem:[%s1090 + $0xc9] sm:$0xff]
        %v3516 = vld [vmem:[%s1090 + $0xd9] sm:$0xff]
        %v3517 = vld [vmem:[%s1090 + $0xe1] sm:$0xff]
        %v3518 = vld [vmem:[%s1090 + $0xf1] sm:$0xff]
        %v3519 = vld [vmem:[%s1090 + $0xf9] sm:$0xff]
        %v3520 = vld [vmem:[%s1090 + $0x109] sm:$0xff]
        %v3521 = vld [vmem:[%s1090 + $0x111] sm:$0xff]
        %v3522 = vld [vmem:[%s1090 + $0x121] sm:$0xff]
        %v3523 = vld [vmem:[%s1090 + $0x129] sm:$0xff]
        %v3524 = vld [vmem:[%s1090 + $0x139] sm:$0xff]
        %v3525 = vld [vmem:[%s1090 + $0x141] sm:$0xff]
        %v3526 = vld [vmem:[%s1090 + $0x151] sm:$0xff]
        %v3527 = vld [vmem:[%s1090 + $0x159] sm:$0xff]
        %v3528 = vld [vmem:[%s1090 + $0x169] sm:$0xff]
        %v3529 = vld [vmem:[%s1090 + $0x171] sm:$0xff]
        %3562 = vrot.lane.b32.xlu0 %v3434, 32
        %v3563 = vpop.permute.xlu0 %3562
        %3564 = vrot.lane.b32.xlu0 %v3435, 32
        %v3565 = vpop.permute.xlu0 %3564
        %3566 = vrot.lane.b32.xlu0 %v3436, 32
        %v3567 = vpop.permute.xlu0 %3566
        %3568 = vrot.lane.b32.xlu0 %v3437, 32
        %v3569 = vpop.permute.xlu0 %3568
        %3570 = vrot.lane.b32.xlu0 %v3438, 32
        %v3571 = vpop.permute.xlu0 %3570
        %3572 = vrot.lane.b32.xlu0 %v3439, 32
        %v3573 = vpop.permute.xlu0 %3572
        %3574 = vrot.lane.b32.xlu0 %v3440, 32
        %v3575 = vpop.permute.xlu0 %3574
        %3576 = vrot.lane.b32.xlu0 %v3441, 32
        %v3577 = vpop.permute.xlu0 %3576
        %3578 = vrot.lane.b32.xlu0 %v3442, 32
        %v3579 = vpop.permute.xlu0 %3578
        %3580 = vrot.lane.b32.xlu0 %v3443, 32
        %v3581 = vpop.permute.xlu0 %3580
        %3582 = vrot.lane.b32.xlu0 %v3444, 32
        %v3583 = vpop.permute.xlu0 %3582
        %3584 = vrot.lane.b32.xlu0 %v3445, 32
        %v3585 = vpop.permute.xlu0 %3584
        %3586 = vrot.lane.b32.xlu0 %v3446, 32
        %v3587 = vpop.permute.xlu0 %3586
        %3588 = vrot.lane.b32.xlu0 %v3447, 32
        %v3589 = vpop.permute.xlu0 %3588
        %3590 = vrot.lane.b32.xlu0 %v3448, 32
        %v3591 = vpop.permute.xlu0 %3590
        %3592 = vrot.lane.b32.xlu0 %v3449, 32
        %v3593 = vpop.permute.xlu0 %3592
        %3594 = vrot.lane.b32.xlu0 %v3450, 32
        %v3595 = vpop.permute.xlu0 %3594
        %3596 = vrot.lane.b32.xlu0 %v3451, 32
        %v3597 = vpop.permute.xlu0 %3596
        %3598 = vrot.lane.b32.xlu0 %v3452, 32
        %v3599 = vpop.permute.xlu0 %3598
        %3600 = vrot.lane.b32.xlu0 %v3453, 32
        %v3601 = vpop.permute.xlu0 %3600
        %3602 = vrot.lane.b32.xlu0 %v3454, 32
        %v3603 = vpop.permute.xlu0 %3602
        %3604 = vrot.lane.b32.xlu0 %v3455, 32
        %v3605 = vpop.permute.xlu0 %3604
        %3606 = vrot.lane.b32.xlu0 %v3456, 32
        %v3607 = vpop.permute.xlu0 %3606
        %3608 = vrot.lane.b32.xlu0 %v3457, 32
        %v3609 = vpop.permute.xlu0 %3608
        %3610 = vrot.lane.b32.xlu0 %v3458, 32
        %v3611 = vpop.permute.xlu0 %3610
        %3612 = vrot.lane.b32.xlu0 %v3459, 32
        %v3613 = vpop.permute.xlu0 %3612
        %3614 = vrot.lane.b32.xlu0 %v3460, 32
        %v3615 = vpop.permute.xlu0 %3614
        %3616 = vrot.lane.b32.xlu0 %v3461, 32
        %v3617 = vpop.permute.xlu0 %3616
        %3618 = vrot.lane.b32.xlu0 %v3462, 32
        %v3619 = vpop.permute.xlu0 %3618
        %3620 = vrot.lane.b32.xlu0 %v3463, 32
        %v3621 = vpop.permute.xlu0 %3620
        %3622 = vrot.lane.b32.xlu0 %v3464, 32
        %v3623 = vpop.permute.xlu0 %3622
        %3624 = vrot.lane.b32.xlu0 %v3465, 32
        %v3625 = vpop.permute.xlu0 %3624
        %3690 = vrot.lane.b32.xlu0 %v3466, 64
        %v3691 = vpop.permute.xlu0 %3690
        %3692 = vrot.lane.b32.xlu0 %v3467, 64
        %v3693 = vpop.permute.xlu0 %3692
        %3694 = vrot.lane.b32.xlu0 %v3468, 64
        %v3695 = vpop.permute.xlu0 %3694
        %3696 = vrot.lane.b32.xlu0 %v3469, 64
        %v3697 = vpop.permute.xlu0 %3696
        %3698 = vrot.lane.b32.xlu0 %v3470, 64
        %v3699 = vpop.permute.xlu0 %3698
        %3700 = vrot.lane.b32.xlu0 %v3471, 64
        %v3701 = vpop.permute.xlu0 %3700
        %3702 = vrot.lane.b32.xlu0 %v3472, 64
        %v3703 = vpop.permute.xlu0 %3702
        %3704 = vrot.lane.b32.xlu0 %v3473, 64
        %v3705 = vpop.permute.xlu0 %3704
        %3706 = vrot.lane.b32.xlu0 %v3474, 64
        %v3707 = vpop.permute.xlu0 %3706
        %3708 = vrot.lane.b32.xlu0 %v3475, 64
        %v3709 = vpop.permute.xlu0 %3708
        %3710 = vrot.lane.b32.xlu0 %v3476, 64
        %v3711 = vpop.permute.xlu0 %3710
        %3712 = vrot.lane.b32.xlu0 %v3477, 64
        %v3713 = vpop.permute.xlu0 %3712
        %3714 = vrot.lane.b32.xlu0 %v3478, 64
        %v3715 = vpop.permute.xlu0 %3714
        %3716 = vrot.lane.b32.xlu0 %v3479, 64
        %v3717 = vpop.permute.xlu0 %3716
        %3718 = vrot.lane.b32.xlu0 %v3480, 64
        %v3719 = vpop.permute.xlu0 %3718
        %3720 = vrot.lane.b32.xlu0 %v3481, 64
        %v3721 = vpop.permute.xlu0 %3720
        %3722 = vrot.lane.b32.xlu0 %v3482, 64
        %v3723 = vpop.permute.xlu0 %3722
        %3724 = vrot.lane.b32.xlu0 %v3483, 64
        %v3725 = vpop.permute.xlu0 %3724
        %3726 = vrot.lane.b32.xlu0 %v3484, 64
        %v3727 = vpop.permute.xlu0 %3726
        %3728 = vrot.lane.b32.xlu0 %v3485, 64
        %v3729 = vpop.permute.xlu0 %3728
        %3730 = vrot.lane.b32.xlu0 %v3486, 64
        %v3731 = vpop.permute.xlu0 %3730
        %3732 = vrot.lane.b32.xlu0 %v3487, 64
        %v3733 = vpop.permute.xlu0 %3732
        %3734 = vrot.lane.b32.xlu0 %v3488, 64
        %v3735 = vpop.permute.xlu0 %3734
        %3736 = vrot.lane.b32.xlu0 %v3489, 64
        %v3737 = vpop.permute.xlu0 %3736
        %3738 = vrot.lane.b32.xlu0 %v3490, 64
        %v3739 = vpop.permute.xlu0 %3738
        %3740 = vrot.lane.b32.xlu0 %v3491, 64
        %v3741 = vpop.permute.xlu0 %3740
        %3742 = vrot.lane.b32.xlu0 %v3492, 64
        %v3743 = vpop.permute.xlu0 %3742
        %3744 = vrot.lane.b32.xlu0 %v3493, 64
        %v3745 = vpop.permute.xlu0 %3744
        %3746 = vrot.lane.b32.xlu0 %v3494, 64
        %v3747 = vpop.permute.xlu0 %3746
        %3748 = vrot.lane.b32.xlu0 %v3495, 64
        %v3749 = vpop.permute.xlu0 %3748
        %3750 = vrot.lane.b32.xlu0 %v3496, 64
        %v3751 = vpop.permute.xlu0 %3750
        %3752 = vrot.lane.b32.xlu0 %v3497, 64
        %v3753 = vpop.permute.xlu0 %3752
        %3818 = vrot.lane.b32.xlu0 %v3498, 96
        %v3819 = vpop.permute.xlu0 %3818
        %3820 = vrot.lane.b32.xlu0 %v3499, 96
        %v3821 = vpop.permute.xlu0 %3820
        %3822 = vrot.lane.b32.xlu0 %v3500, 96
        %v3823 = vpop.permute.xlu0 %3822
        %3824 = vrot.lane.b32.xlu0 %v3501, 96
        %v3825 = vpop.permute.xlu0 %3824
        %3826 = vrot.lane.b32.xlu0 %v3502, 96
        %v3827 = vpop.permute.xlu0 %3826
        %3828 = vrot.lane.b32.xlu0 %v3503, 96
        %v3829 = vpop.permute.xlu0 %3828
        %3830 = vrot.lane.b32.xlu0 %v3504, 96
        %v3831 = vpop.permute.xlu0 %3830
        %3832 = vrot.lane.b32.xlu0 %v3505, 96
        %v3833 = vpop.permute.xlu0 %3832
        %3834 = vrot.lane.b32.xlu0 %v3506, 96
        %v3835 = vpop.permute.xlu0 %3834
        %3836 = vrot.lane.b32.xlu0 %v3507, 96
        %v3837 = vpop.permute.xlu0 %3836
        %3838 = vrot.lane.b32.xlu0 %v3508, 96
        %v3839 = vpop.permute.xlu0 %3838
        %3840 = vrot.lane.b32.xlu0 %v3509, 96
        %v3841 = vpop.permute.xlu0 %3840
        %3842 = vrot.lane.b32.xlu0 %v3510, 96
        %v3843 = vpop.permute.xlu0 %3842
        %3844 = vrot.lane.b32.xlu0 %v3511, 96
        %v3845 = vpop.permute.xlu0 %3844
        %3846 = vrot.lane.b32.xlu0 %v3512, 96
        %v3847 = vpop.permute.xlu0 %3846
        %3848 = vrot.lane.b32.xlu0 %v3513, 96
        %v3849 = vpop.permute.xlu0 %3848
        %3850 = vrot.lane.b32.xlu0 %v3514, 96
        %v3851 = vpop.permute.xlu0 %3850
        %3852 = vrot.lane.b32.xlu0 %v3515, 96
        %v3853 = vpop.permute.xlu0 %3852
        %3854 = vrot.lane.b32.xlu0 %v3516, 96
        %v3855 = vpop.permute.xlu0 %3854
        %3856 = vrot.lane.b32.xlu0 %v3517, 96
        %v3857 = vpop.permute.xlu0 %3856
        %3858 = vrot.lane.b32.xlu0 %v3518, 96
        %v3859 = vpop.permute.xlu0 %3858
        %3860 = vrot.lane.b32.xlu0 %v3519, 96
        %v3861 = vpop.permute.xlu0 %3860
        %3862 = vrot.lane.b32.xlu0 %v3520, 96
        %v3863 = vpop.permute.xlu0 %3862
        %3864 = vrot.lane.b32.xlu0 %v3521, 96
        %v3865 = vpop.permute.xlu0 %3864
        %3866 = vrot.lane.b32.xlu0 %v3522, 96
        %v3867 = vpop.permute.xlu0 %3866
        %3868 = vrot.lane.b32.xlu0 %v3523, 96
        %v3869 = vpop.permute.xlu0 %3868
        %3870 = vrot.lane.b32.xlu0 %v3524, 96
        %v3871 = vpop.permute.xlu0 %3870
        %3872 = vrot.lane.b32.xlu0 %v3525, 96
        %v3873 = vpop.permute.xlu0 %3872
        %3874 = vrot.lane.b32.xlu0 %v3526, 96
        %v3875 = vpop.permute.xlu0 %3874
        %3876 = vrot.lane.b32.xlu0 %v3527, 96
        %v3877 = vpop.permute.xlu0 %3876
        %3878 = vrot.lane.b32.xlu0 %v3528, 96
        %v3879 = vpop.permute.xlu0 %3878
        %3880 = vrot.lane.b32.xlu0 %v3529, 96
        %v3881 = vpop.permute.xlu0 %3880
        %v3914 = vsel %vm277, %v3402, %v3563
        %v3915 = vsel %vm277, %v3403, %v3565
        %v3916 = vsel %vm277, %v3404, %v3567
        %v3917 = vsel %vm277, %v3405, %v3569
        %v3918 = vsel %vm277, %v3406, %v3571
        %v3919 = vsel %vm277, %v3407, %v3573
        %v3920 = vsel %vm277, %v3408, %v3575
        %v3921 = vsel %vm277, %v3409, %v3577
        %v3922 = vsel %vm277, %v3410, %v3579
        %v3923 = vsel %vm277, %v3411, %v3581
        %v3924 = vsel %vm277, %v3412, %v3583
        %v3925 = vsel %vm277, %v3413, %v3585
        %v3926 = vsel %vm277, %v3414, %v3587
        %v3927 = vsel %vm277, %v3415, %v3589
        %v3928 = vsel %vm277, %v3416, %v3591
        %v3929 = vsel %vm277, %v3417, %v3593
        %v3930 = vsel %vm277, %v3418, %v3595
        %v3931 = vsel %vm277, %v3419, %v3597
        %v3932 = vsel %vm277, %v3420, %v3599
        %v3933 = vsel %vm277, %v3421, %v3601
        %v3934 = vsel %vm277, %v3422, %v3603
        %v3935 = vsel %vm277, %v3423, %v3605
        %v3936 = vsel %vm277, %v3424, %v3607
        %v3937 = vsel %vm277, %v3425, %v3609
        %v3938 = vsel %vm277, %v3426, %v3611
        %v3939 = vsel %vm277, %v3427, %v3613
        %v3940 = vsel %vm277, %v3428, %v3615
        %v3941 = vsel %vm277, %v3429, %v3617
        %v3942 = vsel %vm277, %v3430, %v3619
        %v3943 = vsel %vm277, %v3431, %v3621
        %v3944 = vsel %vm277, %v3432, %v3623
        %v3945 = vsel %vm277, %v3433, %v3625
        %v3946 = vsel %vm928, %v3914, %v3691
        %v3947 = vsel %vm928, %v3915, %v3693
        %v3948 = vsel %vm928, %v3916, %v3695
        %v3949 = vsel %vm928, %v3917, %v3697
        %v3950 = vsel %vm928, %v3918, %v3699
        %v3951 = vsel %vm928, %v3919, %v3701
        %v3952 = vsel %vm928, %v3920, %v3703
        %v3953 = vsel %vm928, %v3921, %v3705
        %v3954 = vsel %vm928, %v3922, %v3707
        %v3955 = vsel %vm928, %v3923, %v3709
        %v3956 = vsel %vm928, %v3924, %v3711
        %v3957 = vsel %vm928, %v3925, %v3713
        %v3958 = vsel %vm928, %v3926, %v3715
        %v3959 = vsel %vm928, %v3927, %v3717
        %v3960 = vsel %vm928, %v3928, %v3719
        %v3961 = vsel %vm928, %v3929, %v3721
        %v3962 = vsel %vm928, %v3930, %v3723
        %v3963 = vsel %vm928, %v3931, %v3725
        %v3964 = vsel %vm928, %v3932, %v3727
        %v3965 = vsel %vm928, %v3933, %v3729
        %v3966 = vsel %vm928, %v3934, %v3731
        %v3967 = vsel %vm928, %v3935, %v3733
        %v3968 = vsel %vm928, %v3936, %v3735
        %v3969 = vsel %vm928, %v3937, %v3737
        %v3970 = vsel %vm928, %v3938, %v3739
        %v3971 = vsel %vm928, %v3939, %v3741
        %v3972 = vsel %vm928, %v3940, %v3743
        %v3973 = vsel %vm928, %v3941, %v3745
        %v3974 = vsel %vm928, %v3942, %v3747
        %v3975 = vsel %vm928, %v3943, %v3749
        %v3976 = vsel %vm928, %v3944, %v3751
        %v3977 = vsel %vm928, %v3945, %v3753
        %v3978 = vsel %vm961, %v3946, %v3819
        %v3979 = vsel %vm961, %v3947, %v3821
        %v3980 = vsel %vm961, %v3948, %v3823
        %v3981 = vsel %vm961, %v3949, %v3825
        %v3982 = vsel %vm961, %v3950, %v3827
        %v3983 = vsel %vm961, %v3951, %v3829
        %v3984 = vsel %vm961, %v3952, %v3831
        %v3985 = vsel %vm961, %v3953, %v3833
        %v3986 = vsel %vm961, %v3954, %v3835
        %v3987 = vsel %vm961, %v3955, %v3837
        %v3988 = vsel %vm961, %v3956, %v3839
        %v3989 = vsel %vm961, %v3957, %v3841
        %v3990 = vsel %vm961, %v3958, %v3843
        %v3991 = vsel %vm961, %v3959, %v3845
        %v3992 = vsel %vm961, %v3960, %v3847
        %v3993 = vsel %vm961, %v3961, %v3849
        %v3994 = vsel %vm961, %v3962, %v3851
        %v3995 = vsel %vm961, %v3963, %v3853
        %v3996 = vsel %vm961, %v3964, %v3855
        %v3997 = vsel %vm961, %v3965, %v3857
        %v3998 = vsel %vm961, %v3966, %v3859
        %v3999 = vsel %vm961, %v3967, %v3861
        %v4000 = vsel %vm961, %v3968, %v3863
        %v4001 = vsel %vm961, %v3969, %v3865
        %v4002 = vsel %vm961, %v3970, %v3867
        %v4003 = vsel %vm961, %v3971, %v3869
        %v4004 = vsel %vm961, %v3972, %v3871
        %v4005 = vsel %vm961, %v3973, %v3873
        %v4006 = vsel %vm961, %v3974, %v3875
        %v4007 = vsel %vm961, %v3975, %v3877
        %v4008 = vsel %vm961, %v3976, %v3879
        %v4009 = vsel %vm961, %v3977, %v3881
        %4010 = vst [vmem:[#allocation3 + $0x8] sm:$0xff] %v3978
        %4011 = vst [vmem:[#allocation3 + $0x20] sm:$0xff] %v3979
        %4012 = vst [vmem:[#allocation3 + $0x38] sm:$0xff] %v3980
        %4013 = vst [vmem:[#allocation3 + $0x50] sm:$0xff] %v3981
        %4014 = vst [vmem:[#allocation3 + $0x68] sm:$0xff] %v3982
        %4015 = vst [vmem:[#allocation3 + $0x80] sm:$0xff] %v3983
        %4016 = vst [vmem:[#allocation3 + $0x98] sm:$0xff] %v3984
        %4017 = vst [vmem:[#allocation3 + $0xb0] sm:$0xff] %v3985
        %4018 = vst [vmem:[#allocation3 + $0xc8] sm:$0xff] %v3986
        %4019 = vst [vmem:[#allocation3 + $0xe0] sm:$0xff] %v3987
        %4020 = vst [vmem:[#allocation3 + $0xf8] sm:$0xff] %v3988
        %4021 = vst [vmem:[#allocation3 + $0x110] sm:$0xff] %v3989
        %4022 = vst [vmem:[#allocation3 + $0x128] sm:$0xff] %v3990
        %4023 = vst [vmem:[#allocation3 + $0x140] sm:$0xff] %v3991
        %4024 = vst [vmem:[#allocation3 + $0x158] sm:$0xff] %v3992
        %4025 = vst [vmem:[#allocation3 + $0x170] sm:$0xff] %v3993
        %4026 = vst [vmem:[#allocation3 + $0x188] sm:$0xff] %v3994
        %4027 = vst [vmem:[#allocation3 + $0x1a0] sm:$0xff] %v3995
        %4028 = vst [vmem:[#allocation3 + $0x1b8] sm:$0xff] %v3996
        %4029 = vst [vmem:[#allocation3 + $0x1d0] sm:$0xff] %v3997
        %4030 = vst [vmem:[#allocation3 + $0x1e8] sm:$0xff] %v3998
        %4031 = vst [vmem:[#allocation3 + $0x200] sm:$0xff] %v3999
        %4032 = vst [vmem:[#allocation3 + $0x218] sm:$0xff] %v4000
        %4033 = vst [vmem:[#allocation3 + $0x230] sm:$0xff] %v4001
        %4034 = vst [vmem:[#allocation3 + $0x248] sm:$0xff] %v4002
        %4035 = vst [vmem:[#allocation3 + $0x260] sm:$0xff] %v4003
        %4036 = vst [vmem:[#allocation3 + $0x278] sm:$0xff] %v4004
        %4037 = vst [vmem:[#allocation3 + $0x290] sm:$0xff] %v4005
        %4038 = vst [vmem:[#allocation3 + $0x2a8] sm:$0xff] %v4006
        %4039 = vst [vmem:[#allocation3 + $0x2c0] sm:$0xff] %v4007
        %4040 = vst [vmem:[#allocation3 + $0x2d8] sm:$0xff] %v4008
        %4041 = vst [vmem:[#allocation3 + $0x2f0] sm:$0xff] %v4009
        %v4042 = vld [vmem:[%s1090 + $0x2] sm:$0xff]
        %v4043 = vld [vmem:[%s1090 + $0xa] sm:$0xff]
        %v4044 = vld [vmem:[%s1090 + $0x1a] sm:$0xff]
        %v4045 = vld [vmem:[%s1090 + $0x22] sm:$0xff]
        %v4046 = vld [vmem:[%s1090 + $0x32] sm:$0xff]
        %v4047 = vld [vmem:[%s1090 + $0x3a] sm:$0xff]
        %v4048 = vld [vmem:[%s1090 + $0x4a] sm:$0xff]
        %v4049 = vld [vmem:[%s1090 + $0x52] sm:$0xff]
        %v4050 = vld [vmem:[%s1090 + $0x62] sm:$0xff]
        %v4051 = vld [vmem:[%s1090 + $0x6a] sm:$0xff]
        %v4052 = vld [vmem:[%s1090 + $0x7a] sm:$0xff]
        %v4053 = vld [vmem:[%s1090 + $0x82] sm:$0xff]
        %v4054 = vld [vmem:[%s1090 + $0x92] sm:$0xff]
        %v4055 = vld [vmem:[%s1090 + $0x9a] sm:$0xff]
        %v4056 = vld [vmem:[%s1090 + $0xaa] sm:$0xff]
        %v4057 = vld [vmem:[%s1090 + $0xb2] sm:$0xff]
        %v4058 = vld [vmem:[%s1090 + $0xc2] sm:$0xff]
        %v4059 = vld [vmem:[%s1090 + $0xca] sm:$0xff]
        %v4060 = vld [vmem:[%s1090 + $0xda] sm:$0xff]
        %v4061 = vld [vmem:[%s1090 + $0xe2] sm:$0xff]
        %v4062 = vld [vmem:[%s1090 + $0xf2] sm:$0xff]
        %v4063 = vld [vmem:[%s1090 + $0xfa] sm:$0xff]
        %v4064 = vld [vmem:[%s1090 + $0x10a] sm:$0xff]
        %v4065 = vld [vmem:[%s1090 + $0x112] sm:$0xff]
        %v4066 = vld [vmem:[%s1090 + $0x122] sm:$0xff]
        %v4067 = vld [vmem:[%s1090 + $0x12a] sm:$0xff]
        %v4068 = vld [vmem:[%s1090 + $0x13a] sm:$0xff]
        %v4069 = vld [vmem:[%s1090 + $0x142] sm:$0xff]
        %v4070 = vld [vmem:[%s1090 + $0x152] sm:$0xff]
        %v4071 = vld [vmem:[%s1090 + $0x15a] sm:$0xff]
        %v4072 = vld [vmem:[%s1090 + $0x16a] sm:$0xff]
        %v4073 = vld [vmem:[%s1090 + $0x172] sm:$0xff]
        %v4074 = vsel %vm277, %v4042, 0.0
        %v4075 = vsel %vm277, %v4043, 0.0
        %v4076 = vsel %vm277, %v4044, 0.0
        %v4077 = vsel %vm277, %v4045, 0.0
        %v4078 = vsel %vm277, %v4046, 0.0
        %v4079 = vsel %vm277, %v4047, 0.0
        %v4080 = vsel %vm277, %v4048, 0.0
        %v4081 = vsel %vm277, %v4049, 0.0
        %v4082 = vsel %vm277, %v4050, 0.0
        %v4083 = vsel %vm277, %v4051, 0.0
        %v4084 = vsel %vm277, %v4052, 0.0
        %v4085 = vsel %vm277, %v4053, 0.0
        %v4086 = vsel %vm277, %v4054, 0.0
        %v4087 = vsel %vm277, %v4055, 0.0
        %v4088 = vsel %vm277, %v4056, 0.0
        %v4089 = vsel %vm277, %v4057, 0.0
        %v4090 = vsel %vm277, %v4058, 0.0
        %v4091 = vsel %vm277, %v4059, 0.0
        %v4092 = vsel %vm277, %v4060, 0.0
        %v4093 = vsel %vm277, %v4061, 0.0
        %v4094 = vsel %vm277, %v4062, 0.0
        %v4095 = vsel %vm277, %v4063, 0.0
        %v4096 = vsel %vm277, %v4064, 0.0
        %v4097 = vsel %vm277, %v4065, 0.0
        %v4098 = vsel %vm277, %v4066, 0.0
        %v4099 = vsel %vm277, %v4067, 0.0
        %v4100 = vsel %vm277, %v4068, 0.0
        %v4101 = vsel %vm277, %v4069, 0.0
        %v4102 = vsel %vm277, %v4070, 0.0
        %v4103 = vsel %vm277, %v4071, 0.0
        %v4104 = vsel %vm277, %v4072, 0.0
        %v4105 = vsel %vm277, %v4073, 0.0
        %4106 = vst [vmem:[#allocation3 + $0x10] sm:$0xff] %v4074
        %4107 = vst [vmem:[#allocation3 + $0x28] sm:$0xff] %v4075
        %4108 = vst [vmem:[#allocation3 + $0x40] sm:$0xff] %v4076
        %4109 = vst [vmem:[#allocation3 + $0x58] sm:$0xff] %v4077
        %4110 = vst [vmem:[#allocation3 + $0x70] sm:$0xff] %v4078
        %4111 = vst [vmem:[#allocation3 + $0x88] sm:$0xff] %v4079
        %4112 = vst [vmem:[#allocation3 + $0xa0] sm:$0xff] %v4080
        %4113 = vst [vmem:[#allocation3 + $0xb8] sm:$0xff] %v4081
        %4114 = vst [vmem:[#allocation3 + $0xd0] sm:$0xff] %v4082
        %4115 = vst [vmem:[#allocation3 + $0xe8] sm:$0xff] %v4083
        %4116 = vst [vmem:[#allocation3 + $0x100] sm:$0xff] %v4084
        %4117 = vst [vmem:[#allocation3 + $0x118] sm:$0xff] %v4085
        %4118 = vst [vmem:[#allocation3 + $0x130] sm:$0xff] %v4086
        %4119 = vst [vmem:[#allocation3 + $0x148] sm:$0xff] %v4087
        %4120 = vst [vmem:[#allocation3 + $0x160] sm:$0xff] %v4088
        %4121 = vst [vmem:[#allocation3 + $0x178] sm:$0xff] %v4089
        %4122 = vst [vmem:[#allocation3 + $0x190] sm:$0xff] %v4090
        %4123 = vst [vmem:[#allocation3 + $0x1a8] sm:$0xff] %v4091
        %4124 = vst [vmem:[#allocation3 + $0x1c0] sm:$0xff] %v4092
        %4125 = vst [vmem:[#allocation3 + $0x1d8] sm:$0xff] %v4093
        %4126 = vst [vmem:[#allocation3 + $0x1f0] sm:$0xff] %v4094
        %4127 = vst [vmem:[#allocation3 + $0x208] sm:$0xff] %v4095
        %4128 = vst [vmem:[#allocation3 + $0x220] sm:$0xff] %v4096
        %4129 = vst [vmem:[#allocation3 + $0x238] sm:$0xff] %v4097
        %4130 = vst [vmem:[#allocation3 + $0x250] sm:$0xff] %v4098
        %4131 = vst [vmem:[#allocation3 + $0x268] sm:$0xff] %v4099
        %4132 = vst [vmem:[#allocation3 + $0x280] sm:$0xff] %v4100
        %4133 = vst [vmem:[#allocation3 + $0x298] sm:$0xff] %v4101
        %4134 = vst [vmem:[#allocation3 + $0x2b0] sm:$0xff] %v4102
        %4135 = vst [vmem:[#allocation3 + $0x2c8] sm:$0xff] %v4103
        %4136 = vst [vmem:[#allocation3 + $0x2e0] sm:$0xff] %v4104
        %4137 = vst [vmem:[#allocation3 + $0x2f8] sm:$0xff] %v4105
        %v4138 = vld [vmem:[#allocation3] sm:$0xff]
        %v4139 = vld [vmem:[#allocation3 + $0x8] sm:$0xff]
        %v4140 = vld [vmem:[#allocation3 + $0x10] sm:$0xff]
        %v4141 = vld [vmem:[#allocation3 + $0x18] sm:$0xff]
        %v4142 = vld [vmem:[#allocation3 + $0x20] sm:$0xff]
        %v4143 = vld [vmem:[#allocation3 + $0x28] sm:$0xff]
        %v4144 = vld [vmem:[#allocation3 + $0x30] sm:$0xff]
        %v4145 = vld [vmem:[#allocation3 + $0x38] sm:$0xff]
        %v4146 = vld [vmem:[#allocation3 + $0x40] sm:$0xff]
        %v4147 = vld [vmem:[#allocation3 + $0x48] sm:$0xff]
        %v4148 = vld [vmem:[#allocation3 + $0x50] sm:$0xff]
        %v4149 = vld [vmem:[#allocation3 + $0x58] sm:$0xff]
        %v4150 = vld [vmem:[#allocation3 + $0x60] sm:$0xff]
        %v4151 = vld [vmem:[#allocation3 + $0x68] sm:$0xff]
        %v4152 = vld [vmem:[#allocation3 + $0x70] sm:$0xff]
        %v4153 = vld [vmem:[#allocation3 + $0x78] sm:$0xff]
        %v4154 = vld [vmem:[#allocation3 + $0x80] sm:$0xff]
        %v4155 = vld [vmem:[#allocation3 + $0x88] sm:$0xff]
        %v4156 = vld [vmem:[#allocation3 + $0x90] sm:$0xff]
        %v4157 = vld [vmem:[#allocation3 + $0x98] sm:$0xff]
        %v4158 = vld [vmem:[#allocation3 + $0xa0] sm:$0xff]
        %v4159 = vld [vmem:[#allocation3 + $0xa8] sm:$0xff]
        %v4160 = vld [vmem:[#allocation3 + $0xb0] sm:$0xff]
        %v4161 = vld [vmem:[#allocation3 + $0xb8] sm:$0xff]
        %v4162 = vld [vmem:[#allocation3 + $0xc0] sm:$0xff]
        %v4163 = vld [vmem:[#allocation3 + $0xc8] sm:$0xff]
        %v4164 = vld [vmem:[#allocation3 + $0xd0] sm:$0xff]
        %v4165 = vld [vmem:[#allocation3 + $0xd8] sm:$0xff]
        %v4166 = vld [vmem:[#allocation3 + $0xe0] sm:$0xff]
        %v4167 = vld [vmem:[#allocation3 + $0xe8] sm:$0xff]
        %v4168 = vld [vmem:[#allocation3 + $0xf0] sm:$0xff]
        %v4169 = vld [vmem:[#allocation3 + $0xf8] sm:$0xff]
        %v4170 = vld [vmem:[#allocation3 + $0x100] sm:$0xff]
        %v4171 = vld [vmem:[#allocation3 + $0x108] sm:$0xff]
        %v4172 = vld [vmem:[#allocation3 + $0x110] sm:$0xff]
        %v4173 = vld [vmem:[#allocation3 + $0x118] sm:$0xff]
        %v4174 = vld [vmem:[#allocation3 + $0x120] sm:$0xff]
        %v4175 = vld [vmem:[#allocation3 + $0x128] sm:$0xff]
        %v4176 = vld [vmem:[#allocation3 + $0x130] sm:$0xff]
        %v4177 = vld [vmem:[#allocation3 + $0x138] sm:$0xff]
        %v4178 = vld [vmem:[#allocation3 + $0x140] sm:$0xff]
        %v4179 = vld [vmem:[#allocation3 + $0x148] sm:$0xff]
        %v4180 = vld [vmem:[#allocation3 + $0x150] sm:$0xff]
        %v4181 = vld [vmem:[#allocation3 + $0x158] sm:$0xff]
        %v4182 = vld [vmem:[#allocation3 + $0x160] sm:$0xff]
        %v4183 = vld [vmem:[#allocation3 + $0x168] sm:$0xff]
        %v4184 = vld [vmem:[#allocation3 + $0x170] sm:$0xff]
        %v4185 = vld [vmem:[#allocation3 + $0x178] sm:$0xff]
        %v4186 = vld [vmem:[#allocation3 + $0x180] sm:$0xff]
        %v4187 = vld [vmem:[#allocation3 + $0x188] sm:$0xff]
        %v4188 = vld [vmem:[#allocation3 + $0x190] sm:$0xff]
        %v4189 = vld [vmem:[#allocation3 + $0x198] sm:$0xff]
        %v4190 = vld [vmem:[#allocation3 + $0x1a0] sm:$0xff]
        %v4191 = vld [vmem:[#allocation3 + $0x1a8] sm:$0xff]
        %v4192 = vld [vmem:[#allocation3 + $0x1b0] sm:$0xff]
        %v4193 = vld [vmem:[#allocation3 + $0x1b8] sm:$0xff]
        %v4194 = vld [vmem:[#allocation3 + $0x1c0] sm:$0xff]
        %v4195 = vld [vmem:[#allocation3 + $0x1c8] sm:$0xff]
        %v4196 = vld [vmem:[#allocation3 + $0x1d0] sm:$0xff]
        %v4197 = vld [vmem:[#allocation3 + $0x1d8] sm:$0xff]
        %v4198 = vld [vmem:[#allocation3 + $0x1e0] sm:$0xff]
        %v4199 = vld [vmem:[#allocation3 + $0x1e8] sm:$0xff]
        %v4200 = vld [vmem:[#allocation3 + $0x1f0] sm:$0xff]
        %v4201 = vld [vmem:[#allocation3 + $0x1f8] sm:$0xff]
        %v4202 = vld [vmem:[#allocation3 + $0x200] sm:$0xff]
        %v4203 = vld [vmem:[#allocation3 + $0x208] sm:$0xff]
        %v4204 = vld [vmem:[#allocation3 + $0x210] sm:$0xff]
        %v4205 = vld [vmem:[#allocation3 + $0x218] sm:$0xff]
        %v4206 = vld [vmem:[#allocation3 + $0x220] sm:$0xff]
        %v4207 = vld [vmem:[#allocation3 + $0x228] sm:$0xff]
        %v4208 = vld [vmem:[#allocation3 + $0x230] sm:$0xff]
        %v4209 = vld [vmem:[#allocation3 + $0x238] sm:$0xff]
        %v4210 = vld [vmem:[#allocation3 + $0x240] sm:$0xff]
        %v4211 = vld [vmem:[#allocation3 + $0x248] sm:$0xff]
        %v4212 = vld [vmem:[#allocation3 + $0x250] sm:$0xff]
        %v4213 = vld [vmem:[#allocation3 + $0x258] sm:$0xff]
        %v4214 = vld [vmem:[#allocation3 + $0x260] sm:$0xff]
        %v4215 = vld [vmem:[#allocation3 + $0x268] sm:$0xff]
        %v4216 = vld [vmem:[#allocation3 + $0x270] sm:$0xff]
        %v4217 = vld [vmem:[#allocation3 + $0x278] sm:$0xff]
        %v4218 = vld [vmem:[#allocation3 + $0x280] sm:$0xff]
        %v4219 = vld [vmem:[#allocation3 + $0x288] sm:$0xff]
        %v4220 = vld [vmem:[#allocation3 + $0x290] sm:$0xff]
        %v4221 = vld [vmem:[#allocation3 + $0x298] sm:$0xff]
        %v4222 = vld [vmem:[#allocation3 + $0x2a0] sm:$0xff]
        %v4223 = vld [vmem:[#allocation3 + $0x2a8] sm:$0xff]
        %v4224 = vld [vmem:[#allocation3 + $0x2b0] sm:$0xff]
        %v4225 = vld [vmem:[#allocation3 + $0x2b8] sm:$0xff]
        %v4226 = vld [vmem:[#allocation3 + $0x2c0] sm:$0xff]
        %v4227 = vld [vmem:[#allocation3 + $0x2c8] sm:$0xff]
        %v4228 = vld [vmem:[#allocation3 + $0x2d0] sm:$0xff]
        %v4229 = vld [vmem:[#allocation3 + $0x2d8] sm:$0xff]
        %v4230 = vld [vmem:[#allocation3 + $0x2e0] sm:$0xff]
        %v4231 = vld [vmem:[#allocation3 + $0x2e8] sm:$0xff]
        %v4232 = vld [vmem:[#allocation3 + $0x2f0] sm:$0xff]
        %v4233 = vld [vmem:[#allocation3 + $0x2f8] sm:$0xff]
        %v4234 = vld [vmem:[%s5] sm:$0xff]
        %v4235 = vld [vmem:[%s5 + $0x8] sm:$0xff]
        %v4236 = vld [vmem:[%s5 + $0x10] sm:$0xff]
        %v4237 = vld [vmem:[%s5 + $0x18] sm:$0xff]
        %v4238 = vld [vmem:[%s5 + $0x20] sm:$0xff]
        %v4239 = vld [vmem:[%s5 + $0x28] sm:$0xff]
        %v4240 = vld [vmem:[%s5 + $0x30] sm:$0xff]
        %v4241 = vld [vmem:[%s5 + $0x38] sm:$0xff]
        %v4242 = vld [vmem:[%s5 + $0x40] sm:$0xff]
        %v4243 = vld [vmem:[%s5 + $0x48] sm:$0xff]
        %v4244 = vld [vmem:[%s5 + $0x50] sm:$0xff]
        %v4245 = vld [vmem:[%s5 + $0x58] sm:$0xff]
        %v4246 = vld [vmem:[%s5 + $0x60] sm:$0xff]
        %v4247 = vld [vmem:[%s5 + $0x68] sm:$0xff]
        %v4248 = vld [vmem:[%s5 + $0x70] sm:$0xff]
        %v4249 = vld [vmem:[%s5 + $0x78] sm:$0xff]
        %v4250 = vld [vmem:[%s5 + $0x80] sm:$0xff]
        %v4251 = vld [vmem:[%s5 + $0x88] sm:$0xff]
        %v4252 = vld [vmem:[%s5 + $0x90] sm:$0xff]
        %v4253 = vld [vmem:[%s5 + $0x98] sm:$0xff]
        %v4254 = vld [vmem:[%s5 + $0xa0] sm:$0xff]
        %v4255 = vld [vmem:[%s5 + $0xa8] sm:$0xff]
        %v4256 = vld [vmem:[%s5 + $0xb0] sm:$0xff]
        %v4257 = vld [vmem:[%s5 + $0xb8] sm:$0xff]
        %v4258 = vld [vmem:[%s5 + $0xc0] sm:$0xff]
        %v4259 = vld [vmem:[%s5 + $0xc8] sm:$0xff]
        %v4260 = vld [vmem:[%s5 + $0xd0] sm:$0xff]
        %v4261 = vld [vmem:[%s5 + $0xd8] sm:$0xff]
        %v4262 = vld [vmem:[%s5 + $0xe0] sm:$0xff]
        %v4263 = vld [vmem:[%s5 + $0xe8] sm:$0xff]
        %v4264 = vld [vmem:[%s5 + $0xf0] sm:$0xff]
        %v4265 = vld [vmem:[%s5 + $0xf8] sm:$0xff]
        %v4266 = vld [vmem:[%s5 + $0x100] sm:$0xff]
        %v4267 = vld [vmem:[%s5 + $0x108] sm:$0xff]
        %v4268 = vld [vmem:[%s5 + $0x110] sm:$0xff]
        %v4269 = vld [vmem:[%s5 + $0x118] sm:$0xff]
        %v4270 = vld [vmem:[%s5 + $0x120] sm:$0xff]
        %v4271 = vld [vmem:[%s5 + $0x128] sm:$0xff]
        %v4272 = vld [vmem:[%s5 + $0x130] sm:$0xff]
        %v4273 = vld [vmem:[%s5 + $0x138] sm:$0xff]
        %v4274 = vld [vmem:[%s5 + $0x140] sm:$0xff]
        %v4275 = vld [vmem:[%s5 + $0x148] sm:$0xff]
        %v4276 = vld [vmem:[%s5 + $0x150] sm:$0xff]
        %v4277 = vld [vmem:[%s5 + $0x158] sm:$0xff]
        %v4278 = vld [vmem:[%s5 + $0x160] sm:$0xff]
        %v4279 = vld [vmem:[%s5 + $0x168] sm:$0xff]
        %v4280 = vld [vmem:[%s5 + $0x170] sm:$0xff]
        %v4281 = vld [vmem:[%s5 + $0x178] sm:$0xff]
        %v4282 = vld [vmem:[%s6] sm:$0x1]
        %v4284 = vlaneseq
        %v4285 = vshrl.u32 %v4284, 7
        %v4286 = vsub.s32 0, %v4285
        %v4287 = vrot.slane %v4282, %v4286
        %4289 = vmatprep.subr.mxu0 0.0
        %4290 = vmatpush1.msra.mxu0 %v4234
        %4291 = vmatprep.subr.mxu0 0.0
        %4292 = vmatpush1.msra.mxu0 %v4235
        %4293 = vmatprep.subr.mxu0 0.0
        %4294 = vmatpush1.msra.mxu0 %v4236
        %4295 = vmatprep.subr.mxu0 0.0
        %4296 = vmatpush1.msra.mxu0 %v4237
        %4297 = vmatprep.subr.mxu0 0.0
        %4298 = vmatpush1.msra.mxu0 %v4238
        %4299 = vmatprep.subr.mxu0 0.0
        %4300 = vmatpush1.msra.mxu0 %v4239
        %4301 = vmatprep.subr.mxu0 0.0
        %4302 = vmatpush1.msra.mxu0 %v4240
        %4303 = vmatprep.subr.mxu0 0.0
        %4304 = vmatpush1.msra.mxu0 %v4241
        %4305 = vmatprep.subr.mxu0 0.0
        %4306 = vmatpush1.msra.mxu0 %v4242
        %4307 = vmatprep.subr.mxu0 0.0
        %4308 = vmatpush1.msra.mxu0 %v4243
        %4309 = vmatprep.subr.mxu0 0.0
        %4310 = vmatpush1.msra.mxu0 %v4244
        %4311 = vmatprep.subr.mxu0 0.0
        %4312 = vmatpush1.msra.mxu0 %v4245
        %4313 = vmatprep.subr.mxu0 0.0
        %4314 = vmatpush1.msra.mxu0 %v4246
        %4315 = vmatprep.subr.mxu0 0.0
        %4316 = vmatpush1.msra.mxu0 %v4247
        %4317 = vmatprep.subr.mxu0 0.0
        %4318 = vmatpush1.msra.mxu0 %v4248
        %4319 = vmatprep.subr.mxu0 0.0
        %4320 = vmatpush1.msra.mxu0 %v4249
        %4321 = vmatprep.subr.mxu0 0.0
        %4322 = vmatpush1.msra.mxu0 %v4250
        %4323 = vmatprep.subr.mxu0 0.0
        %4324 = vmatpush1.msra.mxu0 %v4251
        %4325 = vmatprep.subr.mxu0 0.0
        %4326 = vmatpush1.msra.mxu0 %v4252
        %4327 = vmatprep.subr.mxu0 0.0
        %4328 = vmatpush1.msra.mxu0 %v4253
        %4329 = vmatprep.subr.mxu0 0.0
        %4330 = vmatpush1.msra.mxu0 %v4254
        %4331 = vmatprep.subr.mxu0 0.0
        %4332 = vmatpush1.msra.mxu0 %v4255
        %4333 = vmatprep.subr.mxu0 0.0
        %4334 = vmatpush1.msra.mxu0 %v4256
        %4335 = vmatprep.subr.mxu0 0.0
        %4336 = vmatpush1.msra.mxu0 %v4257
        %4337 = vmatprep.subr.mxu0 0.0
        %4338 = vmatpush1.msra.mxu0 %v4258
        %4339 = vmatprep.subr.mxu0 0.0
        %4340 = vmatpush1.msra.mxu0 %v4259
        %4341 = vmatprep.subr.mxu0 0.0
        %4342 = vmatpush1.msra.mxu0 %v4260
        %4343 = vmatprep.subr.mxu0 0.0
        %4344 = vmatpush1.msra.mxu0 %v4261
        %4345 = vmatprep.subr.mxu0 0.0
        %4346 = vmatpush1.msra.mxu0 %v4262
        %4347 = vmatprep.subr.mxu0 0.0
        %4348 = vmatpush1.msra.mxu0 %v4263
        %4349 = vmatprep.subr.mxu0 0.0
        %4350 = vmatpush1.msra.mxu0 %v4264
        %4351 = vmatprep.subr.mxu0 0.0
        %4352 = vmatpush1.msra.mxu0 %v4265
        %4353 = vmatprep.mubr.f32.mxu0 %v4139
        %4354 = vmatmul.mubr.f32.gmra.mrb[0].mxu0 %v4138
        %v4355 = vpop.f32.mrb[0].mxu0
        %v4356 = vadd.f32 %v4287, %v4355
        %v4357 = vpop.f32.mrb[0].mxu0
        %4358 = vmatprep.mubr.f32.mxu0 %v4142
        %4359 = vmatmul.mubr.f32.gmra.mrb[0].mxu0 %v4141
        %v4360 = vpop.f32.mrb[0].mxu0
        %v4361 = vadd.f32 %v4287, %v4360
        %v4362 = vpop.f32.mrb[0].mxu0
        %4363 = vmatprep.mubr.f32.mxu0 %v4145
        %4364 = vmatmul.mubr.f32.gmra.mrb[0].mxu0 %v4144
        %v4365 = vpop.f32.mrb[0].mxu0
        %v4366 = vadd.f32 %v4287, %v4365
        %v4367 = vpop.f32.mrb[0].mxu0
        %4368 = vmatprep.mubr.f32.mxu0 %v4148
        %4369 = vmatmul.mubr.f32.gmra.mrb[0].mxu0 %v4147
        %v4370 = vpop.f32.mrb[0].mxu0
        %v4371 = vadd.f32 %v4287, %v4370
        %v4372 = vpop.f32.mrb[0].mxu0
        %4373 = vmatprep.mubr.f32.mxu0 %v4151
        %4374 = vmatmul.mubr.f32.gmra.mrb[0].mxu0 %v4150
        %v4375 = vpop.f32.mrb[0].mxu0
        %v4376 = vadd.f32 %v4287, %v4375
        %v4377 = vpop.f32.mrb[0].mxu0
        %4378 = vmatprep.mubr.f32.mxu0 %v4154
        %4379 = vmatmul.mubr.f32.gmra.mrb[0].mxu0 %v4153
        %v4380 = vpop.f32.mrb[0].mxu0
        %v4381 = vadd.f32 %v4287, %v4380
        %v4382 = vpop.f32.mrb[0].mxu0
        %4383 = vmatprep.mubr.f32.mxu0 %v4157
        %4384 = vmatmul.mubr.f32.gmra.mrb[0].mxu0 %v4156
        %v4385 = vpop.f32.mrb[0].mxu0
        %v4386 = vadd.f32 %v4287, %v4385
        %v4387 = vpop.f32.mrb[0].mxu0
        %4388 = vmatprep.mubr.f32.mxu0 %v4160
        %4389 = vmatmul.mubr.f32.gmra.mrb[0].mxu0 %v4159
        %v4390 = vpop.f32.mrb[0].mxu0
        %v4391 = vadd.f32 %v4287, %v4390
        %v4392 = vpop.f32.mrb[0].mxu0
        %4393 = vmatprep.mubr.f32.mxu0 %v4163
        %4394 = vmatmul.mubr.f32.gmra.mrb[0].mxu0 %v4162
        %v4395 = vpop.f32.mrb[0].mxu0
        %v4396 = vadd.f32 %v4287, %v4395
        %v4397 = vpop.f32.mrb[0].mxu0
        %4398 = vmatprep.mubr.f32.mxu0 %v4166
        %4399 = vmatmul.mubr.f32.gmra.mrb[0].mxu0 %v4165
        %v4400 = vpop.f32.mrb[0].mxu0
        %v4401 = vadd.f32 %v4287, %v4400
        %v4402 = vpop.f32.mrb[0].mxu0
        %4403 = vmatprep.mubr.f32.mxu0 %v4169
        %4404 = vmatmul.mubr.f32.gmra.mrb[0].mxu0 %v4168
        %v4405 = vpop.f32.mrb[0].mxu0
        %v4406 = vadd.f32 %v4287, %v4405
        %v4407 = vpop.f32.mrb[0].mxu0
        %4408 = vmatprep.mubr.f32.mxu0 %v4172
        %4409 = vmatmul.mubr.f32.gmra.mrb[0].mxu0 %v4171
        %v4410 = vpop.f32.mrb[0].mxu0
        %v4411 = vadd.f32 %v4287, %v4410
        %v4412 = vpop.f32.mrb[0].mxu0
        %4413 = vmatprep.mubr.f32.mxu0 %v4175
        %4414 = vmatmul.mubr.f32.gmra.mrb[0].mxu0 %v4174
        %v4415 = vpop.f32.mrb[0].mxu0
        %v4416 = vadd.f32 %v4287, %v4415
        %v4417 = vpop.f32.mrb[0].mxu0
        %4418 = vmatprep.mubr.f32.mxu0 %v4178
        %4419 = vmatmul.mubr.f32.gmra.mrb[0].mxu0 %v4177
        %v4420 = vpop.f32.mrb[0].mxu0
        %v4421 = vadd.f32 %v4287, %v4420
        %v4422 = vpop.f32.mrb[0].mxu0
        %4423 = vmatprep.mubr.f32.mxu0 %v4181
        %4424 = vmatmul.mubr.f32.gmra.mrb[0].mxu0 %v4180
        %v4425 = vpop.f32.mrb[0].mxu0
        %v4426 = vadd.f32 %v4287, %v4425
        %v4427 = vpop.f32.mrb[0].mxu0
        %4428 = vmatprep.mubr.f32.mxu0 %v4184
        %4429 = vmatmul.mubr.f32.gmra.mrb[0].mxu0 %v4183
        %v4430 = vpop.f32.mrb[0].mxu0
        %v4431 = vadd.f32 %v4287, %v4430
        %v4432 = vpop.f32.mrb[0].mxu0
        %4433 = vmatprep.mubr.f32.mxu0 %v4187
        %4434 = vmatmul.mubr.f32.gmra.mrb[0].mxu0 %v4186
        %v4435 = vpop.f32.mrb[0].mxu0
        %v4436 = vadd.f32 %v4287, %v4435
        %v4437 = vpop.f32.mrb[0].mxu0
        %4438 = vmatprep.mubr.f32.mxu0 %v4190
        %4439 = vmatmul.mubr.f32.gmra.mrb[0].mxu0 %v4189
        %v4440 = vpop.f32.mrb[0].mxu0
        %v4441 = vadd.f32 %v4287, %v4440
        %v4442 = vpop.f32.mrb[0].mxu0
        %4443 = vmatprep.mubr.f32.mxu0 %v4193
        %4444 = vmatmul.mubr.f32.gmra.mrb[0].mxu0 %v4192
        %v4445 = vpop.f32.mrb[0].mxu0
        %v4446 = vadd.f32 %v4287, %v4445
        %v4447 = vpop.f32.mrb[0].mxu0
        %4448 = vmatprep.mubr.f32.mxu0 %v4196
        %4449 = vmatmul.mubr.f32.gmra.mrb[0].mxu0 %v4195
        %v4450 = vpop.f32.mrb[0].mxu0
        %v4451 = vadd.f32 %v4287, %v4450
        %v4452 = vpop.f32.mrb[0].mxu0
        %4453 = vmatprep.mubr.f32.mxu0 %v4199
        %4454 = vmatmul.mubr.f32.gmra.mrb[0].mxu0 %v4198
        %v4455 = vpop.f32.mrb[0].mxu0
        %v4456 = vadd.f32 %v4287, %v4455
        %v4457 = vpop.f32.mrb[0].mxu0
        %4458 = vmatprep.mubr.f32.mxu0 %v4202
        %4459 = vmatmul.mubr.f32.gmra.mrb[0].mxu0 %v4201
        %v4460 = vpop.f32.mrb[0].mxu0
        %v4461 = vadd.f32 %v4287, %v4460
        %v4462 = vpop.f32.mrb[0].mxu0
        %4463 = vmatprep.mubr.f32.mxu0 %v4205
        %4464 = vmatmul.mubr.f32.gmra.mrb[0].mxu0 %v4204
        %v4465 = vpop.f32.mrb[0].mxu0
        %v4466 = vadd.f32 %v4287, %v4465
        %v4467 = vpop.f32.mrb[0].mxu0
        %4468 = vmatprep.mubr.f32.mxu0 %v4208
        %4469 = vmatmul.mubr.f32.gmra.mrb[0].mxu0 %v4207
        %v4470 = vpop.f32.mrb[0].mxu0
        %v4471 = vadd.f32 %v4287, %v4470
        %v4472 = vpop.f32.mrb[0].mxu0
        %4473 = vmatprep.mubr.f32.mxu0 %v4211
        %4474 = vmatmul.mubr.f32.gmra.mrb[0].mxu0 %v4210
        %v4475 = vpop.f32.mrb[0].mxu0
        %v4476 = vadd.f32 %v4287, %v4475
        %v4477 = vpop.f32.mrb[0].mxu0
        %4478 = vmatprep.mubr.f32.mxu0 %v4214
        %4479 = vmatmul.mubr.f32.gmra.mrb[0].mxu0 %v4213
        %v4480 = vpop.f32.mrb[0].mxu0
        %v4481 = vadd.f32 %v4287, %v4480
        %v4482 = vpop.f32.mrb[0].mxu0
        %4483 = vmatprep.mubr.f32.mxu0 %v4217
        %4484 = vmatmul.mubr.f32.gmra.mrb[0].mxu0 %v4216
        %v4485 = vpop.f32.mrb[0].mxu0
        %v4486 = vadd.f32 %v4287, %v4485
        %v4487 = vpop.f32.mrb[0].mxu0
        %4488 = vmatprep.mubr.f32.mxu0 %v4220
        %4489 = vmatmul.mubr.f32.gmra.mrb[0].mxu0 %v4219
        %v4490 = vpop.f32.mrb[0].mxu0
        %v4491 = vadd.f32 %v4287, %v4490
        %v4492 = vpop.f32.mrb[0].mxu0
        %4493 = vmatprep.mubr.f32.mxu0 %v4223
        %4494 = vmatmul.mubr.f32.gmra.mrb[0].mxu0 %v4222
        %v4495 = vpop.f32.mrb[0].mxu0
        %v4496 = vadd.f32 %v4287, %v4495
        %v4497 = vpop.f32.mrb[0].mxu0
        %4498 = vmatprep.mubr.f32.mxu0 %v4226
        %4499 = vmatmul.mubr.f32.gmra.mrb[0].mxu0 %v4225
        %v4500 = vpop.f32.mrb[0].mxu0
        %v4501 = vadd.f32 %v4287, %v4500
        %v4502 = vpop.f32.mrb[0].mxu0
        %4503 = vmatprep.mubr.f32.mxu0 %v4229
        %4504 = vmatmul.mubr.f32.gmra.mrb[0].mxu0 %v4228
        %v4505 = vpop.f32.mrb[0].mxu0
        %v4506 = vadd.f32 %v4287, %v4505
        %v4507 = vpop.f32.mrb[0].mxu0
        %4508 = vmatprep.mubr.f32.mxu0 %v4232
        %4509 = vmatmul.mubr.f32.gmra.mrb[0].mxu0 %v4231
        %v4510 = vpop.f32.mrb[0].mxu0
        %v4511 = vadd.f32 %v4287, %v4510
        %v4512 = vpop.f32.mrb[0].mxu0
        %4513 = vdwg.mxu0
        %4514 = vmatprep.subr.mxu0 0.0
        %4515 = vmatpush1.msra.mxu0 %v4266
        %4516 = vmatprep.subr.mxu0 0.0
        %4517 = vmatpush1.msra.mxu0 %v4267
        %4518 = vmatprep.subr.mxu0 0.0
        %4519 = vmatpush1.msra.mxu0 %v4268
        %4520 = vmatprep.subr.mxu0 0.0
        %4521 = vmatpush1.msra.mxu0 %v4269
        %4522 = vmatprep.subr.mxu0 0.0
        %4523 = vmatpush1.msra.mxu0 %v4270
        %4524 = vmatprep.subr.mxu0 0.0
        %4525 = vmatpush1.msra.mxu0 %v4271
        %4526 = vmatprep.subr.mxu0 0.0
        %4527 = vmatpush1.msra.mxu0 %v4272
        %4528 = vmatprep.subr.mxu0 0.0
        %4529 = vmatpush1.msra.mxu0 %v4273
        %4530 = vmatprep.subr.mxu0 0.0
        %4531 = vmatpush1.msra.mxu0 %v4274
        %4532 = vmatprep.subr.mxu0 0.0
        %4533 = vmatpush1.msra.mxu0 %v4275
        %4534 = vmatprep.subr.mxu0 0.0
        %4535 = vmatpush1.msra.mxu0 %v4276
        %4536 = vmatprep.subr.mxu0 0.0
        %4537 = vmatpush1.msra.mxu0 %v4277
        %4538 = vmatprep.subr.mxu0 0.0
        %4539 = vmatpush1.msra.mxu0 %v4278
        %4540 = vmatprep.subr.mxu0 0.0
        %4541 = vmatpush1.msra.mxu0 %v4279
        %4542 = vmatprep.subr.mxu0 0.0
        %4543 = vmatpush1.msra.mxu0 %v4280
        %4544 = vmatprep.subr.mxu0 0.0
        %4545 = vmatpush1.msra.mxu0 %v4281
        %4546 = vmatprep.subr.mxu0 0.0
        %4547 = vmatpush1.msra.mxu0 0.0
        %4548 = vmatprep.subr.mxu0 0.0
        %4549 = vmatpush1.msra.mxu0 0.0
        %4550 = vmatprep.subr.mxu0 0.0
        %4551 = vmatpush1.msra.mxu0 0.0
        %4552 = vmatprep.subr.mxu0 0.0
        %4553 = vmatpush1.msra.mxu0 0.0
        %4554 = vmatprep.subr.mxu0 0.0
        %4555 = vmatpush1.msra.mxu0 0.0
        %4556 = vmatprep.subr.mxu0 0.0
        %4557 = vmatpush1.msra.mxu0 0.0
        %4558 = vmatprep.subr.mxu0 0.0
        %4559 = vmatpush1.msra.mxu0 0.0
        %4560 = vmatprep.subr.mxu0 0.0
        %4561 = vmatpush1.msra.mxu0 0.0
        %4562 = vmatprep.subr.mxu0 0.0
        %4563 = vmatpush1.msra.mxu0 0.0
        %4564 = vmatprep.subr.mxu0 0.0
        %4565 = vmatpush1.msra.mxu0 0.0
        %4566 = vmatprep.subr.mxu0 0.0
        %4567 = vmatpush1.msra.mxu0 0.0
        %4568 = vmatprep.subr.mxu0 0.0
        %4569 = vmatpush1.msra.mxu0 0.0
        %4570 = vmatprep.subr.mxu0 0.0
        %4571 = vmatpush1.msra.mxu0 0.0
        %4572 = vmatprep.subr.mxu0 0.0
        %4573 = vmatpush1.msra.mxu0 0.0
        %4574 = vmatprep.subr.mxu0 0.0
        %4575 = vmatpush1.msra.mxu0 0.0
        %4576 = vmatprep.subr.mxu0 0.0
        %4577 = vmatpush1.msra.mxu0 0.0
        %4578 = vmatprep.mubr.f32.mxu0 0.0
        %4579 = vmatmul.mubr.f32.gmra.mrb[0].mxu0 %v4140
        %v4580 = vpop.f32.mrb[0].mxu0
        %v4581 = vadd.f32 %v4356, %v4580
        %v4582 = vpop.f32.mrb[0].mxu0
        %4583 = vmatprep.mubr.f32.mxu0 0.0
        %4584 = vmatmul.mubr.f32.gmra.mrb[0].mxu0 %v4143
        %v4585 = vpop.f32.mrb[0].mxu0
        %v4586 = vadd.f32 %v4361, %v4585
        %v4587 = vpop.f32.mrb[0].mxu0
        %4588 = vmatprep.mubr.f32.mxu0 0.0
        %4589 = vmatmul.mubr.f32.gmra.mrb[0].mxu0 %v4146
        %v4590 = vpop.f32.mrb[0].mxu0
        %v4591 = vadd.f32 %v4366, %v4590
        %v4592 = vpop.f32.mrb[0].mxu0
        %4593 = vmatprep.mubr.f32.mxu0 0.0
        %4594 = vmatmul.mubr.f32.gmra.mrb[0].mxu0 %v4149
        %v4595 = vpop.f32.mrb[0].mxu0
        %v4596 = vadd.f32 %v4371, %v4595
        %v4597 = vpop.f32.mrb[0].mxu0
        %4598 = vmatprep.mubr.f32.mxu0 0.0
        %4599 = vmatmul.mubr.f32.gmra.mrb[0].mxu0 %v4152
        %v4600 = vpop.f32.mrb[0].mxu0
        %v4601 = vadd.f32 %v4376, %v4600
        %v4602 = vpop.f32.mrb[0].mxu0
        %4603 = vmatprep.mubr.f32.mxu0 0.0
        %4604 = vmatmul.mubr.f32.gmra.mrb[0].mxu0 %v4155
        %v4605 = vpop.f32.mrb[0].mxu0
        %v4606 = vadd.f32 %v4381, %v4605
        %v4607 = vpop.f32.mrb[0].mxu0
        %4608 = vmatprep.mubr.f32.mxu0 0.0
        %4609 = vmatmul.mubr.f32.gmra.mrb[0].mxu0 %v4158
        %v4610 = vpop.f32.mrb[0].mxu0
        %v4611 = vadd.f32 %v4386, %v4610
        %v4612 = vpop.f32.mrb[0].mxu0
        %4613 = vmatprep.mubr.f32.mxu0 0.0
        %4614 = vmatmul.mubr.f32.gmra.mrb[0].mxu0 %v4161
        %v4615 = vpop.f32.mrb[0].mxu0
        %v4616 = vadd.f32 %v4391, %v4615
        %v4617 = vpop.f32.mrb[0].mxu0
        %4618 = vmatprep.mubr.f32.mxu0 0.0
        %4619 = vmatmul.mubr.f32.gmra.mrb[0].mxu0 %v4164
        %v4620 = vpop.f32.mrb[0].mxu0
        %v4621 = vadd.f32 %v4396, %v4620
        %v4622 = vpop.f32.mrb[0].mxu0
        %4623 = vmatprep.mubr.f32.mxu0 0.0
        %4624 = vmatmul.mubr.f32.gmra.mrb[0].mxu0 %v4167
        %v4625 = vpop.f32.mrb[0].mxu0
        %v4626 = vadd.f32 %v4401, %v4625
        %v4627 = vpop.f32.mrb[0].mxu0
        %4628 = vmatprep.mubr.f32.mxu0 0.0
        %4629 = vmatmul.mubr.f32.gmra.mrb[0].mxu0 %v4170
        %v4630 = vpop.f32.mrb[0].mxu0
        %v4631 = vadd.f32 %v4406, %v4630
        %v4632 = vpop.f32.mrb[0].mxu0
        %4633 = vmatprep.mubr.f32.mxu0 0.0
        %4634 = vmatmul.mubr.f32.gmra.mrb[0].mxu0 %v4173
        %v4635 = vpop.f32.mrb[0].mxu0
        %v4636 = vadd.f32 %v4411, %v4635
        %v4637 = vpop.f32.mrb[0].mxu0
        %4638 = vmatprep.mubr.f32.mxu0 0.0
        %4639 = vmatmul.mubr.f32.gmra.mrb[0].mxu0 %v4176
        %v4640 = vpop.f32.mrb[0].mxu0
        %v4641 = vadd.f32 %v4416, %v4640
        %v4642 = vpop.f32.mrb[0].mxu0
        %4643 = vmatprep.mubr.f32.mxu0 0.0
        %4644 = vmatmul.mubr.f32.gmra.mrb[0].mxu0 %v4179
        %v4645 = vpop.f32.mrb[0].mxu0
        %v4646 = vadd.f32 %v4421, %v4645
        %v4647 = vpop.f32.mrb[0].mxu0
        %4648 = vmatprep.mubr.f32.mxu0 0.0
        %4649 = vmatmul.mubr.f32.gmra.mrb[0].mxu0 %v4182
        %v4650 = vpop.f32.mrb[0].mxu0
        %v4651 = vadd.f32 %v4426, %v4650
        %v4652 = vpop.f32.mrb[0].mxu0
        %4653 = vmatprep.mubr.f32.mxu0 0.0
        %4654 = vmatmul.mubr.f32.gmra.mrb[0].mxu0 %v4185
        %v4655 = vpop.f32.mrb[0].mxu0
        %v4656 = vadd.f32 %v4431, %v4655
        %v4657 = vpop.f32.mrb[0].mxu0
        %4658 = vmatprep.mubr.f32.mxu0 0.0
        %4659 = vmatmul.mubr.f32.gmra.mrb[0].mxu0 %v4188
        %v4660 = vpop.f32.mrb[0].mxu0
        %v4661 = vadd.f32 %v4436, %v4660
        %v4662 = vpop.f32.mrb[0].mxu0
        %4663 = vmatprep.mubr.f32.mxu0 0.0
        %4664 = vmatmul.mubr.f32.gmra.mrb[0].mxu0 %v4191
        %v4665 = vpop.f32.mrb[0].mxu0
        %v4666 = vadd.f32 %v4441, %v4665
        %v4667 = vpop.f32.mrb[0].mxu0
        %4668 = vmatprep.mubr.f32.mxu0 0.0
        %4669 = vmatmul.mubr.f32.gmra.mrb[0].mxu0 %v4194
        %v4670 = vpop.f32.mrb[0].mxu0
        %v4671 = vadd.f32 %v4446, %v4670
        %v4672 = vpop.f32.mrb[0].mxu0
        %4673 = vmatprep.mubr.f32.mxu0 0.0
        %4674 = vmatmul.mubr.f32.gmra.mrb[0].mxu0 %v4197
        %v4675 = vpop.f32.mrb[0].mxu0
        %v4676 = vadd.f32 %v4451, %v4675
        %v4677 = vpop.f32.mrb[0].mxu0
        %4678 = vmatprep.mubr.f32.mxu0 0.0
        %4679 = vmatmul.mubr.f32.gmra.mrb[0].mxu0 %v4200
        %v4680 = vpop.f32.mrb[0].mxu0
        %v4681 = vadd.f32 %v4456, %v4680
        %v4682 = vpop.f32.mrb[0].mxu0
        %4683 = vmatprep.mubr.f32.mxu0 0.0
        %4684 = vmatmul.mubr.f32.gmra.mrb[0].mxu0 %v4203
        %v4685 = vpop.f32.mrb[0].mxu0
        %v4686 = vadd.f32 %v4461, %v4685
        %v4687 = vpop.f32.mrb[0].mxu0
        %4688 = vmatprep.mubr.f32.mxu0 0.0
        %4689 = vmatmul.mubr.f32.gmra.mrb[0].mxu0 %v4206
        %v4690 = vpop.f32.mrb[0].mxu0
        %v4691 = vadd.f32 %v4466, %v4690
        %v4692 = vpop.f32.mrb[0].mxu0
        %4693 = vmatprep.mubr.f32.mxu0 0.0
        %4694 = vmatmul.mubr.f32.gmra.mrb[0].mxu0 %v4209
        %v4695 = vpop.f32.mrb[0].mxu0
        %v4696 = vadd.f32 %v4471, %v4695
        %v4697 = vpop.f32.mrb[0].mxu0
        %4698 = vmatprep.mubr.f32.mxu0 0.0
        %4699 = vmatmul.mubr.f32.gmra.mrb[0].mxu0 %v4212
        %v4700 = vpop.f32.mrb[0].mxu0
        %v4701 = vadd.f32 %v4476, %v4700
        %v4702 = vpop.f32.mrb[0].mxu0
        %4703 = vmatprep.mubr.f32.mxu0 0.0
        %4704 = vmatmul.mubr.f32.gmra.mrb[0].mxu0 %v4215
        %v4705 = vpop.f32.mrb[0].mxu0
        %v4706 = vadd.f32 %v4481, %v4705
        %v4707 = vpop.f32.mrb[0].mxu0
        %4708 = vmatprep.mubr.f32.mxu0 0.0
        %4709 = vmatmul.mubr.f32.gmra.mrb[0].mxu0 %v4218
        %v4710 = vpop.f32.mrb[0].mxu0
        %v4711 = vadd.f32 %v4486, %v4710
        %v4712 = vpop.f32.mrb[0].mxu0
        %4713 = vmatprep.mubr.f32.mxu0 0.0
        %4714 = vmatmul.mubr.f32.gmra.mrb[0].mxu0 %v4221
        %v4715 = vpop.f32.mrb[0].mxu0
        %v4716 = vadd.f32 %v4491, %v4715
        %v4717 = vpop.f32.mrb[0].mxu0
        %4718 = vmatprep.mubr.f32.mxu0 0.0
        %4719 = vmatmul.mubr.f32.gmra.mrb[0].mxu0 %v4224
        %v4720 = vpop.f32.mrb[0].mxu0
        %v4721 = vadd.f32 %v4496, %v4720
        %v4722 = vpop.f32.mrb[0].mxu0
        %4723 = vmatprep.mubr.f32.mxu0 0.0
        %4724 = vmatmul.mubr.f32.gmra.mrb[0].mxu0 %v4227
        %v4725 = vpop.f32.mrb[0].mxu0
        %v4726 = vadd.f32 %v4501, %v4725
        %v4727 = vpop.f32.mrb[0].mxu0
        %4728 = vmatprep.mubr.f32.mxu0 0.0
        %4729 = vmatmul.mubr.f32.gmra.mrb[0].mxu0 %v4230
        %v4730 = vpop.f32.mrb[0].mxu0
        %v4731 = vadd.f32 %v4506, %v4730
        %v4732 = vpop.f32.mrb[0].mxu0
        %4733 = vmatprep.mubr.f32.mxu0 0.0
        %4734 = vmatmul.mubr.f32.gmra.mrb[0].mxu0 %v4233
        %v4735 = vpop.f32.mrb[0].mxu0
        %v4736 = vadd.f32 %v4511, %v4735
        %v4737 = vpop.f32.mrb[0].mxu0
        %4738 = vdwg.mxu0
        %v4739 = vld [vmem:[%s276] sm:$0xff]
        %v4740 = vld [vmem:[%s276 + $0x8] sm:$0xff]
        %v4741 = vld [vmem:[%s276 + $0x10] sm:$0xff]
        %v4742 = vld [vmem:[%s276 + $0x18] sm:$0xff]
        %v4743 = vld [vmem:[%s276 + $0x20] sm:$0xff]
        %v4744 = vld [vmem:[%s276 + $0x28] sm:$0xff]
        %v4745 = vld [vmem:[%s276 + $0x30] sm:$0xff]
        %v4746 = vld [vmem:[%s276 + $0x38] sm:$0xff]
        %v4747 = vld [vmem:[%s276 + $0x40] sm:$0xff]
        %v4748 = vld [vmem:[%s276 + $0x48] sm:$0xff]
        %v4749 = vld [vmem:[%s276 + $0x50] sm:$0xff]
        %v4750 = vld [vmem:[%s276 + $0x58] sm:$0xff]
        %v4751 = vld [vmem:[%s276 + $0x60] sm:$0xff]
        %v4752 = vld [vmem:[%s276 + $0x68] sm:$0xff]
        %v4753 = vld [vmem:[%s276 + $0x70] sm:$0xff]
        %v4754 = vld [vmem:[%s276 + $0x78] sm:$0xff]
        %v4755 = vld [vmem:[%s276 + $0x80] sm:$0xff]
        %v4756 = vld [vmem:[%s276 + $0x88] sm:$0xff]
        %v4757 = vld [vmem:[%s276 + $0x90] sm:$0xff]
        %v4758 = vld [vmem:[%s276 + $0x98] sm:$0xff]
        %v4759 = vld [vmem:[%s276 + $0xa0] sm:$0xff]
        %v4760 = vld [vmem:[%s276 + $0xa8] sm:$0xff]
        %v4761 = vld [vmem:[%s276 + $0xb0] sm:$0xff]
        %v4762 = vld [vmem:[%s276 + $0xb8] sm:$0xff]
        %v4763 = vld [vmem:[%s276 + $0xc0] sm:$0xff]
        %v4764 = vld [vmem:[%s276 + $0xc8] sm:$0xff]
        %v4765 = vld [vmem:[%s276 + $0xd0] sm:$0xff]
        %v4766 = vld [vmem:[%s276 + $0xd8] sm:$0xff]
        %v4767 = vld [vmem:[%s276 + $0xe0] sm:$0xff]
        %v4768 = vld [vmem:[%s276 + $0xe8] sm:$0xff]
        %v4769 = vld [vmem:[%s276 + $0xf0] sm:$0xff]
        %v4770 = vld [vmem:[%s276 + $0xf8] sm:$0xff]
        %v4771 = vadd.f32 %v4581, %v4739
        %v4772 = vadd.f32 %v4586, %v4740
        %v4773 = vadd.f32 %v4591, %v4741
        %v4774 = vadd.f32 %v4596, %v4742
        %v4775 = vadd.f32 %v4601, %v4743
        %v4776 = vadd.f32 %v4606, %v4744
        %v4777 = vadd.f32 %v4611, %v4745
        %v4778 = vadd.f32 %v4616, %v4746
        %v4779 = vadd.f32 %v4621, %v4747
        %v4780 = vadd.f32 %v4626, %v4748
        %v4781 = vadd.f32 %v4631, %v4749
        %v4782 = vadd.f32 %v4636, %v4750
        %v4783 = vadd.f32 %v4641, %v4751
        %v4784 = vadd.f32 %v4646, %v4752
        %v4785 = vadd.f32 %v4651, %v4753
        %v4786 = vadd.f32 %v4656, %v4754
        %v4787 = vadd.f32 %v4661, %v4755
        %v4788 = vadd.f32 %v4666, %v4756
        %v4789 = vadd.f32 %v4671, %v4757
        %v4790 = vadd.f32 %v4676, %v4758
        %v4791 = vadd.f32 %v4681, %v4759
        %v4792 = vadd.f32 %v4686, %v4760
        %v4793 = vadd.f32 %v4691, %v4761
        %v4794 = vadd.f32 %v4696, %v4762
        %v4795 = vadd.f32 %v4701, %v4763
        %v4796 = vadd.f32 %v4706, %v4764
        %v4797 = vadd.f32 %v4711, %v4765
        %v4798 = vadd.f32 %v4716, %v4766
        %v4799 = vadd.f32 %v4721, %v4767
        %v4800 = vadd.f32 %v4726, %v4768
        %v4801 = vadd.f32 %v4731, %v4769
        %v4802 = vadd.f32 %v4736, %v4770
        %4803 = vst.msk [vmem:[%s271] sm:$0xff] %vm277, %v4771
        %4804 = vst.msk [vmem:[%s271 + $0x8] sm:$0xff] %vm277, %v4772
        %4805 = vst.msk [vmem:[%s271 + $0x10] sm:$0xff] %vm277, %v4773
        %4806 = vst.msk [vmem:[%s271 + $0x18] sm:$0xff] %vm277, %v4774
        %4807 = vst.msk [vmem:[%s271 + $0x20] sm:$0xff] %vm277, %v4775
        %4808 = vst.msk [vmem:[%s271 + $0x28] sm:$0xff] %vm277, %v4776
        %4809 = vst.msk [vmem:[%s271 + $0x30] sm:$0xff] %vm277, %v4777
        %4810 = vst.msk [vmem:[%s271 + $0x38] sm:$0xff] %vm277, %v4778
        %4811 = vst.msk [vmem:[%s271 + $0x40] sm:$0xff] %vm277, %v4779
        %4812 = vst.msk [vmem:[%s271 + $0x48] sm:$0xff] %vm277, %v4780
        %4813 = vst.msk [vmem:[%s271 + $0x50] sm:$0xff] %vm277, %v4781
        %4814 = vst.msk [vmem:[%s271 + $0x58] sm:$0xff] %vm277, %v4782
        %4815 = vst.msk [vmem:[%s271 + $0x60] sm:$0xff] %vm277, %v4783
        %4816 = vst.msk [vmem:[%s271 + $0x68] sm:$0xff] %vm277, %v4784
        %4817 = vst.msk [vmem:[%s271 + $0x70] sm:$0xff] %vm277, %v4785
        %4818 = vst.msk [vmem:[%s271 + $0x78] sm:$0xff] %vm277, %v4786
        %4819 = vst.msk [vmem:[%s271 + $0x80] sm:$0xff] %vm277, %v4787
        %4820 = vst.msk [vmem:[%s271 + $0x88] sm:$0xff] %vm277, %v4788
        %4821 = vst.msk [vmem:[%s271 + $0x90] sm:$0xff] %vm277, %v4789
        %4822 = vst.msk [vmem:[%s271 + $0x98] sm:$0xff] %vm277, %v4790
        %4823 = vst.msk [vmem:[%s271 + $0xa0] sm:$0xff] %vm277, %v4791
        %4824 = vst.msk [vmem:[%s271 + $0xa8] sm:$0xff] %vm277, %v4792
        %4825 = vst.msk [vmem:[%s271 + $0xb0] sm:$0xff] %vm277, %v4793
        %4826 = vst.msk [vmem:[%s271 + $0xb8] sm:$0xff] %vm277, %v4794
        %4827 = vst.msk [vmem:[%s271 + $0xc0] sm:$0xff] %vm277, %v4795
        %4828 = vst.msk [vmem:[%s271 + $0xc8] sm:$0xff] %vm277, %v4796
        %4829 = vst.msk [vmem:[%s271 + $0xd0] sm:$0xff] %vm277, %v4797
        %4830 = vst.msk [vmem:[%s271 + $0xd8] sm:$0xff] %vm277, %v4798
        %4831 = vst.msk [vmem:[%s271 + $0xe0] sm:$0xff] %vm277, %v4799
        %4832 = vst.msk [vmem:[%s271 + $0xe8] sm:$0xff] %vm277, %v4800
        %4833 = vst.msk [vmem:[%s271 + $0xf0] sm:$0xff] %vm277, %v4801
        %4834 = vst.msk [vmem:[%s271 + $0xf8] sm:$0xff] %vm277, %v4802
        %s4835 = sand.u32 %s181, 1
        %s4836 = scalar_lea.sflag [#allocation5], %s4835
        %s4837 = sand.u32 %s181, 1
        %s4838 = smul.addr %s4837, 256
        %s4839 = scalar_lea.vmem [#allocation4], %s4838
        // Predicated region
        $region49: #{tpu_custom_call.1} parent=47 // pred_check
          %p4840 = pneg %p191
        $region50: #{tpu_custom_call.1} parent=47 // pred_check_branch
          %4842 = sbr.rel (%p4840) target = $region52
        $region51: #{tpu_custom_call.1} parent=47 // pred_region
          %s4844 = ssub.s32 4096, 4096
          %4845 = vsyncadd %s4836, %s4844
          %s4846 = smul.addr %s21, 32
          %s4847 = smul.addr %s4846, 128
          %s4848 = scalar_lea.hbm %s7, %s4847
          %s4849 = sshll.u32 %s4839, 4
          %s4850 = int_to_ptr.vmem [resolvable:$true] %s4849
          %4855 = dma.vmem_to_hbm [thread:$0]  %s4850, 4096, %s4848, %s4836, 128, 128, 8
        $region52: #{tpu_custom_call.1} parent=47 // pred_fallthru
          _
      $region48: #{tpu_custom_call.1} parent=5 // pred_fallthru
        _
      %p4856 = scmp.le.s32.totalorder 2, %s16
      // Predicated region
      $region53: #{tpu_custom_call.1} parent=5 // pred_check
        %p4857 = pneg %p4856
      $region54: #{tpu_custom_call.1} parent=5 // pred_check_branch
        %4859 = sbr.rel (%p4857) target = $region56
      $region55: #{tpu_custom_call.1} parent=5 // pred_region
        %s4860 = ssub.s32 %s16, 2
        // Predicated region
        $region57: #{tpu_custom_call.1} parent=55 // pred_check
          %p4861 = pneg %p197
        $region58: #{tpu_custom_call.1} parent=55 // pred_check_branch
          %4863 = sbr.rel (%p4861) target = $region60
        $region59: #{tpu_custom_call.1} parent=55 // pred_region
          %s4864 = sand.u32 %s182, 1
          %s4865 = scalar_lea.sflag [#allocation5], %s4864
          %s4866 = sand.u32 %s182, 1
          %s4867 = smul.addr %s4866, 256
          %s4868 = scalar_lea.vmem [#allocation4], %s4867
          %4869 = dma.done %s4865, 4096
        $region60: #{tpu_custom_call.1} parent=55 // pred_fallthru
          _
      $region56: #{tpu_custom_call.1} parent=5 // pred_fallthru
        _
    $region6: #{tpu_custom_call.1} parent=1 // loop_footer
      %s20 = sadd.s32 1, %s16
    $region7: #{tpu_custom_call.1} parent=1 // loop_footer_branch
      %15 = sbr.rel target = $region3
    $region8: #{tpu_custom_call.1} parent=1 // loop_exit
      _
    %4870 = vsyncpa [#allocation5], 1
    %s4871 = scalar_lea.sflag [#allocation5], 1
    %4872 = vsyncpa %s4871, 1

</llo_original>
